<compile_context>
chip_gen: v7x
topology: tpu7x:2x2x1
jax: 0.10.0
libtpu: 0.0.40
codegen_flags: <defaults>
</compile_context>

<pallas_src>
import jax
import jax.numpy as jnp
from jax import lax
from jax.experimental import pallas as pl
from jax.experimental.pallas import tpu as pltpu

_EPS = 1e-5


def _vmem_capacity_bytes():
    try:
        return int(pltpu.get_tpu_info().vmem_capacity_bytes)
    except Exception:
        return 64 * 1024 * 1024          # conservative (v7x-sized) fallback


_VMEM_CAP = _vmem_capacity_bytes()
_VMEM_LIMIT = min(3 * _VMEM_CAP // 4, 96 * 1024 * 1024)   # 48 MiB on v7x, 96 MiB on v5e/v6e
_BLOCK_BUDGET = int(_VMEM_LIMIT * 0.8)


# ----------------------------------------------------------------------------- kernels
def _conv_kernel(x_ref, sc_ref, sh_ref, lo_ref, w_ref, o_ref, s_ref):
    """3x3 VALID conv (stride 1, no bias) for one (cout-block, batch, row-block) tile.

    The per-input-channel affine + clamp (fused BN scale/shift + ReLU of the producer) is
    applied to the rb+2 halo rows, an im2col patch is built in bf16 and contracted with a
    single MXU dot; per-channel BN partial sums for THIS tile are written to s_ref."""
    rb, ow, cob = o_ref.shape[1], o_ref.shape[2], o_ref.shape[3]
    cin = x_ref.shape[3]

    r = pl.program_id(2)
    start = pl.multiple_of(r * rb, rb)
    xa = x_ref[0, pl.ds(start, rb + 2), :, :]                      # (rb+2, Wp, cin) f32
    xa = jnp.maximum(xa * sc_ref[...] + sh_ref[...], lo_ref[...])  # fused producer BN+ReLU
    xb = xa.astype(jnp.bfloat16)

    cols = []
    for kh in range(3):
        for kw in range(3):
            cols.append(xb[kh:kh + rb, kw:kw + ow, :].reshape(rb * ow, cin))
    patch = jnp.concatenate(cols, axis=1)                          # (rb*ow, 9*cin) bf16

    acc = jnp.dot(patch, w_ref[...], preferred_element_type=jnp.float32)
    o_ref[...] = acc.reshape(1, rb, ow, cob)

    s_ref[...] = jnp.concatenate(
        [jnp.sum(acc, axis=0, keepdims=True),
         jnp.sum(acc * acc, axis=0, keepdims=True)], axis=0).reshape(1, 1, 2, cob)


def _pool_kernel(x_ref, sc_ref, sh_ref, o_ref):
    """Fused BN(scale/shift)+ReLU followed by MaxPool2d(2,2)."""
    _, rb, wo, c = o_ref.shape
    x = jnp.maximum(x_ref[0] * sc_ref[...] + sh_ref[...], 0.0)     # (2rb, W, c)
    x = x.reshape(rb, 2, wo, 2, c)
    o_ref[...] = jnp.max(jnp.max(x, axis=3), axis=1).reshape(1, rb, wo, c)


def _convt_kernel(x_ref, sc_ref, sh_ref, w_ref, b_ref, o_ref):
    """ConvTranspose2d(k=2, s=2) with fused BN+ReLU on the input: one dot with N=4*cout."""
    _, h, wd, cin = x_ref.shape
    cout = o_ref.shape[-1]
    xa = jnp.maximum(x_ref[0] * sc_ref[...] + sh_ref[...], 0.0)
    xf = xa.reshape(h * wd, cin).astype(jnp.bfloat16)
    y = jnp.dot(xf, w_ref[...], preferred_element_type=jnp.float32) + b_ref[...]
    for a in range(2):
        for b in range(2):
            o_ref[0, a, b] = y[:, (2 * a + b) * cout:(2 * a + b + 1) * cout].reshape(h, wd, cout)


# ----------------------------------------------------------------------------- wrappers
def _pick_conv_rb(oh, ow, wp, cin, cob):
    """Largest row-block (divisor of oh) whose estimated working set fits the budget.
    The estimate includes double-buffered input/weights/output AND in-kernel temporaries
    (BN-applied halo chunk, im2col patch, dot result + its square for the stats)."""
    hp = oh + 2
    fixed = 2 * 4 * hp * wp * cin + 2 * 2 * 9 * cin * cob
    best = 1
    for rb in range(1, oh + 1):
        if oh % rb:
            continue
        work = (2 * 4 * rb * ow * cob          # output block, double-buffered f32
                + 2 * rb * ow * 9 * cin        # im2col patch bf16
                + 10 * (rb + 2) * wp * cin     # activated halo chunk (f32 temps + bf16 copy)
                + 8 * rb * ow * cob)           # dot result + squared copy (stats)
        if fixed + work <= _BLOCK_BUDGET:
            best = rb
    return best


def conv_layer(x, pre, p):
    """PyTorch `Conv` module minus its own BN-apply: returns (raw_conv_out, scale, shift)
    such that the post-activation tensor is relu(raw*scale + shift).
    `pre` = (scale, shift, lower_bound) per input channel (the producer's fused BN+ReLU)."""
    n, hp, wp, cin = x.shape
    cout = p["w9"].shape[1]
    oh, ow = hp - 2, wp - 2
    co_b = cout if cout <= 512 else 512
    rb = _pick_conv_rb(oh, ow, wp, cin, co_b)
    n_r, n_c = oh // rb, cout // co_b
    sc, sh, lo = (v.reshape(1, cin) for v in pre)

    conv_out, stats = pl.pallas_call(
        _conv_kernel,
        out_shape=(jax.ShapeDtypeStruct((n, oh, ow, cout), jnp.float32),
                   jax.ShapeDtypeStruct((n, n_r, 2, cout), jnp.float32)),
        grid=(n_c, n, n_r),
        in_specs=[
            # Input block index is constant across (cout, rows): DMA'd once per batch.
            pl.BlockSpec((1, hp, wp, cin), lambda c, b, r: (b, 0, 0, 0)),
            pl.BlockSpec((1, cin), lambda c, b, r: (0, 0)),
            pl.BlockSpec((1, cin), lambda c, b, r: (0, 0)),
            pl.BlockSpec((1, cin), lambda c, b, r: (0, 0)),
            pl.BlockSpec((9 * cin, co_b), lambda c, b, r: (0, c)),
        ],
        out_specs=(pl.BlockSpec((1, rb, ow, co_b), lambda c, b, r: (b, r, 0, c)),
                   pl.BlockSpec((1, 1, 2, co_b), lambda c, b, r: (b, r, 0, c))),
        compiler_params=pltpu.CompilerParams(
            dimension_semantics=("parallel", "parallel", "parallel"),
            vmem_limit_bytes=_VMEM_LIMIT),
    )(x, sc, sh, lo, p["w9"])

    # Reduce the per-(batch, row-block) partial sums and build scale/shift (train mode).
    cnt = jnp.float32(n * oh * ow)
    mean = jnp.sum(stats[:, :, 0, :], axis=(0, 1)) / cnt
    var = jnp.maximum(jnp.sum(stats[:, :, 1, :], axis=(0, 1)) / cnt - mean * mean, 0.0)
    scale = p["gamma"] * lax.rsqrt(var + _EPS)
    shift = p["beta"] - mean * scale
    return conv_out, scale, shift


def maxpool_bnrelu(x, scale, shift):
    """MaxPool2d(2,2) over relu(x*scale+shift) (BN+ReLU of the producing conv fused in)."""
    n, h, w, c = x.shape
    ho, wo = h // 2, w // 2
    rb = 1
    for cand in range(1, ho + 1):
        if ho % cand == 0 and cand * w * c * 36 <= _BLOCK_BUDGET:
            rb = cand
    return pl.pallas_call(
        _pool_kernel,
        out_shape=jax.ShapeDtypeStruct((n, ho, wo, c), jnp.float32),
        grid=(n, ho // rb),
        in_specs=[pl.BlockSpec((1, 2 * rb, w, c), lambda b, r: (b, r, 0, 0)),
                  pl.BlockSpec((1, c), lambda b, r: (0, 0)),
                  pl.BlockSpec((1, c), lambda b, r: (0, 0))],
        out_specs=pl.BlockSpec((1, rb, wo, c), lambda b, r: (b, r, 0, 0)),
        compiler_params=pltpu.CompilerParams(
            dimension_semantics=("parallel", "parallel"),
            vmem_limit_bytes=_VMEM_LIMIT),
    )(x, scale.reshape(1, c), shift.reshape(1, c))


def convt_layer(x, scale, shift, p):
    """ConvTranspose2d(k=2, s=2, bias=True) over relu(x*scale+shift)."""
    n, h, w, cin = x.shape
    cout = p["w4"].shape[1] // 4
    out6 = pl.pallas_call(
        _convt_kernel,
        out_shape=jax.ShapeDtypeStruct((n, 2, 2, h, w, cout), jnp.float32),
        grid=(n,),
        in_specs=[pl.BlockSpec((1, h, w, cin), lambda b: (b, 0, 0, 0)),
                  pl.BlockSpec((1, cin), lambda b: (0, 0)),
                  pl.BlockSpec((1, cin), lambda b: (0, 0)),
                  pl.BlockSpec((cin, 4 * cout), lambda b: (0, 0)),
                  pl.BlockSpec((1, 4 * cout), lambda b: (0, 0))],
        out_specs=pl.BlockSpec((1, 2, 2, h, w, cout), lambda b: (b, 0, 0, 0, 0, 0)),
        compiler_params=pltpu.CompilerParams(
            dimension_semantics=("parallel",),
            vmem_limit_bytes=_VMEM_LIMIT),
    )(x, scale.reshape(1, cin), shift.reshape(1, cin), p["w4"], p["b4"].reshape(1, 4 * cout))
    # (N, a, b, H, W, C) -> (N, 2H, 2W, C): tiny (<=128 KB here) layout epilogue in XLA.
    return jnp.transpose(out6, (0, 3, 1, 4, 2, 5)).reshape(n, 2 * h, 2 * w, cout)


def conv_bn_relu_pallas(x, w, gamma, beta):
    """Standalone Conv->BN->ReLU (for the unit check): finalizes the fused form in jnp."""
    cin, cout = w.shape[2], w.shape[3]
    p = dict(w9=w.reshape(9 * cin, cout).astype(jnp.bfloat16), gamma=gamma, beta=beta)
    pre = (jnp.ones((cin,), jnp.float32), jnp.zeros((cin,), jnp.float32),
           jnp.full((cin,), -jnp.inf, jnp.float32))
    raw, sc, sh = conv_layer(x, pre, p)
    return jnp.maximum(raw * sc + sh, 0.0)


# ----------------------------------------------------------------------------- network
def _identity_pre(c):
    return (jnp.ones((c,), jnp.float32), jnp.zeros((c,), jnp.float32),
            jnp.full((c,), -jnp.inf, jnp.float32))


def _crop_concat(skip, skip_pre, up):
    """Crop the raw skip, concat with the (already final) upsampled tensor, and build the
    per-channel (scale, shift, lower-bound) for the concatenated consumer input."""
    h = up.shape[1]
    d = (skip.shape[1] - h) // 2
    x = jnp.concatenate([skip[:, d:d + h, d:d + h, :], up], axis=-1)
    cu = up.shape[-1]
    pre = (jnp.concatenate([skip_pre[0], jnp.ones((cu,), jnp.float32)]),
           jnp.concatenate([skip_pre[1], jnp.zeros((cu,), jnp.float32)]),
           jnp.concatenate([skip_pre[2], jnp.full((cu,), -jnp.inf, jnp.float32)]))
    return x, pre


def unet_forward_pallas(x, Pk):
    def run_block(x, pre, plist):
        for p in plist:
            x, sc, sh = conv_layer(x, pre, p)
            pre = (sc, sh, jnp.zeros_like(sc))       # consumer applies relu(x*sc+sh)
        return x, pre

    skips = []
    pre = _identity_pre(x.shape[-1])
    for name in ("cb1", "cb2", "cb3", "cb4"):
        x, pre = run_block(x, pre, Pk[name])
        skips.append((x, pre))
        x = maxpool_bnrelu(x, pre[0], pre[1])
        pre = _identity_pre(x.shape[-1])
    x, pre = run_block(x, pre, Pk["cb5"])

    for tname, ename, (skip, skip_pre) in zip(("t4", "t3", "t2", "t1"),
                                              ("exp4", "exp3", "exp2", "exp1"),
                                              reversed(skips)):
        up = convt_layer(x, pre[0], pre[1], Pk[tname])
        x, pre = _crop_concat(skip, skip_pre, up)
        x, pre = run_block(x, pre, Pk[ename])

    # expcl has padding=1: materialize the tiny (4x4x64) activation in jnp, zero-pad, conv.
    x = jnp.maximum(x * pre[0] + pre[1], 0.0)
    x = jnp.pad(x, ((0, 0), (1, 1), (1, 1), (0, 0)))
    x, sc, sh = conv_layer(x, _identity_pre(x.shape[-1]), Pk["expcl"][0])
    return jnp.maximum(x * sc + sh, 0.0)             # final BN+ReLU (1x4x4x5, jnp epilogue)


# ----------------------------------------------------------------------------- reference
def conv_bn_relu_ref(x, w, gamma, beta, *, padding=0, eps=_EPS):
    c = lax.conv_general_dilated(
        x, w, window_strides=(1, 1),
        padding=[(padding, padding), (padding, padding)],
        dimension_numbers=("NHWC", "HWIO", "NHWC"),
        precision=lax.Precision.HIGHEST)
    mean = c.mean(axis=(0, 1, 2))
    var = ((c - mean) ** 2).mean(axis=(0, 1, 2))
    y = (c - mean) * lax.rsqrt(var + eps) * gamma + beta
    return jnp.maximum(y, 0.0)


def maxpool_ref(x):
    return lax.reduce_window(x, jnp.array(-jnp.inf, x.dtype), lax.max,
                             (1, 2, 2, 1), (1, 2, 2, 1), "VALID")


def convt_ref(x, w, b):
    n, h, wd, _ = x.shape
    cout = w.shape[3]
    y = jnp.einsum("nhwi,abio->nhawbo", x, w, precision=lax.Precision.HIGHEST)
    return y.reshape(n, 2 * h, 2 * wd, cout) + b


def unet_forward_ref(x, P):
    def block(x, plist, padding=0):
        for p in plist:
            x = conv_bn_relu_ref(x, p["w"], p["gamma"], p["beta"], padding=padding)
        return x

    def cc(skip, x):
        h = x.shape[1]
        d = (skip.shape[1] - h) // 2
        return jnp.concatenate([skip[:, d:d + h, d:d + h, :], x], axis=-1)

    x = block(x, P["cb1"]); s1 = x; x = maxpool_ref(x)
    x = block(x, P["cb2"]); s2 = x; x = maxpool_ref(x)
    x = block(x, P["cb3"]); s3 = x; x = maxpool_ref(x)
    x = block(x, P["cb4"]); s4 = x; x = maxpool_ref(x)
    x = block(x, P["cb5"])
    x = convt_ref(x, P["t4"]["w"], P["t4"]["b"]); x = cc(s4, x); x = block(x, P["exp4"])
    x = convt_ref(x, P["t3"]["w"], P["t3"]["b"]); x = cc(s3, x); x = block(x, P["exp3"])
    x = convt_ref(x, P["t2"]["w"], P["t2"]["b"]); x = cc(s2, x); x = block(x, P["exp2"])
    x = convt_ref(x, P["t1"]["w"], P["t1"]["b"]); x = cc(s1, x); x = block(x, P["exp1"])
    return block(x, P["expcl"], padding=1)


# ----------------------------------------------------------------------------- params
def _conv_p(key, cin, cout):
    kw, kg, kb = jax.random.split(key, 3)
    return dict(
        w=jax.random.normal(kw, (3, 3, cin, cout), jnp.float32) * (2.0 / (9 * cin)) ** 0.5,
        gamma=1.0 + 0.1 * jax.random.normal(kg, (cout,), jnp.float32),
        beta=0.1 * jax.random.normal(kb, (cout,), jnp.float32))


def _convt_p(key, cin, cout):
    kw, kb = jax.random.split(key)
    return dict(
        w=jax.random.normal(kw, (2, 2, cin, cout), jnp.float32) * (1.0 / (4 * cin)) ** 0.5,
        b=0.01 * jax.random.normal(kb, (cout,), jnp.float32))


def make_unet_params(key, in_channels=1, class_num=5):
    cs = [in_channels, 64, 128, 256, 512, 1024]
    keys = iter(jax.random.split(key, 32))

    def cb(cin, cout, depth=2):
        ps = [_conv_p(next(keys), cin, cout)]
        ps += [_conv_p(next(keys), cout, cout) for _ in range(depth - 1)]
        return ps

    return dict(
        cb1=cb(cs[0], cs[1]), cb2=cb(cs[1], cs[2]), cb3=cb(cs[2], cs[3]),
        cb4=cb(cs[3], cs[4]), cb5=cb(cs[4], cs[5]),
        t4=_convt_p(next(keys), cs[5], cs[4]), t3=_convt_p(next(keys), cs[4], cs[3]),
        t2=_convt_p(next(keys), cs[3], cs[2]), t1=_convt_p(next(keys), cs[2], cs[1]),
        exp4=cb(cs[5], cs[4]), exp3=cb(cs[4], cs[3]),
        exp2=cb(cs[3], cs[2]), exp1=cb(cs[2], cs[1]),
        expcl=cb(cs[1], class_num, depth=1))


def prepare_pallas_params(P):
    """One-time reshape/cast of weights to the kernel layouts (bf16 MXU operands)."""
    def conv(p):
        w = p["w"]
        cin, cout = w.shape[2], w.shape[3]
        return dict(w9=w.reshape(9 * cin, cout).astype(jnp.bfloat16),
                    gamma=p["gamma"], beta=p["beta"])

    def convt(p):
        w = p["w"]
        cin, cout = w.shape[2], w.shape[3]
        return dict(w4=jnp.transpose(w, (2, 0, 1, 3)).reshape(cin, 4 * cout).astype(jnp.bfloat16),
                    b4=jnp.tile(p["b"], 4))

    out = {}
    for k, v in P.items():
        out[k] = convt(v) if k.startswith("t") else [conv(p) for p in v]
    return out


# ----------------------------------------------------------------------------- main
if __name__ == "__main__":
    key = jax.random.PRNGKey(0)
    kp, kx, ku = jax.random.split(key, 3)

    # ---- unit check of the fused Conv building block (conv3x3 + BN + ReLU), small shapes ----
    kw_, kg_, kb_, kx_ = jax.random.split(ku, 4)
    xu = jax.random.normal(kx_, (2, 16, 16, 4), jnp.float32)
    wu = 0.1 * jax.random.normal(kw_, (3, 3, 4, 8), jnp.float32)
    gu = 1.0 + 0.1 * jax.random.normal(kg_, (8,), jnp.float32)
    bu = 0.1 * jax.random.normal(kb_, (8,), jnp.float32)
    got = jax.block_until_ready(jax.jit(conv_bn_relu_pallas)(xu, wu, gu, bu))
    want = conv_bn_relu_ref(xu, wu, gu, bu)
    mx = float(jnp.max(jnp.abs(got - want)))
    assert got.shape == want.shape and mx < 3e-2, f"Conv block mismatch: {mx}"

    # ---- full U-Net forward (smallest spatial size the valid-conv architecture allows) ----
    P = make_unet_params(kp, in_channels=1, class_num=5)
    Pk = prepare_pallas_params(P)
    x_nchw = jax.random.normal(kx, (1, 1, 188, 188), jnp.float32)
    x = jnp.transpose(x_nchw, (0, 2, 3, 1))          # NCHW -> NHWC once at entry

    fwd = jax.jit(unet_forward_pallas)
    out_nhwc = jax.block_until_ready(fwd(x, Pk))
    out = jnp.transpose(out_nhwc, (0, 3, 1, 2))      # NHWC -> NCHW once at exit

    ref_nhwc = jax.block_until_ready(jax.jit(unet_forward_ref)(x, P))
    ref = jnp.transpose(ref_nhwc, (0, 3, 1, 2))

    assert out.shape == ref.shape == (1, 5, 4, 4)
    assert bool(jnp.all(jnp.isfinite(out)))
    err = float(jnp.linalg.norm(out - ref) / (jnp.linalg.norm(ref) + 1e-6))
    assert err < 5e-2, f"relative error too large: {err}"
    print("KERNEL_OK")
</pallas_src>

<mosaic_0001>
module attributes {stable_mosaic.version = 11 : i64} {
  func.func @_conv_kernel(%arg0: i32, %arg1: i32, %arg2: i32, %arg3: memref<1x16x16x4xf32, #tpu.memory_space<vmem>>, %arg4: memref<1x4xf32, #tpu.memory_space<vmem>>, %arg5: memref<1x4xf32, #tpu.memory_space<vmem>>, %arg6: memref<1x4xf32, #tpu.memory_space<vmem>>, %arg7: memref<36x8xbf16, #tpu.memory_space<vmem>>, %arg8: memref<1x14x14x8xf32, #tpu.memory_space<vmem>>, %arg9: memref<1x1x2x8xf32, #tpu.memory_space<vmem>>) attributes {dimension_semantics = [#tpu.dimension_semantics<parallel>, #tpu.dimension_semantics<parallel>, #tpu.dimension_semantics<parallel>], iteration_bounds = array<i64: 1, 2, 1>, scalar_prefetch = 0 : i64, scratch_operands = 0 : i64, tpu.core_type = #tpu.core_type<tc>, window_params = [{transform_indices = @transform_0, window_bounds = array<i64: 1, 16, 16, 4>}, {pipeline_mode = #tpu.pipeline_mode<synchronous>, transform_indices = @transform_1, window_bounds = array<i64: 1, 4>}, {pipeline_mode = #tpu.pipeline_mode<synchronous>, transform_indices = @transform_2, window_bounds = array<i64: 1, 4>}, {pipeline_mode = #tpu.pipeline_mode<synchronous>, transform_indices = @transform_3, window_bounds = array<i64: 1, 4>}, {transform_indices = @transform_4, window_bounds = array<i64: 36, 8>}, {transform_indices = @transform_5, window_bounds = array<i64: 1, 14, 14, 8>}, {transform_indices = @transform_6, window_bounds = array<i64: 1, 1, 2, 8>}]} {
    %c14_i32 = arith.constant 14 : i32
    %0 = arith.muli %arg2, %c14_i32 : i32
    %1 = tpu.assume_multiple %0, 14 : i32
    %c0 = arith.constant 0 : index
    %2 = arith.index_cast %1 : i32 to index
    %c0_0 = arith.constant 0 : index
    %c0_1 = arith.constant 0 : index
    %3 = vector.load %arg3[%c0, %2, %c0_0, %c0_1] : memref<1x16x16x4xf32, #tpu.memory_space<vmem>>, vector<1x16x16x4xf32>
    %4 = vector.shape_cast %3 : vector<1x16x16x4xf32> to vector<16x16x4xf32>
    %c0_2 = arith.constant 0 : index
    %c0_3 = arith.constant 0 : index
    %5 = vector.load %arg4[%c0_2, %c0_3] : memref<1x4xf32, #tpu.memory_space<vmem>>, vector<1x4xf32>
    %6 = vector.shape_cast %5 : vector<1x4xf32> to vector<1x1x4xf32>
    %7 = vector.broadcast %6 : vector<1x1x4xf32> to vector<16x16x4xf32>
    %8 = arith.mulf %4, %7 : vector<16x16x4xf32>
    %c0_4 = arith.constant 0 : index
    %c0_5 = arith.constant 0 : index
    %9 = vector.load %arg5[%c0_4, %c0_5] : memref<1x4xf32, #tpu.memory_space<vmem>>, vector<1x4xf32>
    %10 = vector.shape_cast %9 : vector<1x4xf32> to vector<1x1x4xf32>
    %11 = vector.broadcast %10 : vector<1x1x4xf32> to vector<16x16x4xf32>
    %12 = arith.addf %8, %11 : vector<16x16x4xf32>
    %c0_6 = arith.constant 0 : index
    %c0_7 = arith.constant 0 : index
    %13 = vector.load %arg6[%c0_6, %c0_7] : memref<1x4xf32, #tpu.memory_space<vmem>>, vector<1x4xf32>
    %14 = vector.shape_cast %13 : vector<1x4xf32> to vector<1x1x4xf32>
    %15 = vector.broadcast %14 : vector<1x1x4xf32> to vector<16x16x4xf32>
    %16 = arith.maximumf %12, %15 : vector<16x16x4xf32>
    %17 = arith.truncf %16 : vector<16x16x4xf32> to vector<16x16x4xbf16>
    %18 = vector.extract_strided_slice %17 {offsets = [0, 0, 0], sizes = [14, 14, 4], strides = [1, 1, 1]} : vector<16x16x4xbf16> to vector<14x14x4xbf16>
    %19 = vector.shape_cast %18 : vector<14x14x4xbf16> to vector<196x4xbf16>
    %20 = vector.extract_strided_slice %17 {offsets = [0, 1, 0], sizes = [14, 14, 4], strides = [1, 1, 1]} : vector<16x16x4xbf16> to vector<14x14x4xbf16>
    %21 = vector.shape_cast %20 : vector<14x14x4xbf16> to vector<196x4xbf16>
    %22 = vector.extract_strided_slice %17 {offsets = [0, 2, 0], sizes = [14, 14, 4], strides = [1, 1, 1]} : vector<16x16x4xbf16> to vector<14x14x4xbf16>
    %23 = vector.shape_cast %22 : vector<14x14x4xbf16> to vector<196x4xbf16>
    %24 = vector.extract_strided_slice %17 {offsets = [1, 0, 0], sizes = [14, 14, 4], strides = [1, 1, 1]} : vector<16x16x4xbf16> to vector<14x14x4xbf16>
    %25 = vector.shape_cast %24 : vector<14x14x4xbf16> to vector<196x4xbf16>
    %26 = vector.extract_strided_slice %17 {offsets = [1, 1, 0], sizes = [14, 14, 4], strides = [1, 1, 1]} : vector<16x16x4xbf16> to vector<14x14x4xbf16>
    %27 = vector.shape_cast %26 : vector<14x14x4xbf16> to vector<196x4xbf16>
    %28 = vector.extract_strided_slice %17 {offsets = [1, 2, 0], sizes = [14, 14, 4], strides = [1, 1, 1]} : vector<16x16x4xbf16> to vector<14x14x4xbf16>
    %29 = vector.shape_cast %28 : vector<14x14x4xbf16> to vector<196x4xbf16>
    %30 = vector.extract_strided_slice %17 {offsets = [2, 0, 0], sizes = [14, 14, 4], strides = [1, 1, 1]} : vector<16x16x4xbf16> to vector<14x14x4xbf16>
    %31 = vector.shape_cast %30 : vector<14x14x4xbf16> to vector<196x4xbf16>
    %32 = vector.extract_strided_slice %17 {offsets = [2, 1, 0], sizes = [14, 14, 4], strides = [1, 1, 1]} : vector<16x16x4xbf16> to vector<14x14x4xbf16>
    %33 = vector.shape_cast %32 : vector<14x14x4xbf16> to vector<196x4xbf16>
    %34 = vector.extract_strided_slice %17 {offsets = [2, 2, 0], sizes = [14, 14, 4], strides = [1, 1, 1]} : vector<16x16x4xbf16> to vector<14x14x4xbf16>
    %35 = vector.shape_cast %34 : vector<14x14x4xbf16> to vector<196x4xbf16>
    %36 = tpu.concatenate %19, %21, %23, %25, %27, %29, %31, %33, %35 in 1 : vector<196x4xbf16>, vector<196x4xbf16>, vector<196x4xbf16>, vector<196x4xbf16>, vector<196x4xbf16>, vector<196x4xbf16>, vector<196x4xbf16>, vector<196x4xbf16>, vector<196x4xbf16> -> vector<196x36xbf16>
    %c0_8 = arith.constant 0 : index
    %c0_9 = arith.constant 0 : index
    %37 = vector.load %arg7[%c0_8, %c0_9] : memref<36x8xbf16, #tpu.memory_space<vmem>>, vector<36x8xbf16>
    %cst = arith.constant dense<0.000000e+00> : vector<196x8xf32>
    %38 = tpu.matmul %36, %37, %cst {dimension_numbers = #tpu.dot_dimension_numbers<[1], [0], [0], [1], [0, 0, 1, 1], [], []>} : vector<196x36xbf16>, vector<36x8xbf16>, vector<196x8xf32> -> vector<196x8xf32>
    %39 = vector.shape_cast %38 : vector<196x8xf32> to vector<1x14x14x8xf32>
    %c0_10 = arith.constant 0 : index
    %c0_11 = arith.constant 0 : index
    %c0_12 = arith.constant 0 : index
    %c0_13 = arith.constant 0 : index
    %40 = vector.load %arg8[%c0_10, %c0_11, %c0_12, %c0_13] : memref<1x14x14x8xf32, #tpu.memory_space<vmem>>, vector<1x14x14x8xf32>
    tpu.vector_store %arg8[%c0_10, %c0_11, %c0_12, %c0_13], %39 {strides = array<i32>} : memref<1x14x14x8xf32, #tpu.memory_space<vmem>>, vector<1x14x14x8xf32>,
    %cst_14 = arith.constant dense<0.000000e+00> : vector<8xf32>
    %41 = vector.multi_reduction <add>, %38, %cst_14 [0] : vector<196x8xf32> to vector<8xf32>
    %42 = vector.shape_cast %41 : vector<8xf32> to vector<1x8xf32>
    %43 = arith.mulf %38, %38 : vector<196x8xf32>
    %cst_15 = arith.constant dense<0.000000e+00> : vector<8xf32>
    %44 = vector.multi_reduction <add>, %43, %cst_15 [0] : vector<196x8xf32> to vector<8xf32>
    %45 = vector.shape_cast %44 : vector<8xf32> to vector<1x8xf32>
    %46 = tpu.concatenate %42, %45 in 0 : vector<1x8xf32>, vector<1x8xf32> -> vector<2x8xf32>
    %47 = vector.shape_cast %46 : vector<2x8xf32> to vector<1x1x2x8xf32>
    %c0_16 = arith.constant 0 : index
    %c0_17 = arith.constant 0 : index
    %c0_18 = arith.constant 0 : index
    %c0_19 = arith.constant 0 : index
    %48 = vector.load %arg9[%c0_16, %c0_17, %c0_18, %c0_19] : memref<1x1x2x8xf32, #tpu.memory_space<vmem>>, vector<1x1x2x8xf32>
    tpu.vector_store %arg9[%c0_16, %c0_17, %c0_18, %c0_19], %47 {strides = array<i32>} : memref<1x1x2x8xf32, #tpu.memory_space<vmem>>, vector<1x1x2x8xf32>,
    return
  }
  func.func @transform_0(%arg0: i32, %arg1: i32, %arg2: i32) -> (i32, i32, i32, i32) {
    %c0_i32 = arith.constant 0 : i32
    %c0_i32_0 = arith.constant 0 : i32
    %c0_i32_1 = arith.constant 0 : i32
    %c0_i32_2 = arith.constant 0 : i32
    return %arg1, %c0_i32, %c0_i32_0, %c0_i32_1 : i32, i32, i32, i32
  }
  func.func @transform_1(%arg0: i32, %arg1: i32, %arg2: i32) -> (i32, i32) {
    %c0_i32 = arith.constant 0 : i32
    %c0_i32_0 = arith.constant 0 : i32
    %c0_i32_1 = arith.constant 0 : i32
    return %c0_i32, %c0_i32_0 : i32, i32
  }
  func.func @transform_2(%arg0: i32, %arg1: i32, %arg2: i32) -> (i32, i32) {
    %c0_i32 = arith.constant 0 : i32
    %c0_i32_0 = arith.constant 0 : i32
    %c0_i32_1 = arith.constant 0 : i32
    return %c0_i32, %c0_i32_0 : i32, i32
  }
  func.func @transform_3(%arg0: i32, %arg1: i32, %arg2: i32) -> (i32, i32) {
    %c0_i32 = arith.constant 0 : i32
    %c0_i32_0 = arith.constant 0 : i32
    %c0_i32_1 = arith.constant 0 : i32
    return %c0_i32, %c0_i32_0 : i32, i32
  }
  func.func @transform_4(%arg0: i32, %arg1: i32, %arg2: i32) -> (i32, i32) {
    %c0_i32 = arith.constant 0 : i32
    %c0_i32_0 = arith.constant 0 : i32
    return %c0_i32, %arg0 : i32, i32
  }
  func.func @transform_5(%arg0: i32, %arg1: i32, %arg2: i32) -> (i32, i32, i32, i32) {
    %c0_i32 = arith.constant 0 : i32
    %c0_i32_0 = arith.constant 0 : i32
    return %arg1, %arg2, %c0_i32, %arg0 : i32, i32, i32, i32
  }
  func.func @transform_6(%arg0: i32, %arg1: i32, %arg2: i32) -> (i32, i32, i32, i32) {
    %c0_i32 = arith.constant 0 : i32
    %c0_i32_0 = arith.constant 0 : i32
    return %arg1, %arg2, %c0_i32, %arg0 : i32, i32, i32, i32
  }
}

</mosaic_0001>

<llo_original>
// kernel: conv_bn_relu_pallas.1
$region0: #{conv_bn_relu_pallas.1}
  #allocation0 [shape = 'u32[]', space=smem, size = 0x4, offset = 0x4, fixed_abs, tag = 'smem constant byte address 0x4 - core index']
  #allocation1 [shape = 'u32[144,128]{1,0:T(1,128)}', space=vmem, size = 0x12000, scoped, tag = 'internal scratch']
  %s0 = inlined_call_operand.vmem [shape: f32[2,16,16,4], index: 0, kind: input, shape index: {}]
  %s1 = inlined_call_operand.vmem [shape: f32[1,4], index: 1, kind: input, shape index: {}]
  %s2 = inlined_call_operand.vmem [shape: f32[1,4], index: 2, kind: input, shape index: {}]
  %s3 = inlined_call_operand.vmem [shape: f32[1,4], index: 3, kind: input, shape index: {}]
  %s4 = inlined_call_operand.vmem [shape: bf16[36,8], index: 4, kind: input, shape index: {}]
  %s5 = inlined_call_operand.vmem [shape: f32[2,14,14,8], index: 5, kind: output, shape index: {0}]
  %s6 = inlined_call_operand.vmem [shape: f32[2,1,2,8], index: 6, kind: output, shape index: {1}]
  %7 = xla_tuple %s5, %s6
  %s8 = sld [smem:[#allocation0]]
  $region61: #{conv_bn_relu_pallas.1} parent=0
    _
  %s10 = ssub.s32 1, %s8
  %s11 = scalar_select 0, %s10, %s8
  loop: start=0, step=1, limit=4
  $region2: #{conv_bn_relu_pallas.1} parent=0 // loop_pre_header
    _
  $region3: #{conv_bn_relu_pallas.1} parent=0 // loop_header
    %s13 = sphi 0, %s17
    %p14 = scmp.ge.s32.totalorder %s13, 4
    %s20 = sphi 0, %s39
    %s21 = sphi 0, %s35
    %s22 = sphi 0, %s31
    %s23 = sphi 0, %s20
    %s24 = sphi 0, %s21
    %s25 = sphi 0, %s22
    %s26 = sphi 0, %s23
    %s27 = sphi 0, %s24
    %s28 = sphi 0, %s25
    %s42 = sphi 0, %s44
    %s45 = sphi 0, %s42
    %s46 = sphi 0, %s45
    %s62 = sphi 0, %s46
    %s66 = sphi 0, %s66
    %s68 = sphi 0, %s66
    %s69 = sphi 0, %s68
    %s83 = sphi 0, %s69
    %s87 = sphi 0, %s87
    %s89 = sphi 0, %s87
    %s90 = sphi 0, %s89
    %s104 = sphi 0, %s90
    %s108 = sphi 0, %s108
    %s110 = sphi 0, %s108
    %s111 = sphi 0, %s110
    %s125 = sphi 0, %s111
    %s131 = sphi 0, %s133
    %s134 = sphi 0, %s131
    %s135 = sphi 0, %s134
    %s151 = sphi 0, %s135
    %s161 = sphi 0, %s163
    %s164 = sphi 0, %s161
    %s165 = sphi 0, %s164
    %s181 = sphi 0, %s165
    %s191 = sphi 0, %s193
    %s194 = sphi 0, %s191
    %s195 = sphi 0, %s194
    %s211 = sphi 0, %s195
  $region4: #{conv_bn_relu_pallas.1} parent=0 // loop_header_branch
    %16 = sbr.rel (%p14) target = $region8
  $region5: #{conv_bn_relu_pallas.1} parent=0 // loop_body
    %s18 = ssub.s32 %s13, 1
    %s19 = ssub.s32 %s13, 2
    %s29 = sadd.s32 1, %s22
    %p30 = scmp.ge.s32.totalorder %s29, 1
    %s31 = scalar_select %p30, 0, %s29
    %s32 = sadd.s32 1, %s21
    %s33 = scalar_select %p30, %s32, %s21
    %p34 = scmp.ge.s32.totalorder %s33, 2
    %s35 = scalar_select %p34, 0, %s33
    %s36 = sadd.s32 1, %s20
    %s37 = scalar_select %p34, %s36, %s20
    %p38 = scmp.ge.s32.totalorder %s37, 1
    %s39 = scalar_select %p38, 0, %s37
    %s40 = ssub.s32 %s21, %s35
    %p41 = scmp.eq.s32.totalorder %s40, 0
    %s43 = sadd.s32 %s42, 1
    %s44 = scalar_select %p41, %s42, %s43
    %p47 = pneg %p41
    %p48 = scmp.eq.s32.totalorder %s13, 1
    %p49 = por %p47, %p48
    %p50 = scmp.ne.s32.totalorder %s42, %s45
    %p51 = scmp.eq.s32.totalorder %s13, 0
    %p52 = por %p50, %p51
    %p53 = scmp.ne.s32.totalorder %s42, %s45
    %p54 = scmp.eq.s32.totalorder %s18, 1
    %p55 = por %p53, %p54
    %p56 = scmp.ne.s32.totalorder %s45, %s46
    %p57 = scmp.eq.s32.totalorder %s18, 0
    %p58 = por %p56, %p57
    %p59 = scmp.ne.s32.totalorder %s45, %s46
    %p60 = scmp.eq.s32.totalorder %s19, 1
    %p61 = por %p59, %p60
    %p63 = scmp.ne.s32.totalorder %s46, %s62
    %p64 = scmp.eq.s32.totalorder %s19, 0
    %p65 = por %p63, %p64
    %s67 = sadd.s32 %s66, 1
    %p70 = scmp.eq.s32.totalorder %s13, 1
    %p71 = scmp.ne.s32.totalorder %s66, %s68
    %p72 = scmp.eq.s32.totalorder %s13, 0
    %p73 = por %p71, %p72
    %p74 = scmp.ne.s32.totalorder %s66, %s68
    %p75 = scmp.eq.s32.totalorder %s18, 1
    %p76 = por %p74, %p75
    %p77 = scmp.ne.s32.totalorder %s68, %s69
    %p78 = scmp.eq.s32.totalorder %s18, 0
    %p79 = por %p77, %p78
    %p80 = scmp.ne.s32.totalorder %s68, %s69
    %p81 = scmp.eq.s32.totalorder %s19, 1
    %p82 = por %p80, %p81
    %p84 = scmp.ne.s32.totalorder %s69, %s83
    %p85 = scmp.eq.s32.totalorder %s19, 0
    %p86 = por %p84, %p85
    %s88 = sadd.s32 %s87, 1
    %p91 = scmp.eq.s32.totalorder %s13, 1
    %p92 = scmp.ne.s32.totalorder %s87, %s89
    %p93 = scmp.eq.s32.totalorder %s13, 0
    %p94 = por %p92, %p93
    %p95 = scmp.ne.s32.totalorder %s87, %s89
    %p96 = scmp.eq.s32.totalorder %s18, 1
    %p97 = por %p95, %p96
    %p98 = scmp.ne.s32.totalorder %s89, %s90
    %p99 = scmp.eq.s32.totalorder %s18, 0
    %p100 = por %p98, %p99
    %p101 = scmp.ne.s32.totalorder %s89, %s90
    %p102 = scmp.eq.s32.totalorder %s19, 1
    %p103 = por %p101, %p102
    %p105 = scmp.ne.s32.totalorder %s90, %s104
    %p106 = scmp.eq.s32.totalorder %s19, 0
    %p107 = por %p105, %p106
    %s109 = sadd.s32 %s108, 1
    %p112 = scmp.eq.s32.totalorder %s13, 1
    %p113 = scmp.ne.s32.totalorder %s108, %s110
    %p114 = scmp.eq.s32.totalorder %s13, 0
    %p115 = por %p113, %p114
    %p116 = scmp.ne.s32.totalorder %s108, %s110
    %p117 = scmp.eq.s32.totalorder %s18, 1
    %p118 = por %p116, %p117
    %p119 = scmp.ne.s32.totalorder %s110, %s111
    %p120 = scmp.eq.s32.totalorder %s18, 0
    %p121 = por %p119, %p120
    %p122 = scmp.ne.s32.totalorder %s110, %s111
    %p123 = scmp.eq.s32.totalorder %s19, 1
    %p124 = por %p122, %p123
    %p126 = scmp.ne.s32.totalorder %s111, %s125
    %p127 = scmp.eq.s32.totalorder %s19, 0
    %p128 = por %p126, %p127
    %s129 = ssub.s32 %s20, %s39
    %p130 = scmp.eq.s32.totalorder %s129, 0
    %s132 = sadd.s32 %s131, 1
    %s133 = scalar_select %p130, %s131, %s132
    %p136 = pneg %p130
    %p137 = scmp.eq.s32.totalorder %s13, 1
    %p138 = por %p136, %p137
    %p139 = scmp.ne.s32.totalorder %s131, %s134
    %p140 = scmp.eq.s32.totalorder %s13, 0
    %p141 = por %p139, %p140
    %p142 = scmp.ne.s32.totalorder %s131, %s134
    %p143 = scmp.eq.s32.totalorder %s18, 1
    %p144 = por %p142, %p143
    %p145 = scmp.ne.s32.totalorder %s134, %s135
    %p146 = scmp.eq.s32.totalorder %s18, 0
    %p147 = por %p145, %p146
    %p148 = scmp.ne.s32.totalorder %s134, %s135
    %p149 = scmp.eq.s32.totalorder %s19, 1
    %p150 = por %p148, %p149
    %p152 = scmp.ne.s32.totalorder %s135, %s151
    %p153 = scmp.eq.s32.totalorder %s19, 0
    %p154 = por %p152, %p153
    %s155 = ssub.s32 %s21, %s35
    %s156 = ssub.s32 %s22, %s31
    %s157 = sor.u32 %s155, %s156
    %s158 = ssub.s32 %s20, %s39
    %s159 = sor.u32 %s157, %s158
    %p160 = scmp.eq.s32.totalorder %s159, 0
    %s162 = sadd.s32 %s161, 1
    %s163 = scalar_select %p160, %s161, %s162
    %p166 = pneg %p160
    %p167 = scmp.eq.s32.totalorder %s13, 1
    %p168 = por %p166, %p167
    %p169 = scmp.ne.s32.totalorder %s161, %s164
    %p170 = scmp.eq.s32.totalorder %s13, 0
    %p171 = por %p169, %p170
    %p172 = scmp.ne.s32.totalorder %s161, %s164
    %p173 = scmp.eq.s32.totalorder %s18, 1
    %p174 = por %p172, %p173
    %p175 = scmp.ne.s32.totalorder %s164, %s165
    %p176 = scmp.eq.s32.totalorder %s18, 0
    %p177 = por %p175, %p176
    %p178 = scmp.ne.s32.totalorder %s164, %s165
    %p179 = scmp.eq.s32.totalorder %s19, 1
    %p180 = por %p178, %p179
    %p182 = scmp.ne.s32.totalorder %s165, %s181
    %p183 = scmp.eq.s32.totalorder %s19, 0
    %p184 = por %p182, %p183
    %s185 = ssub.s32 %s21, %s35
    %s186 = ssub.s32 %s22, %s31
    %s187 = sor.u32 %s185, %s186
    %s188 = ssub.s32 %s20, %s39
    %s189 = sor.u32 %s187, %s188
    %p190 = scmp.eq.s32.totalorder %s189, 0
    %s192 = sadd.s32 %s191, 1
    %s193 = scalar_select %p190, %s191, %s192
    %p196 = pneg %p190
    %p197 = scmp.eq.s32.totalorder %s13, 1
    %p198 = por %p196, %p197
    %p199 = scmp.ne.s32.totalorder %s191, %s194
    %p200 = scmp.eq.s32.totalorder %s13, 0
    %p201 = por %p199, %p200
    %p202 = scmp.ne.s32.totalorder %s191, %s194
    %p203 = scmp.eq.s32.totalorder %s18, 1
    %p204 = por %p202, %p203
    %p205 = scmp.ne.s32.totalorder %s194, %s195
    %p206 = scmp.eq.s32.totalorder %s18, 0
    %p207 = por %p205, %p206
    %p208 = scmp.ne.s32.totalorder %s194, %s195
    %p209 = scmp.eq.s32.totalorder %s19, 1
    %p210 = por %p208, %p209
    %p212 = scmp.ne.s32.totalorder %s195, %s211
    %p213 = scmp.eq.s32.totalorder %s19, 0
    %p214 = por %p212, %p213
    %p215 = scmp.le.s32.totalorder 1, %s13
    %p216 = scmp.lt.s32.totalorder %s13, 3
    %p217 = pnand %p215, %p216
    %p218 = pneg %p217
    // Predicated region
    $region9: #{conv_bn_relu_pallas.1} parent=5 // pred_check
      _
    $region10: #{conv_bn_relu_pallas.1} parent=5 // pred_check_branch
      %220 = sbr.rel (%p217) target = $region12
    $region11: #{conv_bn_relu_pallas.1} parent=5 // pred_region
      %s221 = ssub.s32 %s13, 1
      // Predicated region
      $region13: #{conv_bn_relu_pallas.1} parent=11 // pred_check
        %p222 = pneg %p79
      $region14: #{conv_bn_relu_pallas.1} parent=11 // pred_check_branch
        %224 = sbr.rel (%p222) target = $region16
      $region15: #{conv_bn_relu_pallas.1} parent=11 // pred_region
        _
      $region16: #{conv_bn_relu_pallas.1} parent=11 // pred_fallthru
        _
      // Predicated region
      $region17: #{conv_bn_relu_pallas.1} parent=11 // pred_check
        %p225 = pneg %p100
      $region18: #{conv_bn_relu_pallas.1} parent=11 // pred_check_branch
        %227 = sbr.rel (%p225) target = $region20
      $region19: #{conv_bn_relu_pallas.1} parent=11 // pred_region
        _
      $region20: #{conv_bn_relu_pallas.1} parent=11 // pred_fallthru
        _
      // Predicated region
      $region21: #{conv_bn_relu_pallas.1} parent=11 // pred_check
        %p228 = pneg %p121
      $region22: #{conv_bn_relu_pallas.1} parent=11 // pred_check_branch
        %230 = sbr.rel (%p228) target = $region24
      $region23: #{conv_bn_relu_pallas.1} parent=11 // pred_region
        _
      $region24: #{conv_bn_relu_pallas.1} parent=11 // pred_fallthru
        _
      // Predicated region
      $region25: #{conv_bn_relu_pallas.1} parent=11 // pred_check
        %p231 = pneg %p147
      $region26: #{conv_bn_relu_pallas.1} parent=11 // pred_check_branch
        %233 = sbr.rel (%p231) target = $region28
      $region27: #{conv_bn_relu_pallas.1} parent=11 // pred_region
        %p234 = scmp.lt.s32.totalorder %s23, 0
        %s235 = scalar_select %p234, %s23, 0
        %s236 = smul.addr %s235, 4
        %s237 = scalar_lea.vmem %s4, %s236
      $region28: #{conv_bn_relu_pallas.1} parent=11 // pred_fallthru
        _
    $region12: #{conv_bn_relu_pallas.1} parent=5 // pred_fallthru
      _
    %p238 = scmp.lt.s32.totalorder %s13, 2
    // Predicated region
    $region29: #{conv_bn_relu_pallas.1} parent=5 // pred_check
      %p239 = pneg %p238
    $region30: #{conv_bn_relu_pallas.1} parent=5 // pred_check_branch
      %241 = sbr.rel (%p239) target = $region32
    $region31: #{conv_bn_relu_pallas.1} parent=5 // pred_region
      // Predicated region
      $region33: #{conv_bn_relu_pallas.1} parent=31 // pred_check
        %p242 = pneg %p52
      $region34: #{conv_bn_relu_pallas.1} parent=31 // pred_check_branch
        %244 = sbr.rel (%p242) target = $region36
      $region35: #{conv_bn_relu_pallas.1} parent=31 // pred_region
        %p245 = scmp.lt.s32.totalorder %s21, 1
        %s246 = scalar_select %p245, %s21, 1
        %s247 = smul.addr %s246, 32
        %s248 = smul.addr %s247, 8
        %s249 = scalar_lea.vmem %s0, %s248
      $region36: #{conv_bn_relu_pallas.1} parent=31 // pred_fallthru
        _
    $region32: #{conv_bn_relu_pallas.1} parent=5 // pred_fallthru
      _
    %p250 = scmp.le.s32.totalorder 1, %s13
    %p251 = scmp.lt.s32.totalorder %s13, 3
    %p252 = pnand %p250, %p251
    %p253 = pneg %p252
    // Predicated region
    $region37: #{conv_bn_relu_pallas.1} parent=5 // pred_check
      _
    $region38: #{conv_bn_relu_pallas.1} parent=5 // pred_check_branch
      %255 = sbr.rel (%p252) target = $region40
    $region39: #{conv_bn_relu_pallas.1} parent=5 // pred_region
      %s256 = ssub.s32 %s13, 1
      %p257 = scmp.lt.s32.totalorder %s24, 1
      %s258 = scalar_select %p257, %s24, 1
      %s259 = smul.addr %s258, 32
      %s260 = smul.addr %s259, 8
      %s261 = scalar_lea.vmem %s0, %s260
      %p262 = pneg %p58
      %p263 = pneg %p55
      %p264 = pneg %p79
      %p265 = pneg %p76
      %p266 = pneg %p100
      %p267 = pneg %p97
      %p268 = pneg %p121
      %p269 = pneg %p118
      %p270 = scmp.lt.s32.totalorder %s23, 0
      %s271 = scalar_select %p270, %s23, 0
      %s272 = smul.addr %s271, 4
      %s273 = scalar_lea.vmem %s4, %s272
      %p274 = pneg %p147
      %p275 = pneg %p144
      %p276 = pneg %p177
      %p277 = pneg %p174
      %s278 = smul.u32 14, %s25
      %p279 = scmp.lt.s32.totalorder %s24, 1
      %s280 = scalar_select %p279, %s24, 1
      %p281 = scmp.lt.s32.totalorder %s278, 13
      %s282 = scalar_select %p281, %s278, 13
      %p283 = scmp.lt.s32.totalorder %s23, 0
      %s284 = scalar_select %p283, %s23, 0
      %s285 = smul.addr %s282, 2
      %s286 = sadd.s32 %s284, %s285
      %s287 = smul.addr %s280, 28
      %s288 = sadd.s32 %s286, %s287
      %s289 = smul.addr %s288, 8
      %s290 = scalar_lea.vmem %s5, %s289
      %p291 = pneg %p207
      %p292 = pneg %p204
      %p293 = scmp.lt.s32.totalorder %s24, 1
      %s294 = scalar_select %p293, %s24, 1
      %p295 = scmp.lt.s32.totalorder %s25, 0
      %s296 = scalar_select %p295, %s25, 0
      %p297 = scmp.lt.s32.totalorder %s23, 0
      %s298 = scalar_select %p297, %s23, 0
      %s299 = sadd.s32 %s298, %s296
      %s300 = sadd.s32 %s299, %s294
      %s301 = smul.addr %s300, 2
      %s302 = scalar_lea.vmem %s6, %s301
      %p303 = scmp.lt.s32.totalorder %s24, 1
      %s304 = scalar_select %p303, %s24, 1
      %s305 = smul.addr %s304, 32
      %s306 = smul.addr %s305, 8
      %s307 = scalar_lea.vmem %s0, %s306
      %p308 = scmp.lt.s32.totalorder %s23, 0
      %s309 = scalar_select %p308, %s23, 0
      %s310 = smul.addr %s309, 4
      %s311 = scalar_lea.vmem %s4, %s310
      %s312 = smul.u32 14, %s25
      %p313 = scmp.lt.s32.totalorder %s24, 1
      %s314 = scalar_select %p313, %s24, 1
      %p315 = scmp.lt.s32.totalorder %s312, 13
      %s316 = scalar_select %p315, %s312, 13
      %p317 = scmp.lt.s32.totalorder %s23, 0
      %s318 = scalar_select %p317, %s23, 0
      %s319 = smul.addr %s316, 2
      %s320 = sadd.s32 %s318, %s319
      %s321 = smul.addr %s314, 28
      %s322 = sadd.s32 %s320, %s321
      %s323 = smul.addr %s322, 8
      %s324 = scalar_lea.vmem %s5, %s323
      %s325 = smul.u32 14, %s25
      %p326 = scmp.lt.s32.totalorder %s24, 1
      %s327 = scalar_select %p326, %s24, 1
      %p328 = scmp.lt.s32.totalorder %s25, 0
      %s329 = scalar_select %p328, %s25, 0
      %p330 = scmp.lt.s32.totalorder %s23, 0
      %s331 = scalar_select %p330, %s23, 0
      %s332 = sadd.s32 %s331, %s329
      %s333 = sadd.s32 %s332, %s327
      %s334 = smul.addr %s333, 2
      %s335 = scalar_lea.vmem %s6, %s334
      %s337 = smul.u32 %s25, 14
      %s338 = smul.u32 %s337, 16
      %s339 = scalar_lea.vmem %s307, %s338
      %v340 = vld [vmem:[%s339] sm:$0xff]
      %v341 = vld [vmem:[%s339 + $0x8] sm:$0xff]
      %v342 = vld [vmem:[%s339 + $0x10] sm:$0xff]
      %v343 = vld [vmem:[%s339 + $0x18] sm:$0xff]
      %v344 = vld [vmem:[%s339 + $0x20] sm:$0xff]
      %v345 = vld [vmem:[%s339 + $0x28] sm:$0xff]
      %v346 = vld [vmem:[%s339 + $0x30] sm:$0xff]
      %v347 = vld [vmem:[%s339 + $0x38] sm:$0xff]
      %v348 = vld [vmem:[%s339 + $0x40] sm:$0xff]
      %v349 = vld [vmem:[%s339 + $0x48] sm:$0xff]
      %v350 = vld [vmem:[%s339 + $0x50] sm:$0xff]
      %v351 = vld [vmem:[%s339 + $0x58] sm:$0xff]
      %v352 = vld [vmem:[%s339 + $0x60] sm:$0xff]
      %v353 = vld [vmem:[%s339 + $0x68] sm:$0xff]
      %v354 = vld [vmem:[%s339 + $0x70] sm:$0xff]
      %v355 = vld [vmem:[%s339 + $0x78] sm:$0xff]
      %v356 = vld [vmem:[%s339 + $0x80] sm:$0xff]
      %v357 = vld [vmem:[%s339 + $0x88] sm:$0xff]
      %v358 = vld [vmem:[%s339 + $0x90] sm:$0xff]
      %v359 = vld [vmem:[%s339 + $0x98] sm:$0xff]
      %v360 = vld [vmem:[%s339 + $0xa0] sm:$0xff]
      %v361 = vld [vmem:[%s339 + $0xa8] sm:$0xff]
      %v362 = vld [vmem:[%s339 + $0xb0] sm:$0xff]
      %v363 = vld [vmem:[%s339 + $0xb8] sm:$0xff]
      %v364 = vld [vmem:[%s339 + $0xc0] sm:$0xff]
      %v365 = vld [vmem:[%s339 + $0xc8] sm:$0xff]
      %v366 = vld [vmem:[%s339 + $0xd0] sm:$0xff]
      %v367 = vld [vmem:[%s339 + $0xd8] sm:$0xff]
      %v368 = vld [vmem:[%s339 + $0xe0] sm:$0xff]
      %v369 = vld [vmem:[%s339 + $0xe8] sm:$0xff]
      %v370 = vld [vmem:[%s339 + $0xf0] sm:$0xff]
      %v371 = vld [vmem:[%s339 + $0xf8] sm:$0xff]
      %v372 = vld [vmem:[%s1] sm:$0x1]
      %v374 = vlaneseq
      %v375 = vshrl.u32 %v374, 7
      %v376 = vsub.s32 0, %v375
      %v377 = vrot.slane %v372, %v376
      %v379 = vmul.f32 %v340, %v377
      %v380 = vmul.f32 %v341, %v377
      %v381 = vmul.f32 %v342, %v377
      %v382 = vmul.f32 %v343, %v377
      %v383 = vmul.f32 %v344, %v377
      %v384 = vmul.f32 %v345, %v377
      %v385 = vmul.f32 %v346, %v377
      %v386 = vmul.f32 %v347, %v377
      %v387 = vmul.f32 %v348, %v377
      %v388 = vmul.f32 %v349, %v377
      %v389 = vmul.f32 %v350, %v377
      %v390 = vmul.f32 %v351, %v377
      %v391 = vmul.f32 %v352, %v377
      %v392 = vmul.f32 %v353, %v377
      %v393 = vmul.f32 %v354, %v377
      %v394 = vmul.f32 %v355, %v377
      %v395 = vmul.f32 %v356, %v377
      %v396 = vmul.f32 %v357, %v377
      %v397 = vmul.f32 %v358, %v377
      %v398 = vmul.f32 %v359, %v377
      %v399 = vmul.f32 %v360, %v377
      %v400 = vmul.f32 %v361, %v377
      %v401 = vmul.f32 %v362, %v377
      %v402 = vmul.f32 %v363, %v377
      %v403 = vmul.f32 %v364, %v377
      %v404 = vmul.f32 %v365, %v377
      %v405 = vmul.f32 %v366, %v377
      %v406 = vmul.f32 %v367, %v377
      %v407 = vmul.f32 %v368, %v377
      %v408 = vmul.f32 %v369, %v377
      %v409 = vmul.f32 %v370, %v377
      %v410 = vmul.f32 %v371, %v377
      %v411 = vld [vmem:[%s2] sm:$0x1]
      %v413 = vlaneseq
      %v414 = vshrl.u32 %v413, 7
      %v415 = vsub.s32 0, %v414
      %v416 = vrot.slane %v411, %v415
      %v418 = vadd.f32 %v379, %v416
      %v419 = vadd.f32 %v380, %v416
      %v420 = vadd.f32 %v381, %v416
      %v421 = vadd.f32 %v382, %v416
      %v422 = vadd.f32 %v383, %v416
      %v423 = vadd.f32 %v384, %v416
      %v424 = vadd.f32 %v385, %v416
      %v425 = vadd.f32 %v386, %v416
      %v426 = vadd.f32 %v387, %v416
      %v427 = vadd.f32 %v388, %v416
      %v428 = vadd.f32 %v389, %v416
      %v429 = vadd.f32 %v390, %v416
      %v430 = vadd.f32 %v391, %v416
      %v431 = vadd.f32 %v392, %v416
      %v432 = vadd.f32 %v393, %v416
      %v433 = vadd.f32 %v394, %v416
      %v434 = vadd.f32 %v395, %v416
      %v435 = vadd.f32 %v396, %v416
      %v436 = vadd.f32 %v397, %v416
      %v437 = vadd.f32 %v398, %v416
      %v438 = vadd.f32 %v399, %v416
      %v439 = vadd.f32 %v400, %v416
      %v440 = vadd.f32 %v401, %v416
      %v441 = vadd.f32 %v402, %v416
      %v442 = vadd.f32 %v403, %v416
      %v443 = vadd.f32 %v404, %v416
      %v444 = vadd.f32 %v405, %v416
      %v445 = vadd.f32 %v406, %v416
      %v446 = vadd.f32 %v407, %v416
      %v447 = vadd.f32 %v408, %v416
      %v448 = vadd.f32 %v409, %v416
      %v449 = vadd.f32 %v410, %v416
      %v450 = vld [vmem:[%s3] sm:$0x1]
      %v452 = vlaneseq
      %v453 = vshrl.u32 %v452, 7
      %v454 = vsub.s32 0, %v453
      %v455 = vrot.slane %v450, %v454
      %v457 = vmax.f32 %v418, %v455
      %v458 = vmax.f32 %v419, %v455
      %v459 = vmax.f32 %v420, %v455
      %v460 = vmax.f32 %v421, %v455
      %v461 = vmax.f32 %v422, %v455
      %v462 = vmax.f32 %v423, %v455
      %v463 = vmax.f32 %v424, %v455
      %v464 = vmax.f32 %v425, %v455
      %v465 = vmax.f32 %v426, %v455
      %v466 = vmax.f32 %v427, %v455
      %v467 = vmax.f32 %v428, %v455
      %v468 = vmax.f32 %v429, %v455
      %v469 = vmax.f32 %v430, %v455
      %v470 = vmax.f32 %v431, %v455
      %v471 = vmax.f32 %v432, %v455
      %v472 = vmax.f32 %v433, %v455
      %v473 = vmax.f32 %v434, %v455
      %v474 = vmax.f32 %v435, %v455
      %v475 = vmax.f32 %v436, %v455
      %v476 = vmax.f32 %v437, %v455
      %v477 = vmax.f32 %v438, %v455
      %v478 = vmax.f32 %v439, %v455
      %v479 = vmax.f32 %v440, %v455
      %v480 = vmax.f32 %v441, %v455
      %v481 = vmax.f32 %v442, %v455
      %v482 = vmax.f32 %v443, %v455
      %v483 = vmax.f32 %v444, %v455
      %v484 = vmax.f32 %v445, %v455
      %v485 = vmax.f32 %v446, %v455
      %v486 = vmax.f32 %v447, %v455
      %v487 = vmax.f32 %v448, %v455
      %v488 = vmax.f32 %v449, %v455
      %v489 = vpack.c.bf16 %v458, %v457
      %v490 = vpack.c.bf16 %v460, %v459
      %v491 = vpack.c.bf16 %v462, %v461
      %v492 = vpack.c.bf16 %v464, %v463
      %v493 = vpack.c.bf16 %v466, %v465
      %v494 = vpack.c.bf16 %v468, %v467
      %v495 = vpack.c.bf16 %v470, %v469
      %v496 = vpack.c.bf16 %v472, %v471
      %v497 = vpack.c.bf16 %v474, %v473
      %v498 = vpack.c.bf16 %v476, %v475
      %v499 = vpack.c.bf16 %v478, %v477
      %v500 = vpack.c.bf16 %v480, %v479
      %v501 = vpack.c.bf16 %v482, %v481
      %v502 = vpack.c.bf16 %v484, %v483
      %v503 = vpack.c.bf16 %v486, %v485
      %v504 = vpack.c.bf16 %v488, %v487
      %v519 = vcombine.high %v489, %v489
      %v521 = vunpack.c.l.s4 1966171168
      %v522 = vunpack.c.0.s8 %v521
      %v523 = vlaneseq
      %v524 = vshrl.u32 %v523, 7
      %v525 = vsub.s32 %v522, %v524
      %v526 = vrot.slane %v489, %v525
      %v528 = vunpack.c.l.s4 1966171168
      %v529 = vunpack.c.0.s8 %v528
      %v530 = vlaneseq
      %v531 = vshrl.u32 %v530, 7
      %v532 = vsub.s32 %v529, %v531
      %v533 = vrot.slane %v519, %v532
      %v534 = vcombine.high %v526, %v526
      %v535 = vcombine.high %v533, %v533
      %v537 = vunpack.c.l.s4 1966171168
      %v538 = vunpack.c.0.s8 %v537
      %v539 = vlaneseq
      %v540 = vshrl.u32 %v539, 7
      %v541 = vsub.s32 %v538, %v540
      %v542 = vrot.slane %v526, %v541
      %v544 = vunpack.c.l.s4 1966171168
      %v545 = vunpack.c.0.s8 %v544
      %v546 = vlaneseq
      %v547 = vshrl.u32 %v546, 7
      %v548 = vsub.s32 %v545, %v547
      %v549 = vrot.slane %v533, %v548
      %v551 = vunpack.c.l.s4 1966171168
      %v552 = vunpack.c.0.s8 %v551
      %v553 = vlaneseq
      %v554 = vshrl.u32 %v553, 7
      %v555 = vsub.s32 %v552, %v554
      %v556 = vrot.slane %v534, %v555
      %v558 = vunpack.c.l.s4 1966171168
      %v559 = vunpack.c.0.s8 %v558
      %v560 = vlaneseq
      %v561 = vshrl.u32 %v560, 7
      %v562 = vsub.s32 %v559, %v561
      %v563 = vrot.slane %v535, %v562
      %v564 = vcombine.high %v542, %v542
      %v565 = vcombine.high %v549, %v549
      %v566 = vcombine.high %v556, %v556
      %v567 = vcombine.high %v490, %v490
      %v569 = vunpack.c.l.s4 1966171168
      %v570 = vunpack.c.0.s8 %v569
      %v571 = vlaneseq
      %v572 = vshrl.u32 %v571, 7
      %v573 = vsub.s32 %v570, %v572
      %v574 = vrot.slane %v490, %v573
      %v576 = vunpack.c.l.s4 1966171168
      %v577 = vunpack.c.0.s8 %v576
      %v578 = vlaneseq
      %v579 = vshrl.u32 %v578, 7
      %v580 = vsub.s32 %v577, %v579
      %v581 = vrot.slane %v567, %v580
      %v582 = vcombine.high %v574, %v574
      %v583 = vcombine.high %v581, %v581
      %v585 = vunpack.c.l.s4 1966171168
      %v586 = vunpack.c.0.s8 %v585
      %v587 = vlaneseq
      %v588 = vshrl.u32 %v587, 7
      %v589 = vsub.s32 %v586, %v588
      %v590 = vrot.slane %v574, %v589
      %v592 = vunpack.c.l.s4 1966171168
      %v593 = vunpack.c.0.s8 %v592
      %v594 = vlaneseq
      %v595 = vshrl.u32 %v594, 7
      %v596 = vsub.s32 %v593, %v595
      %v597 = vrot.slane %v581, %v596
      %v599 = vunpack.c.l.s4 1966171168
      %v600 = vunpack.c.0.s8 %v599
      %v601 = vlaneseq
      %v602 = vshrl.u32 %v601, 7
      %v603 = vsub.s32 %v600, %v602
      %v604 = vrot.slane %v582, %v603
      %v606 = vunpack.c.l.s4 1966171168
      %v607 = vunpack.c.0.s8 %v606
      %v608 = vlaneseq
      %v609 = vshrl.u32 %v608, 7
      %v610 = vsub.s32 %v607, %v609
      %v611 = vrot.slane %v583, %v610
      %v612 = vcombine.high %v590, %v590
      %v613 = vcombine.high %v597, %v597
      %v614 = vcombine.high %v604, %v604
      %v615 = vcombine.high %v491, %v491
      %v617 = vunpack.c.l.s4 1966171168
      %v618 = vunpack.c.0.s8 %v617
      %v619 = vlaneseq
      %v620 = vshrl.u32 %v619, 7
      %v621 = vsub.s32 %v618, %v620
      %v622 = vrot.slane %v491, %v621
      %v624 = vunpack.c.l.s4 1966171168
      %v625 = vunpack.c.0.s8 %v624
      %v626 = vlaneseq
      %v627 = vshrl.u32 %v626, 7
      %v628 = vsub.s32 %v625, %v627
      %v629 = vrot.slane %v615, %v628
      %v630 = vcombine.high %v622, %v622
      %v631 = vcombine.high %v629, %v629
      %v633 = vunpack.c.l.s4 1966171168
      %v634 = vunpack.c.0.s8 %v633
      %v635 = vlaneseq
      %v636 = vshrl.u32 %v635, 7
      %v637 = vsub.s32 %v634, %v636
      %v638 = vrot.slane %v622, %v637
      %v640 = vunpack.c.l.s4 1966171168
      %v641 = vunpack.c.0.s8 %v640
      %v642 = vlaneseq
      %v643 = vshrl.u32 %v642, 7
      %v644 = vsub.s32 %v641, %v643
      %v645 = vrot.slane %v629, %v644
      %v647 = vunpack.c.l.s4 1966171168
      %v648 = vunpack.c.0.s8 %v647
      %v649 = vlaneseq
      %v650 = vshrl.u32 %v649, 7
      %v651 = vsub.s32 %v648, %v650
      %v652 = vrot.slane %v630, %v651
      %v654 = vunpack.c.l.s4 1966171168
      %v655 = vunpack.c.0.s8 %v654
      %v656 = vlaneseq
      %v657 = vshrl.u32 %v656, 7
      %v658 = vsub.s32 %v655, %v657
      %v659 = vrot.slane %v631, %v658
      %v660 = vcombine.high %v638, %v638
      %v661 = vcombine.high %v645, %v645
      %v662 = vcombine.high %v652, %v652
      %v663 = vcombine.high %v492, %v492
      %v665 = vunpack.c.l.s4 1966171168
      %v666 = vunpack.c.0.s8 %v665
      %v667 = vlaneseq
      %v668 = vshrl.u32 %v667, 7
      %v669 = vsub.s32 %v666, %v668
      %v670 = vrot.slane %v492, %v669
      %v672 = vunpack.c.l.s4 1966171168
      %v673 = vunpack.c.0.s8 %v672
      %v674 = vlaneseq
      %v675 = vshrl.u32 %v674, 7
      %v676 = vsub.s32 %v673, %v675
      %v677 = vrot.slane %v663, %v676
      %v678 = vcombine.high %v670, %v670
      %v679 = vcombine.high %v677, %v677
      %v681 = vunpack.c.l.s4 1966171168
      %v682 = vunpack.c.0.s8 %v681
      %v683 = vlaneseq
      %v684 = vshrl.u32 %v683, 7
      %v685 = vsub.s32 %v682, %v684
      %v686 = vrot.slane %v670, %v685
      %v688 = vunpack.c.l.s4 1966171168
      %v689 = vunpack.c.0.s8 %v688
      %v690 = vlaneseq
      %v691 = vshrl.u32 %v690, 7
      %v692 = vsub.s32 %v689, %v691
      %v693 = vrot.slane %v677, %v692
      %v695 = vunpack.c.l.s4 1966171168
      %v696 = vunpack.c.0.s8 %v695
      %v697 = vlaneseq
      %v698 = vshrl.u32 %v697, 7
      %v699 = vsub.s32 %v696, %v698
      %v700 = vrot.slane %v678, %v699
      %v702 = vunpack.c.l.s4 1966171168
      %v703 = vunpack.c.0.s8 %v702
      %v704 = vlaneseq
      %v705 = vshrl.u32 %v704, 7
      %v706 = vsub.s32 %v703, %v705
      %v707 = vrot.slane %v679, %v706
      %v708 = vcombine.high %v686, %v686
      %v709 = vcombine.high %v693, %v693
      %v710 = vcombine.high %v700, %v700
      %v711 = vcombine.high %v493, %v493
      %v713 = vunpack.c.l.s4 1966171168
      %v714 = vunpack.c.0.s8 %v713
      %v715 = vlaneseq
      %v716 = vshrl.u32 %v715, 7
      %v717 = vsub.s32 %v714, %v716
      %v718 = vrot.slane %v493, %v717
      %v720 = vunpack.c.l.s4 1966171168
      %v721 = vunpack.c.0.s8 %v720
      %v722 = vlaneseq
      %v723 = vshrl.u32 %v722, 7
      %v724 = vsub.s32 %v721, %v723
      %v725 = vrot.slane %v711, %v724
      %v726 = vcombine.high %v718, %v718
      %v727 = vcombine.high %v725, %v725
      %v729 = vunpack.c.l.s4 1966171168
      %v730 = vunpack.c.0.s8 %v729
      %v731 = vlaneseq
      %v732 = vshrl.u32 %v731, 7
      %v733 = vsub.s32 %v730, %v732
      %v734 = vrot.slane %v718, %v733
      %v736 = vunpack.c.l.s4 1966171168
      %v737 = vunpack.c.0.s8 %v736
      %v738 = vlaneseq
      %v739 = vshrl.u32 %v738, 7
      %v740 = vsub.s32 %v737, %v739
      %v741 = vrot.slane %v725, %v740
      %v743 = vunpack.c.l.s4 1966171168
      %v744 = vunpack.c.0.s8 %v743
      %v745 = vlaneseq
      %v746 = vshrl.u32 %v745, 7
      %v747 = vsub.s32 %v744, %v746
      %v748 = vrot.slane %v726, %v747
      %v750 = vunpack.c.l.s4 1966171168
      %v751 = vunpack.c.0.s8 %v750
      %v752 = vlaneseq
      %v753 = vshrl.u32 %v752, 7
      %v754 = vsub.s32 %v751, %v753
      %v755 = vrot.slane %v727, %v754
      %v756 = vcombine.high %v734, %v734
      %v757 = vcombine.high %v741, %v741
      %v758 = vcombine.high %v748, %v748
      %v759 = vcombine.high %v494, %v494
      %v761 = vunpack.c.l.s4 1966171168
      %v762 = vunpack.c.0.s8 %v761
      %v763 = vlaneseq
      %v764 = vshrl.u32 %v763, 7
      %v765 = vsub.s32 %v762, %v764
      %v766 = vrot.slane %v494, %v765
      %v768 = vunpack.c.l.s4 1966171168
      %v769 = vunpack.c.0.s8 %v768
      %v770 = vlaneseq
      %v771 = vshrl.u32 %v770, 7
      %v772 = vsub.s32 %v769, %v771
      %v773 = vrot.slane %v759, %v772
      %v774 = vcombine.high %v766, %v766
      %v775 = vcombine.high %v773, %v773
      %v777 = vunpack.c.l.s4 1966171168
      %v778 = vunpack.c.0.s8 %v777
      %v779 = vlaneseq
      %v780 = vshrl.u32 %v779, 7
      %v781 = vsub.s32 %v778, %v780
      %v782 = vrot.slane %v766, %v781
      %v784 = vunpack.c.l.s4 1966171168
      %v785 = vunpack.c.0.s8 %v784
      %v786 = vlaneseq
      %v787 = vshrl.u32 %v786, 7
      %v788 = vsub.s32 %v785, %v787
      %v789 = vrot.slane %v773, %v788
      %v791 = vunpack.c.l.s4 1966171168
      %v792 = vunpack.c.0.s8 %v791
      %v793 = vlaneseq
      %v794 = vshrl.u32 %v793, 7
      %v795 = vsub.s32 %v792, %v794
      %v796 = vrot.slane %v774, %v795
      %v798 = vunpack.c.l.s4 1966171168
      %v799 = vunpack.c.0.s8 %v798
      %v800 = vlaneseq
      %v801 = vshrl.u32 %v800, 7
      %v802 = vsub.s32 %v799, %v801
      %v803 = vrot.slane %v775, %v802
      %v804 = vcombine.high %v782, %v782
      %v805 = vcombine.high %v789, %v789
      %v806 = vcombine.high %v796, %v796
      %v807 = vcombine.high %v495, %v495
      %v809 = vunpack.c.l.s4 1966171168
      %v810 = vunpack.c.0.s8 %v809
      %v811 = vlaneseq
      %v812 = vshrl.u32 %v811, 7
      %v813 = vsub.s32 %v810, %v812
      %v814 = vrot.slane %v495, %v813
      %v816 = vunpack.c.l.s4 1966171168
      %v817 = vunpack.c.0.s8 %v816
      %v818 = vlaneseq
      %v819 = vshrl.u32 %v818, 7
      %v820 = vsub.s32 %v817, %v819
      %v821 = vrot.slane %v807, %v820
      %v822 = vcombine.high %v814, %v814
      %v823 = vcombine.high %v821, %v821
      %v825 = vunpack.c.l.s4 1966171168
      %v826 = vunpack.c.0.s8 %v825
      %v827 = vlaneseq
      %v828 = vshrl.u32 %v827, 7
      %v829 = vsub.s32 %v826, %v828
      %v830 = vrot.slane %v814, %v829
      %v832 = vunpack.c.l.s4 1966171168
      %v833 = vunpack.c.0.s8 %v832
      %v834 = vlaneseq
      %v835 = vshrl.u32 %v834, 7
      %v836 = vsub.s32 %v833, %v835
      %v837 = vrot.slane %v821, %v836
      %v839 = vunpack.c.l.s4 1966171168
      %v840 = vunpack.c.0.s8 %v839
      %v841 = vlaneseq
      %v842 = vshrl.u32 %v841, 7
      %v843 = vsub.s32 %v840, %v842
      %v844 = vrot.slane %v822, %v843
      %v846 = vunpack.c.l.s4 1966171168
      %v847 = vunpack.c.0.s8 %v846
      %v848 = vlaneseq
      %v849 = vshrl.u32 %v848, 7
      %v850 = vsub.s32 %v847, %v849
      %v851 = vrot.slane %v823, %v850
      %v852 = vcombine.high %v830, %v830
      %v853 = vcombine.high %v837, %v837
      %v854 = vcombine.high %v844, %v844
      %v855 = vcombine.high %v496, %v496
      %v857 = vunpack.c.l.s4 1966171168
      %v858 = vunpack.c.0.s8 %v857
      %v859 = vlaneseq
      %v860 = vshrl.u32 %v859, 7
      %v861 = vsub.s32 %v858, %v860
      %v862 = vrot.slane %v496, %v861
      %v864 = vunpack.c.l.s4 1966171168
      %v865 = vunpack.c.0.s8 %v864
      %v866 = vlaneseq
      %v867 = vshrl.u32 %v866, 7
      %v868 = vsub.s32 %v865, %v867
      %v869 = vrot.slane %v855, %v868
      %v870 = vcombine.high %v862, %v862
      %v871 = vcombine.high %v869, %v869
      %v873 = vunpack.c.l.s4 1966171168
      %v874 = vunpack.c.0.s8 %v873
      %v875 = vlaneseq
      %v876 = vshrl.u32 %v875, 7
      %v877 = vsub.s32 %v874, %v876
      %v878 = vrot.slane %v862, %v877
      %v880 = vunpack.c.l.s4 1966171168
      %v881 = vunpack.c.0.s8 %v880
      %v882 = vlaneseq
      %v883 = vshrl.u32 %v882, 7
      %v884 = vsub.s32 %v881, %v883
      %v885 = vrot.slane %v869, %v884
      %v887 = vunpack.c.l.s4 1966171168
      %v888 = vunpack.c.0.s8 %v887
      %v889 = vlaneseq
      %v890 = vshrl.u32 %v889, 7
      %v891 = vsub.s32 %v888, %v890
      %v892 = vrot.slane %v870, %v891
      %v894 = vunpack.c.l.s4 1966171168
      %v895 = vunpack.c.0.s8 %v894
      %v896 = vlaneseq
      %v897 = vshrl.u32 %v896, 7
      %v898 = vsub.s32 %v895, %v897
      %v899 = vrot.slane %v871, %v898
      %v900 = vcombine.high %v878, %v878
      %v901 = vcombine.high %v885, %v885
      %v902 = vcombine.high %v892, %v892
      %v903 = vcombine.high %v497, %v497
      %v905 = vunpack.c.l.s4 1966171168
      %v906 = vunpack.c.0.s8 %v905
      %v907 = vlaneseq
      %v908 = vshrl.u32 %v907, 7
      %v909 = vsub.s32 %v906, %v908
      %v910 = vrot.slane %v497, %v909
      %v912 = vunpack.c.l.s4 1966171168
      %v913 = vunpack.c.0.s8 %v912
      %v914 = vlaneseq
      %v915 = vshrl.u32 %v914, 7
      %v916 = vsub.s32 %v913, %v915
      %v917 = vrot.slane %v903, %v916
      %v918 = vcombine.high %v910, %v910
      %v919 = vcombine.high %v917, %v917
      %v921 = vunpack.c.l.s4 1966171168
      %v922 = vunpack.c.0.s8 %v921
      %v923 = vlaneseq
      %v924 = vshrl.u32 %v923, 7
      %v925 = vsub.s32 %v922, %v924
      %v926 = vrot.slane %v910, %v925
      %v928 = vunpack.c.l.s4 1966171168
      %v929 = vunpack.c.0.s8 %v928
      %v930 = vlaneseq
      %v931 = vshrl.u32 %v930, 7
      %v932 = vsub.s32 %v929, %v931
      %v933 = vrot.slane %v917, %v932
      %v935 = vunpack.c.l.s4 1966171168
      %v936 = vunpack.c.0.s8 %v935
      %v937 = vlaneseq
      %v938 = vshrl.u32 %v937, 7
      %v939 = vsub.s32 %v936, %v938
      %v940 = vrot.slane %v918, %v939
      %v942 = vunpack.c.l.s4 1966171168
      %v943 = vunpack.c.0.s8 %v942
      %v944 = vlaneseq
      %v945 = vshrl.u32 %v944, 7
      %v946 = vsub.s32 %v943, %v945
      %v947 = vrot.slane %v919, %v946
      %v948 = vcombine.high %v926, %v926
      %v949 = vcombine.high %v933, %v933
      %v950 = vcombine.high %v940, %v940
      %v951 = vcombine.high %v498, %v498
      %v953 = vunpack.c.l.s4 1966171168
      %v954 = vunpack.c.0.s8 %v953
      %v955 = vlaneseq
      %v956 = vshrl.u32 %v955, 7
      %v957 = vsub.s32 %v954, %v956
      %v958 = vrot.slane %v498, %v957
      %v960 = vunpack.c.l.s4 1966171168
      %v961 = vunpack.c.0.s8 %v960
      %v962 = vlaneseq
      %v963 = vshrl.u32 %v962, 7
      %v964 = vsub.s32 %v961, %v963
      %v965 = vrot.slane %v951, %v964
      %v966 = vcombine.high %v958, %v958
      %v967 = vcombine.high %v965, %v965
      %v969 = vunpack.c.l.s4 1966171168
      %v970 = vunpack.c.0.s8 %v969
      %v971 = vlaneseq
      %v972 = vshrl.u32 %v971, 7
      %v973 = vsub.s32 %v970, %v972
      %v974 = vrot.slane %v958, %v973
      %v976 = vunpack.c.l.s4 1966171168
      %v977 = vunpack.c.0.s8 %v976
      %v978 = vlaneseq
      %v979 = vshrl.u32 %v978, 7
      %v980 = vsub.s32 %v977, %v979
      %v981 = vrot.slane %v965, %v980
      %v983 = vunpack.c.l.s4 1966171168
      %v984 = vunpack.c.0.s8 %v983
      %v985 = vlaneseq
      %v986 = vshrl.u32 %v985, 7
      %v987 = vsub.s32 %v984, %v986
      %v988 = vrot.slane %v966, %v987
      %v990 = vunpack.c.l.s4 1966171168
      %v991 = vunpack.c.0.s8 %v990
      %v992 = vlaneseq
      %v993 = vshrl.u32 %v992, 7
      %v994 = vsub.s32 %v991, %v993
      %v995 = vrot.slane %v967, %v994
      %v996 = vcombine.high %v974, %v974
      %v997 = vcombine.high %v981, %v981
      %v998 = vcombine.high %v988, %v988
      %v999 = vcombine.high %v499, %v499
      %v1001 = vunpack.c.l.s4 1966171168
      %v1002 = vunpack.c.0.s8 %v1001
      %v1003 = vlaneseq
      %v1004 = vshrl.u32 %v1003, 7
      %v1005 = vsub.s32 %v1002, %v1004
      %v1006 = vrot.slane %v499, %v1005
      %v1008 = vunpack.c.l.s4 1966171168
      %v1009 = vunpack.c.0.s8 %v1008
      %v1010 = vlaneseq
      %v1011 = vshrl.u32 %v1010, 7
      %v1012 = vsub.s32 %v1009, %v1011
      %v1013 = vrot.slane %v999, %v1012
      %v1014 = vcombine.high %v1006, %v1006
      %v1015 = vcombine.high %v1013, %v1013
      %v1017 = vunpack.c.l.s4 1966171168
      %v1018 = vunpack.c.0.s8 %v1017
      %v1019 = vlaneseq
      %v1020 = vshrl.u32 %v1019, 7
      %v1021 = vsub.s32 %v1018, %v1020
      %v1022 = vrot.slane %v1006, %v1021
      %v1024 = vunpack.c.l.s4 1966171168
      %v1025 = vunpack.c.0.s8 %v1024
      %v1026 = vlaneseq
      %v1027 = vshrl.u32 %v1026, 7
      %v1028 = vsub.s32 %v1025, %v1027
      %v1029 = vrot.slane %v1013, %v1028
      %v1031 = vunpack.c.l.s4 1966171168
      %v1032 = vunpack.c.0.s8 %v1031
      %v1033 = vlaneseq
      %v1034 = vshrl.u32 %v1033, 7
      %v1035 = vsub.s32 %v1032, %v1034
      %v1036 = vrot.slane %v1014, %v1035
      %v1038 = vunpack.c.l.s4 1966171168
      %v1039 = vunpack.c.0.s8 %v1038
      %v1040 = vlaneseq
      %v1041 = vshrl.u32 %v1040, 7
      %v1042 = vsub.s32 %v1039, %v1041
      %v1043 = vrot.slane %v1015, %v1042
      %v1044 = vcombine.high %v1022, %v1022
      %v1045 = vcombine.high %v1029, %v1029
      %v1046 = vcombine.high %v1036, %v1036
      %v1047 = vcombine.high %v500, %v500
      %v1049 = vunpack.c.l.s4 1966171168
      %v1050 = vunpack.c.0.s8 %v1049
      %v1051 = vlaneseq
      %v1052 = vshrl.u32 %v1051, 7
      %v1053 = vsub.s32 %v1050, %v1052
      %v1054 = vrot.slane %v500, %v1053
      %v1056 = vunpack.c.l.s4 1966171168
      %v1057 = vunpack.c.0.s8 %v1056
      %v1058 = vlaneseq
      %v1059 = vshrl.u32 %v1058, 7
      %v1060 = vsub.s32 %v1057, %v1059
      %v1061 = vrot.slane %v1047, %v1060
      %v1062 = vcombine.high %v1054, %v1054
      %v1063 = vcombine.high %v1061, %v1061
      %v1065 = vunpack.c.l.s4 1966171168
      %v1066 = vunpack.c.0.s8 %v1065
      %v1067 = vlaneseq
      %v1068 = vshrl.u32 %v1067, 7
      %v1069 = vsub.s32 %v1066, %v1068
      %v1070 = vrot.slane %v1054, %v1069
      %v1072 = vunpack.c.l.s4 1966171168
      %v1073 = vunpack.c.0.s8 %v1072
      %v1074 = vlaneseq
      %v1075 = vshrl.u32 %v1074, 7
      %v1076 = vsub.s32 %v1073, %v1075
      %v1077 = vrot.slane %v1061, %v1076
      %v1079 = vunpack.c.l.s4 1966171168
      %v1080 = vunpack.c.0.s8 %v1079
      %v1081 = vlaneseq
      %v1082 = vshrl.u32 %v1081, 7
      %v1083 = vsub.s32 %v1080, %v1082
      %v1084 = vrot.slane %v1062, %v1083
      %v1086 = vunpack.c.l.s4 1966171168
      %v1087 = vunpack.c.0.s8 %v1086
      %v1088 = vlaneseq
      %v1089 = vshrl.u32 %v1088, 7
      %v1090 = vsub.s32 %v1087, %v1089
      %v1091 = vrot.slane %v1063, %v1090
      %v1092 = vcombine.high %v1070, %v1070
      %v1093 = vcombine.high %v1077, %v1077
      %v1094 = vcombine.high %v1084, %v1084
      %v1095 = vcombine.high %v501, %v501
      %v1097 = vunpack.c.l.s4 1966171168
      %v1098 = vunpack.c.0.s8 %v1097
      %v1099 = vlaneseq
      %v1100 = vshrl.u32 %v1099, 7
      %v1101 = vsub.s32 %v1098, %v1100
      %v1102 = vrot.slane %v501, %v1101
      %v1104 = vunpack.c.l.s4 1966171168
      %v1105 = vunpack.c.0.s8 %v1104
      %v1106 = vlaneseq
      %v1107 = vshrl.u32 %v1106, 7
      %v1108 = vsub.s32 %v1105, %v1107
      %v1109 = vrot.slane %v1095, %v1108
      %v1110 = vcombine.high %v1102, %v1102
      %v1111 = vcombine.high %v1109, %v1109
      %v1113 = vunpack.c.l.s4 1966171168
      %v1114 = vunpack.c.0.s8 %v1113
      %v1115 = vlaneseq
      %v1116 = vshrl.u32 %v1115, 7
      %v1117 = vsub.s32 %v1114, %v1116
      %v1118 = vrot.slane %v1102, %v1117
      %v1120 = vunpack.c.l.s4 1966171168
      %v1121 = vunpack.c.0.s8 %v1120
      %v1122 = vlaneseq
      %v1123 = vshrl.u32 %v1122, 7
      %v1124 = vsub.s32 %v1121, %v1123
      %v1125 = vrot.slane %v1109, %v1124
      %v1127 = vunpack.c.l.s4 1966171168
      %v1128 = vunpack.c.0.s8 %v1127
      %v1129 = vlaneseq
      %v1130 = vshrl.u32 %v1129, 7
      %v1131 = vsub.s32 %v1128, %v1130
      %v1132 = vrot.slane %v1110, %v1131
      %v1134 = vunpack.c.l.s4 1966171168
      %v1135 = vunpack.c.0.s8 %v1134
      %v1136 = vlaneseq
      %v1137 = vshrl.u32 %v1136, 7
      %v1138 = vsub.s32 %v1135, %v1137
      %v1139 = vrot.slane %v1111, %v1138
      %v1140 = vcombine.high %v1118, %v1118
      %v1141 = vcombine.high %v1125, %v1125
      %v1142 = vcombine.high %v1132, %v1132
      %v1143 = vcombine.high %v502, %v502
      %v1145 = vunpack.c.l.s4 1966171168
      %v1146 = vunpack.c.0.s8 %v1145
      %v1147 = vlaneseq
      %v1148 = vshrl.u32 %v1147, 7
      %v1149 = vsub.s32 %v1146, %v1148
      %v1150 = vrot.slane %v502, %v1149
      %v1152 = vunpack.c.l.s4 1966171168
      %v1153 = vunpack.c.0.s8 %v1152
      %v1154 = vlaneseq
      %v1155 = vshrl.u32 %v1154, 7
      %v1156 = vsub.s32 %v1153, %v1155
      %v1157 = vrot.slane %v1143, %v1156
      %v1158 = vcombine.high %v1150, %v1150
      %v1159 = vcombine.high %v1157, %v1157
      %v1161 = vunpack.c.l.s4 1966171168
      %v1162 = vunpack.c.0.s8 %v1161
      %v1163 = vlaneseq
      %v1164 = vshrl.u32 %v1163, 7
      %v1165 = vsub.s32 %v1162, %v1164
      %v1166 = vrot.slane %v1150, %v1165
      %v1168 = vunpack.c.l.s4 1966171168
      %v1169 = vunpack.c.0.s8 %v1168
      %v1170 = vlaneseq
      %v1171 = vshrl.u32 %v1170, 7
      %v1172 = vsub.s32 %v1169, %v1171
      %v1173 = vrot.slane %v1157, %v1172
      %v1175 = vunpack.c.l.s4 1966171168
      %v1176 = vunpack.c.0.s8 %v1175
      %v1177 = vlaneseq
      %v1178 = vshrl.u32 %v1177, 7
      %v1179 = vsub.s32 %v1176, %v1178
      %v1180 = vrot.slane %v1158, %v1179
      %v1182 = vunpack.c.l.s4 1966171168
      %v1183 = vunpack.c.0.s8 %v1182
      %v1184 = vlaneseq
      %v1185 = vshrl.u32 %v1184, 7
      %v1186 = vsub.s32 %v1183, %v1185
      %v1187 = vrot.slane %v1159, %v1186
      %v1188 = vcombine.high %v1166, %v1166
      %v1189 = vcombine.high %v1173, %v1173
      %v1190 = vcombine.high %v1180, %v1180
      %v1191 = vcombine.high %v563, %v563
      %v1192 = vcombine.high %v611, %v611
      %v1193 = vcombine.high %v659, %v659
      %v1194 = vcombine.high %v707, %v707
      %v1195 = vcombine.high %v755, %v755
      %v1196 = vcombine.high %v803, %v803
      %v1197 = vcombine.high %v851, %v851
      %v1198 = vcombine.high %v899, %v899
      %v1199 = vcombine.high %v947, %v947
      %v1200 = vcombine.high %v995, %v995
      %v1201 = vcombine.high %v1043, %v1043
      %v1202 = vcombine.high %v1091, %v1091
      %v1203 = vcombine.high %v1139, %v1139
      %v1204 = vcombine.high %v1187, %v1187
      %vm1205 = vsmask.f32 256
      %vm1206 = vsmask.f32 1284
      %vm1207 = vmor %vm1205, %vm1206
      %vm1208 = vsmask.f32 2312
      %vm1209 = vmor %vm1207, %vm1208
      %vm1210 = vsmask.f32 3340
      %vm1211 = vmor %vm1209, %vm1210
      %vm1212 = vsmask.f32 4368
      %vm1213 = vmor %vm1211, %vm1212
      %vm1214 = vsmask.f32 5396
      %vm1215 = vmor %vm1213, %vm1214
      %vm1216 = vsmask.f32 6424
      %vm1217 = vmor %vm1215, %vm1216
      %vm1218 = vsmask.f32 7452
      %vm1219 = vmor %vm1217, %vm1218
      %v1221 = vshrl.u32 %v542, 16
      %v1223 = vrot.slane %v1221, 7
      %v1224 = vrot.slane %v1223, 1
      %v1226 = vshll.u32 %v556, 16
      %v1228 = vsel %vm1219, %v1224, %v1226
      %v1229 = vshrl.u32 %v556, 16
      %v1231 = vrot.slane %v1229, 7
      %v1232 = vrot.slane %v1231, 1
      %v1234 = vshll.u32 %v564, 16
      %v1236 = vsel %vm1219, %v1232, %v1234
      %v1237 = vshrl.u32 %v564, 16
      %v1239 = vrot.slane %v1237, 7
      %v1240 = vrot.slane %v1239, 1
      %v1242 = vshll.u32 %v566, 16
      %v1244 = vsel %vm1219, %v1240, %v1242
      %v1245 = vshrl.u32 %v566, 16
      %v1247 = vrot.slane %v1245, 7
      %v1248 = vrot.slane %v1247, 1
      %v1250 = vshll.u32 %v549, 16
      %v1252 = vsel %vm1219, %v1248, %v1250
      %v1253 = vshrl.u32 %v549, 16
      %v1255 = vrot.slane %v1253, 7
      %v1256 = vrot.slane %v1255, 1
      %v1258 = vshll.u32 %v563, 16
      %v1260 = vsel %vm1219, %v1256, %v1258
      %v1261 = vshrl.u32 %v563, 16
      %v1263 = vrot.slane %v1261, 7
      %v1264 = vrot.slane %v1263, 1
      %v1266 = vshll.u32 %v565, 16
      %v1268 = vsel %vm1219, %v1264, %v1266
      %v1269 = vshrl.u32 %v565, 16
      %v1271 = vrot.slane %v1269, 7
      %v1272 = vrot.slane %v1271, 1
      %v1274 = vshll.u32 %v1191, 16
      %v1276 = vsel %vm1219, %v1272, %v1274
      %v1278 = vshrl.u32 %v590, 16
      %v1280 = vrot.slane %v1278, 7
      %v1281 = vrot.slane %v1280, 1
      %v1283 = vshll.u32 %v604, 16
      %v1285 = vsel %vm1219, %v1281, %v1283
      %v1286 = vshrl.u32 %v604, 16
      %v1288 = vrot.slane %v1286, 7
      %v1289 = vrot.slane %v1288, 1
      %v1291 = vshll.u32 %v612, 16
      %v1293 = vsel %vm1219, %v1289, %v1291
      %v1294 = vshrl.u32 %v612, 16
      %v1296 = vrot.slane %v1294, 7
      %v1297 = vrot.slane %v1296, 1
      %v1299 = vshll.u32 %v614, 16
      %v1301 = vsel %vm1219, %v1297, %v1299
      %v1302 = vshrl.u32 %v614, 16
      %v1304 = vrot.slane %v1302, 7
      %v1305 = vrot.slane %v1304, 1
      %v1307 = vshll.u32 %v597, 16
      %v1309 = vsel %vm1219, %v1305, %v1307
      %v1310 = vshrl.u32 %v597, 16
      %v1312 = vrot.slane %v1310, 7
      %v1313 = vrot.slane %v1312, 1
      %v1315 = vshll.u32 %v611, 16
      %v1317 = vsel %vm1219, %v1313, %v1315
      %v1318 = vshrl.u32 %v611, 16
      %v1320 = vrot.slane %v1318, 7
      %v1321 = vrot.slane %v1320, 1
      %v1323 = vshll.u32 %v613, 16
      %v1325 = vsel %vm1219, %v1321, %v1323
      %v1326 = vshrl.u32 %v613, 16
      %v1328 = vrot.slane %v1326, 7
      %v1329 = vrot.slane %v1328, 1
      %v1331 = vshll.u32 %v1192, 16
      %v1333 = vsel %vm1219, %v1329, %v1331
      %v1335 = vshrl.u32 %v638, 16
      %v1337 = vrot.slane %v1335, 7
      %v1338 = vrot.slane %v1337, 1
      %v1340 = vshll.u32 %v652, 16
      %v1342 = vsel %vm1219, %v1338, %v1340
      %v1343 = vshrl.u32 %v652, 16
      %v1345 = vrot.slane %v1343, 7
      %v1346 = vrot.slane %v1345, 1
      %v1348 = vshll.u32 %v660, 16
      %v1350 = vsel %vm1219, %v1346, %v1348
      %v1351 = vshrl.u32 %v660, 16
      %v1353 = vrot.slane %v1351, 7
      %v1354 = vrot.slane %v1353, 1
      %v1356 = vshll.u32 %v662, 16
      %v1358 = vsel %vm1219, %v1354, %v1356
      %v1359 = vshrl.u32 %v662, 16
      %v1361 = vrot.slane %v1359, 7
      %v1362 = vrot.slane %v1361, 1
      %v1364 = vshll.u32 %v645, 16
      %v1366 = vsel %vm1219, %v1362, %v1364
      %v1367 = vshrl.u32 %v645, 16
      %v1369 = vrot.slane %v1367, 7
      %v1370 = vrot.slane %v1369, 1
      %v1372 = vshll.u32 %v659, 16
      %v1374 = vsel %vm1219, %v1370, %v1372
      %v1375 = vshrl.u32 %v659, 16
      %v1377 = vrot.slane %v1375, 7
      %v1378 = vrot.slane %v1377, 1
      %v1380 = vshll.u32 %v661, 16
      %v1382 = vsel %vm1219, %v1378, %v1380
      %v1383 = vshrl.u32 %v661, 16
      %v1385 = vrot.slane %v1383, 7
      %v1386 = vrot.slane %v1385, 1
      %v1388 = vshll.u32 %v1193, 16
      %v1390 = vsel %vm1219, %v1386, %v1388
      %v1392 = vshrl.u32 %v686, 16
      %v1394 = vrot.slane %v1392, 7
      %v1395 = vrot.slane %v1394, 1
      %v1397 = vshll.u32 %v700, 16
      %v1399 = vsel %vm1219, %v1395, %v1397
      %v1400 = vshrl.u32 %v700, 16
      %v1402 = vrot.slane %v1400, 7
      %v1403 = vrot.slane %v1402, 1
      %v1405 = vshll.u32 %v708, 16
      %v1407 = vsel %vm1219, %v1403, %v1405
      %v1408 = vshrl.u32 %v708, 16
      %v1410 = vrot.slane %v1408, 7
      %v1411 = vrot.slane %v1410, 1
      %v1413 = vshll.u32 %v710, 16
      %v1415 = vsel %vm1219, %v1411, %v1413
      %v1416 = vshrl.u32 %v710, 16
      %v1418 = vrot.slane %v1416, 7
      %v1419 = vrot.slane %v1418, 1
      %v1421 = vshll.u32 %v693, 16
      %v1423 = vsel %vm1219, %v1419, %v1421
      %v1424 = vshrl.u32 %v693, 16
      %v1426 = vrot.slane %v1424, 7
      %v1427 = vrot.slane %v1426, 1
      %v1429 = vshll.u32 %v707, 16
      %v1431 = vsel %vm1219, %v1427, %v1429
      %v1432 = vshrl.u32 %v707, 16
      %v1434 = vrot.slane %v1432, 7
      %v1435 = vrot.slane %v1434, 1
      %v1437 = vshll.u32 %v709, 16
      %v1439 = vsel %vm1219, %v1435, %v1437
      %v1440 = vshrl.u32 %v709, 16
      %v1442 = vrot.slane %v1440, 7
      %v1443 = vrot.slane %v1442, 1
      %v1445 = vshll.u32 %v1194, 16
      %v1447 = vsel %vm1219, %v1443, %v1445
      %v1449 = vshrl.u32 %v734, 16
      %v1451 = vrot.slane %v1449, 7
      %v1452 = vrot.slane %v1451, 1
      %v1454 = vshll.u32 %v748, 16
      %v1456 = vsel %vm1219, %v1452, %v1454
      %v1457 = vshrl.u32 %v748, 16
      %v1459 = vrot.slane %v1457, 7
      %v1460 = vrot.slane %v1459, 1
      %v1462 = vshll.u32 %v756, 16
      %v1464 = vsel %vm1219, %v1460, %v1462
      %v1465 = vshrl.u32 %v756, 16
      %v1467 = vrot.slane %v1465, 7
      %v1468 = vrot.slane %v1467, 1
      %v1470 = vshll.u32 %v758, 16
      %v1472 = vsel %vm1219, %v1468, %v1470
      %v1473 = vshrl.u32 %v758, 16
      %v1475 = vrot.slane %v1473, 7
      %v1476 = vrot.slane %v1475, 1
      %v1478 = vshll.u32 %v741, 16
      %v1480 = vsel %vm1219, %v1476, %v1478
      %v1481 = vshrl.u32 %v741, 16
      %v1483 = vrot.slane %v1481, 7
      %v1484 = vrot.slane %v1483, 1
      %v1486 = vshll.u32 %v755, 16
      %v1488 = vsel %vm1219, %v1484, %v1486
      %v1489 = vshrl.u32 %v755, 16
      %v1491 = vrot.slane %v1489, 7
      %v1492 = vrot.slane %v1491, 1
      %v1494 = vshll.u32 %v757, 16
      %v1496 = vsel %vm1219, %v1492, %v1494
      %v1497 = vshrl.u32 %v757, 16
      %v1499 = vrot.slane %v1497, 7
      %v1500 = vrot.slane %v1499, 1
      %v1502 = vshll.u32 %v1195, 16
      %v1504 = vsel %vm1219, %v1500, %v1502
      %v1506 = vshrl.u32 %v782, 16
      %v1508 = vrot.slane %v1506, 7
      %v1509 = vrot.slane %v1508, 1
      %v1511 = vshll.u32 %v796, 16
      %v1513 = vsel %vm1219, %v1509, %v1511
      %v1514 = vshrl.u32 %v796, 16
      %v1516 = vrot.slane %v1514, 7
      %v1517 = vrot.slane %v1516, 1
      %v1519 = vshll.u32 %v804, 16
      %v1521 = vsel %vm1219, %v1517, %v1519
      %v1522 = vshrl.u32 %v804, 16
      %v1524 = vrot.slane %v1522, 7
      %v1525 = vrot.slane %v1524, 1
      %v1527 = vshll.u32 %v806, 16
      %v1529 = vsel %vm1219, %v1525, %v1527
      %v1530 = vshrl.u32 %v806, 16
      %v1532 = vrot.slane %v1530, 7
      %v1533 = vrot.slane %v1532, 1
      %v1535 = vshll.u32 %v789, 16
      %v1537 = vsel %vm1219, %v1533, %v1535
      %v1538 = vshrl.u32 %v789, 16
      %v1540 = vrot.slane %v1538, 7
      %v1541 = vrot.slane %v1540, 1
      %v1543 = vshll.u32 %v803, 16
      %v1545 = vsel %vm1219, %v1541, %v1543
      %v1546 = vshrl.u32 %v803, 16
      %v1548 = vrot.slane %v1546, 7
      %v1549 = vrot.slane %v1548, 1
      %v1551 = vshll.u32 %v805, 16
      %v1553 = vsel %vm1219, %v1549, %v1551
      %v1554 = vshrl.u32 %v805, 16
      %v1556 = vrot.slane %v1554, 7
      %v1557 = vrot.slane %v1556, 1
      %v1559 = vshll.u32 %v1196, 16
      %v1561 = vsel %vm1219, %v1557, %v1559
      %v1563 = vshrl.u32 %v830, 16
      %v1565 = vrot.slane %v1563, 7
      %v1566 = vrot.slane %v1565, 1
      %v1568 = vshll.u32 %v844, 16
      %v1570 = vsel %vm1219, %v1566, %v1568
      %v1571 = vshrl.u32 %v844, 16
      %v1573 = vrot.slane %v1571, 7
      %v1574 = vrot.slane %v1573, 1
      %v1576 = vshll.u32 %v852, 16
      %v1578 = vsel %vm1219, %v1574, %v1576
      %v1579 = vshrl.u32 %v852, 16
      %v1581 = vrot.slane %v1579, 7
      %v1582 = vrot.slane %v1581, 1
      %v1584 = vshll.u32 %v854, 16
      %v1586 = vsel %vm1219, %v1582, %v1584
      %v1587 = vshrl.u32 %v854, 16
      %v1589 = vrot.slane %v1587, 7
      %v1590 = vrot.slane %v1589, 1
      %v1592 = vshll.u32 %v837, 16
      %v1594 = vsel %vm1219, %v1590, %v1592
      %v1595 = vshrl.u32 %v837, 16
      %v1597 = vrot.slane %v1595, 7
      %v1598 = vrot.slane %v1597, 1
      %v1600 = vshll.u32 %v851, 16
      %v1602 = vsel %vm1219, %v1598, %v1600
      %v1603 = vshrl.u32 %v851, 16
      %v1605 = vrot.slane %v1603, 7
      %v1606 = vrot.slane %v1605, 1
      %v1608 = vshll.u32 %v853, 16
      %v1610 = vsel %vm1219, %v1606, %v1608
      %v1611 = vshrl.u32 %v853, 16
      %v1613 = vrot.slane %v1611, 7
      %v1614 = vrot.slane %v1613, 1
      %v1616 = vshll.u32 %v1197, 16
      %v1618 = vsel %vm1219, %v1614, %v1616
      %v1620 = vshrl.u32 %v878, 16
      %v1622 = vrot.slane %v1620, 7
      %v1623 = vrot.slane %v1622, 1
      %v1625 = vshll.u32 %v892, 16
      %v1627 = vsel %vm1219, %v1623, %v1625
      %v1628 = vshrl.u32 %v892, 16
      %v1630 = vrot.slane %v1628, 7
      %v1631 = vrot.slane %v1630, 1
      %v1633 = vshll.u32 %v900, 16
      %v1635 = vsel %vm1219, %v1631, %v1633
      %v1636 = vshrl.u32 %v900, 16
      %v1638 = vrot.slane %v1636, 7
      %v1639 = vrot.slane %v1638, 1
      %v1641 = vshll.u32 %v902, 16
      %v1643 = vsel %vm1219, %v1639, %v1641
      %v1644 = vshrl.u32 %v902, 16
      %v1646 = vrot.slane %v1644, 7
      %v1647 = vrot.slane %v1646, 1
      %v1649 = vshll.u32 %v885, 16
      %v1651 = vsel %vm1219, %v1647, %v1649
      %v1652 = vshrl.u32 %v885, 16
      %v1654 = vrot.slane %v1652, 7
      %v1655 = vrot.slane %v1654, 1
      %v1657 = vshll.u32 %v899, 16
      %v1659 = vsel %vm1219, %v1655, %v1657
      %v1660 = vshrl.u32 %v899, 16
      %v1662 = vrot.slane %v1660, 7
      %v1663 = vrot.slane %v1662, 1
      %v1665 = vshll.u32 %v901, 16
      %v1667 = vsel %vm1219, %v1663, %v1665
      %v1668 = vshrl.u32 %v901, 16
      %v1670 = vrot.slane %v1668, 7
      %v1671 = vrot.slane %v1670, 1
      %v1673 = vshll.u32 %v1198, 16
      %v1675 = vsel %vm1219, %v1671, %v1673
      %v1677 = vshrl.u32 %v926, 16
      %v1679 = vrot.slane %v1677, 7
      %v1680 = vrot.slane %v1679, 1
      %v1682 = vshll.u32 %v940, 16
      %v1684 = vsel %vm1219, %v1680, %v1682
      %v1685 = vshrl.u32 %v940, 16
      %v1687 = vrot.slane %v1685, 7
      %v1688 = vrot.slane %v1687, 1
      %v1690 = vshll.u32 %v948, 16
      %v1692 = vsel %vm1219, %v1688, %v1690
      %v1693 = vshrl.u32 %v948, 16
      %v1695 = vrot.slane %v1693, 7
      %v1696 = vrot.slane %v1695, 1
      %v1698 = vshll.u32 %v950, 16
      %v1700 = vsel %vm1219, %v1696, %v1698
      %v1701 = vshrl.u32 %v950, 16
      %v1703 = vrot.slane %v1701, 7
      %v1704 = vrot.slane %v1703, 1
      %v1706 = vshll.u32 %v933, 16
      %v1708 = vsel %vm1219, %v1704, %v1706
      %v1709 = vshrl.u32 %v933, 16
      %v1711 = vrot.slane %v1709, 7
      %v1712 = vrot.slane %v1711, 1
      %v1714 = vshll.u32 %v947, 16
      %v1716 = vsel %vm1219, %v1712, %v1714
      %v1717 = vshrl.u32 %v947, 16
      %v1719 = vrot.slane %v1717, 7
      %v1720 = vrot.slane %v1719, 1
      %v1722 = vshll.u32 %v949, 16
      %v1724 = vsel %vm1219, %v1720, %v1722
      %v1725 = vshrl.u32 %v949, 16
      %v1727 = vrot.slane %v1725, 7
      %v1728 = vrot.slane %v1727, 1
      %v1730 = vshll.u32 %v1199, 16
      %v1732 = vsel %vm1219, %v1728, %v1730
      %v1734 = vshrl.u32 %v974, 16
      %v1736 = vrot.slane %v1734, 7
      %v1737 = vrot.slane %v1736, 1
      %v1739 = vshll.u32 %v988, 16
      %v1741 = vsel %vm1219, %v1737, %v1739
      %v1742 = vshrl.u32 %v988, 16
      %v1744 = vrot.slane %v1742, 7
      %v1745 = vrot.slane %v1744, 1
      %v1747 = vshll.u32 %v996, 16
      %v1749 = vsel %vm1219, %v1745, %v1747
      %v1750 = vshrl.u32 %v996, 16
      %v1752 = vrot.slane %v1750, 7
      %v1753 = vrot.slane %v1752, 1
      %v1755 = vshll.u32 %v998, 16
      %v1757 = vsel %vm1219, %v1753, %v1755
      %v1758 = vshrl.u32 %v998, 16
      %v1760 = vrot.slane %v1758, 7
      %v1761 = vrot.slane %v1760, 1
      %v1763 = vshll.u32 %v981, 16
      %v1765 = vsel %vm1219, %v1761, %v1763
      %v1766 = vshrl.u32 %v981, 16
      %v1768 = vrot.slane %v1766, 7
      %v1769 = vrot.slane %v1768, 1
      %v1771 = vshll.u32 %v995, 16
      %v1773 = vsel %vm1219, %v1769, %v1771
      %v1774 = vshrl.u32 %v995, 16
      %v1776 = vrot.slane %v1774, 7
      %v1777 = vrot.slane %v1776, 1
      %v1779 = vshll.u32 %v997, 16
      %v1781 = vsel %vm1219, %v1777, %v1779
      %v1782 = vshrl.u32 %v997, 16
      %v1784 = vrot.slane %v1782, 7
      %v1785 = vrot.slane %v1784, 1
      %v1787 = vshll.u32 %v1200, 16
      %v1789 = vsel %vm1219, %v1785, %v1787
      %v1791 = vshrl.u32 %v1022, 16
      %v1793 = vrot.slane %v1791, 7
      %v1794 = vrot.slane %v1793, 1
      %v1796 = vshll.u32 %v1036, 16
      %v1798 = vsel %vm1219, %v1794, %v1796
      %v1799 = vshrl.u32 %v1036, 16
      %v1801 = vrot.slane %v1799, 7
      %v1802 = vrot.slane %v1801, 1
      %v1804 = vshll.u32 %v1044, 16
      %v1806 = vsel %vm1219, %v1802, %v1804
      %v1807 = vshrl.u32 %v1044, 16
      %v1809 = vrot.slane %v1807, 7
      %v1810 = vrot.slane %v1809, 1
      %v1812 = vshll.u32 %v1046, 16
      %v1814 = vsel %vm1219, %v1810, %v1812
      %v1815 = vshrl.u32 %v1046, 16
      %v1817 = vrot.slane %v1815, 7
      %v1818 = vrot.slane %v1817, 1
      %v1820 = vshll.u32 %v1029, 16
      %v1822 = vsel %vm1219, %v1818, %v1820
      %v1823 = vshrl.u32 %v1029, 16
      %v1825 = vrot.slane %v1823, 7
      %v1826 = vrot.slane %v1825, 1
      %v1828 = vshll.u32 %v1043, 16
      %v1830 = vsel %vm1219, %v1826, %v1828
      %v1831 = vshrl.u32 %v1043, 16
      %v1833 = vrot.slane %v1831, 7
      %v1834 = vrot.slane %v1833, 1
      %v1836 = vshll.u32 %v1045, 16
      %v1838 = vsel %vm1219, %v1834, %v1836
      %v1839 = vshrl.u32 %v1045, 16
      %v1841 = vrot.slane %v1839, 7
      %v1842 = vrot.slane %v1841, 1
      %v1844 = vshll.u32 %v1201, 16
      %v1846 = vsel %vm1219, %v1842, %v1844
      %v1848 = vshrl.u32 %v1070, 16
      %v1850 = vrot.slane %v1848, 7
      %v1851 = vrot.slane %v1850, 1
      %v1853 = vshll.u32 %v1084, 16
      %v1855 = vsel %vm1219, %v1851, %v1853
      %v1856 = vshrl.u32 %v1084, 16
      %v1858 = vrot.slane %v1856, 7
      %v1859 = vrot.slane %v1858, 1
      %v1861 = vshll.u32 %v1092, 16
      %v1863 = vsel %vm1219, %v1859, %v1861
      %v1864 = vshrl.u32 %v1092, 16
      %v1866 = vrot.slane %v1864, 7
      %v1867 = vrot.slane %v1866, 1
      %v1869 = vshll.u32 %v1094, 16
      %v1871 = vsel %vm1219, %v1867, %v1869
      %v1872 = vshrl.u32 %v1094, 16
      %v1874 = vrot.slane %v1872, 7
      %v1875 = vrot.slane %v1874, 1
      %v1877 = vshll.u32 %v1077, 16
      %v1879 = vsel %vm1219, %v1875, %v1877
      %v1880 = vshrl.u32 %v1077, 16
      %v1882 = vrot.slane %v1880, 7
      %v1883 = vrot.slane %v1882, 1
      %v1885 = vshll.u32 %v1091, 16
      %v1887 = vsel %vm1219, %v1883, %v1885
      %v1888 = vshrl.u32 %v1091, 16
      %v1890 = vrot.slane %v1888, 7
      %v1891 = vrot.slane %v1890, 1
      %v1893 = vshll.u32 %v1093, 16
      %v1895 = vsel %vm1219, %v1891, %v1893
      %v1896 = vshrl.u32 %v1093, 16
      %v1898 = vrot.slane %v1896, 7
      %v1899 = vrot.slane %v1898, 1
      %v1901 = vshll.u32 %v1202, 16
      %v1903 = vsel %vm1219, %v1899, %v1901
      %v1905 = vshrl.u32 %v1118, 16
      %v1907 = vrot.slane %v1905, 7
      %v1908 = vrot.slane %v1907, 1
      %v1910 = vshll.u32 %v1132, 16
      %v1912 = vsel %vm1219, %v1908, %v1910
      %v1913 = vshrl.u32 %v1132, 16
      %v1915 = vrot.slane %v1913, 7
      %v1916 = vrot.slane %v1915, 1
      %v1918 = vshll.u32 %v1140, 16
      %v1920 = vsel %vm1219, %v1916, %v1918
      %v1921 = vshrl.u32 %v1140, 16
      %v1923 = vrot.slane %v1921, 7
      %v1924 = vrot.slane %v1923, 1
      %v1926 = vshll.u32 %v1142, 16
      %v1928 = vsel %vm1219, %v1924, %v1926
      %v1929 = vshrl.u32 %v1142, 16
      %v1931 = vrot.slane %v1929, 7
      %v1932 = vrot.slane %v1931, 1
      %v1934 = vshll.u32 %v1125, 16
      %v1936 = vsel %vm1219, %v1932, %v1934
      %v1937 = vshrl.u32 %v1125, 16
      %v1939 = vrot.slane %v1937, 7
      %v1940 = vrot.slane %v1939, 1
      %v1942 = vshll.u32 %v1139, 16
      %v1944 = vsel %vm1219, %v1940, %v1942
      %v1945 = vshrl.u32 %v1139, 16
      %v1947 = vrot.slane %v1945, 7
      %v1948 = vrot.slane %v1947, 1
      %v1950 = vshll.u32 %v1141, 16
      %v1952 = vsel %vm1219, %v1948, %v1950
      %v1953 = vshrl.u32 %v1141, 16
      %v1955 = vrot.slane %v1953, 7
      %v1956 = vrot.slane %v1955, 1
      %v1958 = vshll.u32 %v1203, 16
      %v1960 = vsel %vm1219, %v1956, %v1958
      %v1962 = vshrl.u32 %v1166, 16
      %v1964 = vrot.slane %v1962, 7
      %v1965 = vrot.slane %v1964, 1
      %v1967 = vshll.u32 %v1180, 16
      %v1969 = vsel %vm1219, %v1965, %v1967
      %v1970 = vshrl.u32 %v1180, 16
      %v1972 = vrot.slane %v1970, 7
      %v1973 = vrot.slane %v1972, 1
      %v1975 = vshll.u32 %v1188, 16
      %v1977 = vsel %vm1219, %v1973, %v1975
      %v1978 = vshrl.u32 %v1188, 16
      %v1980 = vrot.slane %v1978, 7
      %v1981 = vrot.slane %v1980, 1
      %v1983 = vshll.u32 %v1190, 16
      %v1985 = vsel %vm1219, %v1981, %v1983
      %v1986 = vshrl.u32 %v1190, 16
      %v1988 = vrot.slane %v1986, 7
      %v1989 = vrot.slane %v1988, 1
      %v1991 = vshll.u32 %v1173, 16
      %v1993 = vsel %vm1219, %v1989, %v1991
      %v1994 = vshrl.u32 %v1173, 16
      %v1996 = vrot.slane %v1994, 7
      %v1997 = vrot.slane %v1996, 1
      %v1999 = vshll.u32 %v1187, 16
      %v2001 = vsel %vm1219, %v1997, %v1999
      %v2002 = vshrl.u32 %v1187, 16
      %v2004 = vrot.slane %v2002, 7
      %v2005 = vrot.slane %v2004, 1
      %v2007 = vshll.u32 %v1189, 16
      %v2009 = vsel %vm1219, %v2005, %v2007
      %v2010 = vshrl.u32 %v1189, 16
      %v2012 = vrot.slane %v2010, 7
      %v2013 = vrot.slane %v2012, 1
      %v2015 = vshll.u32 %v1204, 16
      %v2017 = vsel %vm1219, %v2013, %v2015
      %v2019 = vcombine.high %v503, %v503
      %v2021 = vunpack.c.l.s4 1966171168
      %v2022 = vunpack.c.0.s8 %v2021
      %v2023 = vlaneseq
      %v2024 = vshrl.u32 %v2023, 7
      %v2025 = vsub.s32 %v2022, %v2024
      %v2026 = vrot.slane %v503, %v2025
      %v2028 = vunpack.c.l.s4 1966171168
      %v2029 = vunpack.c.0.s8 %v2028
      %v2030 = vlaneseq
      %v2031 = vshrl.u32 %v2030, 7
      %v2032 = vsub.s32 %v2029, %v2031
      %v2033 = vrot.slane %v2019, %v2032
      %v2034 = vcombine.high %v2026, %v2026
      %v2035 = vcombine.high %v2033, %v2033
      %v2037 = vunpack.c.l.s4 1966171168
      %v2038 = vunpack.c.0.s8 %v2037
      %v2039 = vlaneseq
      %v2040 = vshrl.u32 %v2039, 7
      %v2041 = vsub.s32 %v2038, %v2040
      %v2042 = vrot.slane %v2026, %v2041
      %v2044 = vunpack.c.l.s4 1966171168
      %v2045 = vunpack.c.0.s8 %v2044
      %v2046 = vlaneseq
      %v2047 = vshrl.u32 %v2046, 7
      %v2048 = vsub.s32 %v2045, %v2047
      %v2049 = vrot.slane %v2033, %v2048
      %v2051 = vunpack.c.l.s4 1966171168
      %v2052 = vunpack.c.0.s8 %v2051
      %v2053 = vlaneseq
      %v2054 = vshrl.u32 %v2053, 7
      %v2055 = vsub.s32 %v2052, %v2054
      %v2056 = vrot.slane %v2034, %v2055
      %v2058 = vunpack.c.l.s4 1966171168
      %v2059 = vunpack.c.0.s8 %v2058
      %v2060 = vlaneseq
      %v2061 = vshrl.u32 %v2060, 7
      %v2062 = vsub.s32 %v2059, %v2061
      %v2063 = vrot.slane %v2035, %v2062
      %v2064 = vcombine.high %v2042, %v2042
      %v2065 = vcombine.high %v2049, %v2049
      %v2066 = vcombine.high %v2056, %v2056
      %v2067 = vcombine.high %v2063, %v2063
      %v2069 = vshrl.u32 %v2042, 16
      %v2071 = vrot.slane %v2069, 7
      %v2072 = vrot.slane %v2071, 1
      %v2074 = vshll.u32 %v2056, 16
      %v2076 = vsel %vm1219, %v2072, %v2074
      %v2077 = vshrl.u32 %v2056, 16
      %v2079 = vrot.slane %v2077, 7
      %v2080 = vrot.slane %v2079, 1
      %v2082 = vshll.u32 %v2064, 16
      %v2084 = vsel %vm1219, %v2080, %v2082
      %v2085 = vshrl.u32 %v2064, 16
      %v2087 = vrot.slane %v2085, 7
      %v2088 = vrot.slane %v2087, 1
      %v2090 = vshll.u32 %v2066, 16
      %v2092 = vsel %vm1219, %v2088, %v2090
      %v2093 = vshrl.u32 %v2066, 16
      %v2095 = vrot.slane %v2093, 7
      %v2096 = vrot.slane %v2095, 1
      %v2098 = vshll.u32 %v2049, 16
      %v2100 = vsel %vm1219, %v2096, %v2098
      %v2101 = vshrl.u32 %v2049, 16
      %v2103 = vrot.slane %v2101, 7
      %v2104 = vrot.slane %v2103, 1
      %v2106 = vshll.u32 %v2063, 16
      %v2108 = vsel %vm1219, %v2104, %v2106
      %v2109 = vshrl.u32 %v2063, 16
      %v2111 = vrot.slane %v2109, 7
      %v2112 = vrot.slane %v2111, 1
      %v2114 = vshll.u32 %v2065, 16
      %v2116 = vsel %vm1219, %v2112, %v2114
      %v2117 = vshrl.u32 %v2065, 16
      %v2119 = vrot.slane %v2117, 7
      %v2120 = vrot.slane %v2119, 1
      %v2122 = vshll.u32 %v2067, 16
      %v2124 = vsel %vm1219, %v2120, %v2122
      %v2126 = vcombine.high %v504, %v504
      %v2128 = vunpack.c.l.s4 1966171168
      %v2129 = vunpack.c.0.s8 %v2128
      %v2130 = vlaneseq
      %v2131 = vshrl.u32 %v2130, 7
      %v2132 = vsub.s32 %v2129, %v2131
      %v2133 = vrot.slane %v504, %v2132
      %v2135 = vunpack.c.l.s4 1966171168
      %v2136 = vunpack.c.0.s8 %v2135
      %v2137 = vlaneseq
      %v2138 = vshrl.u32 %v2137, 7
      %v2139 = vsub.s32 %v2136, %v2138
      %v2140 = vrot.slane %v2126, %v2139
      %v2141 = vcombine.high %v2133, %v2133
      %v2142 = vcombine.high %v2140, %v2140
      %v2144 = vunpack.c.l.s4 1966171168
      %v2145 = vunpack.c.0.s8 %v2144
      %v2146 = vlaneseq
      %v2147 = vshrl.u32 %v2146, 7
      %v2148 = vsub.s32 %v2145, %v2147
      %v2149 = vrot.slane %v2133, %v2148
      %v2151 = vunpack.c.l.s4 1966171168
      %v2152 = vunpack.c.0.s8 %v2151
      %v2153 = vlaneseq
      %v2154 = vshrl.u32 %v2153, 7
      %v2155 = vsub.s32 %v2152, %v2154
      %v2156 = vrot.slane %v2140, %v2155
      %v2158 = vunpack.c.l.s4 1966171168
      %v2159 = vunpack.c.0.s8 %v2158
      %v2160 = vlaneseq
      %v2161 = vshrl.u32 %v2160, 7
      %v2162 = vsub.s32 %v2159, %v2161
      %v2163 = vrot.slane %v2141, %v2162
      %v2165 = vunpack.c.l.s4 1966171168
      %v2166 = vunpack.c.0.s8 %v2165
      %v2167 = vlaneseq
      %v2168 = vshrl.u32 %v2167, 7
      %v2169 = vsub.s32 %v2166, %v2168
      %v2170 = vrot.slane %v2142, %v2169
      %v2171 = vcombine.high %v2149, %v2149
      %v2172 = vcombine.high %v2156, %v2156
      %v2173 = vcombine.high %v2163, %v2163
      %v2174 = vcombine.high %v2170, %v2170
      %v2176 = vshrl.u32 %v2149, 16
      %v2178 = vrot.slane %v2176, 7
      %v2179 = vrot.slane %v2178, 1
      %v2181 = vshll.u32 %v2163, 16
      %v2183 = vsel %vm1219, %v2179, %v2181
      %v2184 = vshrl.u32 %v2163, 16
      %v2186 = vrot.slane %v2184, 7
      %v2187 = vrot.slane %v2186, 1
      %v2189 = vshll.u32 %v2171, 16
      %v2191 = vsel %vm1219, %v2187, %v2189
      %v2192 = vshrl.u32 %v2171, 16
      %v2194 = vrot.slane %v2192, 7
      %v2195 = vrot.slane %v2194, 1
      %v2197 = vshll.u32 %v2173, 16
      %v2199 = vsel %vm1219, %v2195, %v2197
      %v2200 = vshrl.u32 %v2173, 16
      %v2202 = vrot.slane %v2200, 7
      %v2203 = vrot.slane %v2202, 1
      %v2205 = vshll.u32 %v2156, 16
      %v2207 = vsel %vm1219, %v2203, %v2205
      %v2208 = vshrl.u32 %v2156, 16
      %v2210 = vrot.slane %v2208, 7
      %v2211 = vrot.slane %v2210, 1
      %v2213 = vshll.u32 %v2170, 16
      %v2215 = vsel %vm1219, %v2211, %v2213
      %v2216 = vshrl.u32 %v2170, 16
      %v2218 = vrot.slane %v2216, 7
      %v2219 = vrot.slane %v2218, 1
      %v2221 = vshll.u32 %v2172, 16
      %v2223 = vsel %vm1219, %v2219, %v2221
      %v2224 = vshrl.u32 %v2172, 16
      %v2226 = vrot.slane %v2224, 7
      %v2227 = vrot.slane %v2226, 1
      %v2229 = vshll.u32 %v2174, 16
      %v2231 = vsel %vm1219, %v2227, %v2229
      %v2232 = vcombine.low %v542, %v556
      %v2233 = vcombine.low %v564, %v566
      %v2234 = vcombine.low %v549, %v563
      %v2235 = vcombine.low %v565, %v590
      %v2237 = vunpack.c.l.s4 1966171168
      %v2238 = vunpack.c.0.s8 %v2237
      %v2239 = vlaneseq
      %v2240 = vshrl.u32 %v2239, 7
      %v2241 = vsub.s32 %v2238, %v2240
      %v2242 = vrot.slane %v2232, %v2241
      %v2244 = vunpack.c.l.s4 1966171168
      %v2245 = vunpack.c.0.s8 %v2244
      %v2246 = vlaneseq
      %v2247 = vshrl.u32 %v2246, 7
      %v2248 = vsub.s32 %v2245, %v2247
      %v2249 = vrot.slane %v2233, %v2248
      %v2251 = vunpack.c.l.s4 1966171168
      %v2252 = vunpack.c.0.s8 %v2251
      %v2253 = vlaneseq
      %v2254 = vshrl.u32 %v2253, 7
      %v2255 = vsub.s32 %v2252, %v2254
      %v2256 = vrot.slane %v2234, %v2255
      %v2258 = vunpack.c.l.s4 1966171168
      %v2259 = vunpack.c.0.s8 %v2258
      %v2260 = vlaneseq
      %v2261 = vshrl.u32 %v2260, 7
      %v2262 = vsub.s32 %v2259, %v2261
      %v2263 = vrot.slane %v2235, %v2262
      %v2264 = vcombine.low %v2242, %v2249
      %v2265 = vcombine.low %v2256, %v2263
      %v2267 = vunpack.c.l.s4 1966171168
      %v2268 = vunpack.c.0.s8 %v2267
      %v2269 = vlaneseq
      %v2270 = vshrl.u32 %v2269, 7
      %v2271 = vsub.s32 %v2268, %v2270
      %v2272 = vrot.slane %v2264, %v2271
      %v2274 = vunpack.c.l.s4 1966171168
      %v2275 = vunpack.c.0.s8 %v2274
      %v2276 = vlaneseq
      %v2277 = vshrl.u32 %v2276, 7
      %v2278 = vsub.s32 %v2275, %v2277
      %v2279 = vrot.slane %v2265, %v2278
      %v2280 = vcombine.low %v2272, %v2279
      %v2281 = vcombine.low %v604, %v612
      %v2282 = vcombine.low %v614, %v597
      %v2283 = vcombine.low %v611, %v613
      %v2284 = vcombine.low %v638, %v652
      %v2286 = vunpack.c.l.s4 1966171168
      %v2287 = vunpack.c.0.s8 %v2286
      %v2288 = vlaneseq
      %v2289 = vshrl.u32 %v2288, 7
      %v2290 = vsub.s32 %v2287, %v2289
      %v2291 = vrot.slane %v2281, %v2290
      %v2293 = vunpack.c.l.s4 1966171168
      %v2294 = vunpack.c.0.s8 %v2293
      %v2295 = vlaneseq
      %v2296 = vshrl.u32 %v2295, 7
      %v2297 = vsub.s32 %v2294, %v2296
      %v2298 = vrot.slane %v2282, %v2297
      %v2300 = vunpack.c.l.s4 1966171168
      %v2301 = vunpack.c.0.s8 %v2300
      %v2302 = vlaneseq
      %v2303 = vshrl.u32 %v2302, 7
      %v2304 = vsub.s32 %v2301, %v2303
      %v2305 = vrot.slane %v2283, %v2304
      %v2307 = vunpack.c.l.s4 1966171168
      %v2308 = vunpack.c.0.s8 %v2307
      %v2309 = vlaneseq
      %v2310 = vshrl.u32 %v2309, 7
      %v2311 = vsub.s32 %v2308, %v2310
      %v2312 = vrot.slane %v2284, %v2311
      %v2313 = vcombine.low %v2291, %v2298
      %v2314 = vcombine.low %v2305, %v2312
      %v2316 = vunpack.c.l.s4 1966171168
      %v2317 = vunpack.c.0.s8 %v2316
      %v2318 = vlaneseq
      %v2319 = vshrl.u32 %v2318, 7
      %v2320 = vsub.s32 %v2317, %v2319
      %v2321 = vrot.slane %v2313, %v2320
      %v2323 = vunpack.c.l.s4 1966171168
      %v2324 = vunpack.c.0.s8 %v2323
      %v2325 = vlaneseq
      %v2326 = vshrl.u32 %v2325, 7
      %v2327 = vsub.s32 %v2324, %v2326
      %v2328 = vrot.slane %v2314, %v2327
      %v2329 = vcombine.low %v2321, %v2328
      %v2330 = vcombine.low %v660, %v662
      %v2331 = vcombine.low %v645, %v659
      %v2332 = vcombine.low %v661, %v686
      %v2333 = vcombine.low %v700, %v708
      %v2335 = vunpack.c.l.s4 1966171168
      %v2336 = vunpack.c.0.s8 %v2335
      %v2337 = vlaneseq
      %v2338 = vshrl.u32 %v2337, 7
      %v2339 = vsub.s32 %v2336, %v2338
      %v2340 = vrot.slane %v2330, %v2339
      %v2342 = vunpack.c.l.s4 1966171168
      %v2343 = vunpack.c.0.s8 %v2342
      %v2344 = vlaneseq
      %v2345 = vshrl.u32 %v2344, 7
      %v2346 = vsub.s32 %v2343, %v2345
      %v2347 = vrot.slane %v2331, %v2346
      %v2349 = vunpack.c.l.s4 1966171168
      %v2350 = vunpack.c.0.s8 %v2349
      %v2351 = vlaneseq
      %v2352 = vshrl.u32 %v2351, 7
      %v2353 = vsub.s32 %v2350, %v2352
      %v2354 = vrot.slane %v2332, %v2353
      %v2356 = vunpack.c.l.s4 1966171168
      %v2357 = vunpack.c.0.s8 %v2356
      %v2358 = vlaneseq
      %v2359 = vshrl.u32 %v2358, 7
      %v2360 = vsub.s32 %v2357, %v2359
      %v2361 = vrot.slane %v2333, %v2360
      %v2362 = vcombine.low %v2340, %v2347
      %v2363 = vcombine.low %v2354, %v2361
      %v2365 = vunpack.c.l.s4 1966171168
      %v2366 = vunpack.c.0.s8 %v2365
      %v2367 = vlaneseq
      %v2368 = vshrl.u32 %v2367, 7
      %v2369 = vsub.s32 %v2366, %v2368
      %v2370 = vrot.slane %v2362, %v2369
      %v2372 = vunpack.c.l.s4 1966171168
      %v2373 = vunpack.c.0.s8 %v2372
      %v2374 = vlaneseq
      %v2375 = vshrl.u32 %v2374, 7
      %v2376 = vsub.s32 %v2373, %v2375
      %v2377 = vrot.slane %v2363, %v2376
      %v2378 = vcombine.low %v2370, %v2377
      %v2379 = vcombine.low %v710, %v693
      %v2380 = vcombine.low %v707, %v709
      %v2381 = vcombine.low %v734, %v748
      %v2382 = vcombine.low %v756, %v758
      %v2384 = vunpack.c.l.s4 1966171168
      %v2385 = vunpack.c.0.s8 %v2384
      %v2386 = vlaneseq
      %v2387 = vshrl.u32 %v2386, 7
      %v2388 = vsub.s32 %v2385, %v2387
      %v2389 = vrot.slane %v2379, %v2388
      %v2391 = vunpack.c.l.s4 1966171168
      %v2392 = vunpack.c.0.s8 %v2391
      %v2393 = vlaneseq
      %v2394 = vshrl.u32 %v2393, 7
      %v2395 = vsub.s32 %v2392, %v2394
      %v2396 = vrot.slane %v2380, %v2395
      %v2398 = vunpack.c.l.s4 1966171168
      %v2399 = vunpack.c.0.s8 %v2398
      %v2400 = vlaneseq
      %v2401 = vshrl.u32 %v2400, 7
      %v2402 = vsub.s32 %v2399, %v2401
      %v2403 = vrot.slane %v2381, %v2402
      %v2405 = vunpack.c.l.s4 1966171168
      %v2406 = vunpack.c.0.s8 %v2405
      %v2407 = vlaneseq
      %v2408 = vshrl.u32 %v2407, 7
      %v2409 = vsub.s32 %v2406, %v2408
      %v2410 = vrot.slane %v2382, %v2409
      %v2411 = vcombine.low %v2389, %v2396
      %v2412 = vcombine.low %v2403, %v2410
      %v2414 = vunpack.c.l.s4 1966171168
      %v2415 = vunpack.c.0.s8 %v2414
      %v2416 = vlaneseq
      %v2417 = vshrl.u32 %v2416, 7
      %v2418 = vsub.s32 %v2415, %v2417
      %v2419 = vrot.slane %v2411, %v2418
      %v2421 = vunpack.c.l.s4 1966171168
      %v2422 = vunpack.c.0.s8 %v2421
      %v2423 = vlaneseq
      %v2424 = vshrl.u32 %v2423, 7
      %v2425 = vsub.s32 %v2422, %v2424
      %v2426 = vrot.slane %v2412, %v2425
      %v2427 = vcombine.low %v2419, %v2426
      %v2428 = vcombine.low %v741, %v755
      %v2429 = vcombine.low %v757, %v782
      %v2430 = vcombine.low %v796, %v804
      %v2431 = vcombine.low %v806, %v789
      %v2433 = vunpack.c.l.s4 1966171168
      %v2434 = vunpack.c.0.s8 %v2433
      %v2435 = vlaneseq
      %v2436 = vshrl.u32 %v2435, 7
      %v2437 = vsub.s32 %v2434, %v2436
      %v2438 = vrot.slane %v2428, %v2437
      %v2440 = vunpack.c.l.s4 1966171168
      %v2441 = vunpack.c.0.s8 %v2440
      %v2442 = vlaneseq
      %v2443 = vshrl.u32 %v2442, 7
      %v2444 = vsub.s32 %v2441, %v2443
      %v2445 = vrot.slane %v2429, %v2444
      %v2447 = vunpack.c.l.s4 1966171168
      %v2448 = vunpack.c.0.s8 %v2447
      %v2449 = vlaneseq
      %v2450 = vshrl.u32 %v2449, 7
      %v2451 = vsub.s32 %v2448, %v2450
      %v2452 = vrot.slane %v2430, %v2451
      %v2454 = vunpack.c.l.s4 1966171168
      %v2455 = vunpack.c.0.s8 %v2454
      %v2456 = vlaneseq
      %v2457 = vshrl.u32 %v2456, 7
      %v2458 = vsub.s32 %v2455, %v2457
      %v2459 = vrot.slane %v2431, %v2458
      %v2460 = vcombine.low %v2438, %v2445
      %v2461 = vcombine.low %v2452, %v2459
      %v2463 = vunpack.c.l.s4 1966171168
      %v2464 = vunpack.c.0.s8 %v2463
      %v2465 = vlaneseq
      %v2466 = vshrl.u32 %v2465, 7
      %v2467 = vsub.s32 %v2464, %v2466
      %v2468 = vrot.slane %v2460, %v2467
      %v2470 = vunpack.c.l.s4 1966171168
      %v2471 = vunpack.c.0.s8 %v2470
      %v2472 = vlaneseq
      %v2473 = vshrl.u32 %v2472, 7
      %v2474 = vsub.s32 %v2471, %v2473
      %v2475 = vrot.slane %v2461, %v2474
      %v2476 = vcombine.low %v2468, %v2475
      %v2477 = vcombine.low %v803, %v805
      %v2478 = vcombine.low %v830, %v844
      %v2479 = vcombine.low %v852, %v854
      %v2480 = vcombine.low %v837, %v851
      %v2482 = vunpack.c.l.s4 1966171168
      %v2483 = vunpack.c.0.s8 %v2482
      %v2484 = vlaneseq
      %v2485 = vshrl.u32 %v2484, 7
      %v2486 = vsub.s32 %v2483, %v2485
      %v2487 = vrot.slane %v2477, %v2486
      %v2489 = vunpack.c.l.s4 1966171168
      %v2490 = vunpack.c.0.s8 %v2489
      %v2491 = vlaneseq
      %v2492 = vshrl.u32 %v2491, 7
      %v2493 = vsub.s32 %v2490, %v2492
      %v2494 = vrot.slane %v2478, %v2493
      %v2496 = vunpack.c.l.s4 1966171168
      %v2497 = vunpack.c.0.s8 %v2496
      %v2498 = vlaneseq
      %v2499 = vshrl.u32 %v2498, 7
      %v2500 = vsub.s32 %v2497, %v2499
      %v2501 = vrot.slane %v2479, %v2500
      %v2503 = vunpack.c.l.s4 1966171168
      %v2504 = vunpack.c.0.s8 %v2503
      %v2505 = vlaneseq
      %v2506 = vshrl.u32 %v2505, 7
      %v2507 = vsub.s32 %v2504, %v2506
      %v2508 = vrot.slane %v2480, %v2507
      %v2509 = vcombine.low %v2487, %v2494
      %v2510 = vcombine.low %v2501, %v2508
      %v2512 = vunpack.c.l.s4 1966171168
      %v2513 = vunpack.c.0.s8 %v2512
      %v2514 = vlaneseq
      %v2515 = vshrl.u32 %v2514, 7
      %v2516 = vsub.s32 %v2513, %v2515
      %v2517 = vrot.slane %v2509, %v2516
      %v2519 = vunpack.c.l.s4 1966171168
      %v2520 = vunpack.c.0.s8 %v2519
      %v2521 = vlaneseq
      %v2522 = vshrl.u32 %v2521, 7
      %v2523 = vsub.s32 %v2520, %v2522
      %v2524 = vrot.slane %v2510, %v2523
      %v2525 = vcombine.low %v2517, %v2524
      %v2526 = vcombine.low %v853, %v878
      %v2527 = vcombine.low %v892, %v900
      %v2528 = vcombine.low %v902, %v885
      %v2529 = vcombine.low %v899, %v901
      %v2531 = vunpack.c.l.s4 1966171168
      %v2532 = vunpack.c.0.s8 %v2531
      %v2533 = vlaneseq
      %v2534 = vshrl.u32 %v2533, 7
      %v2535 = vsub.s32 %v2532, %v2534
      %v2536 = vrot.slane %v2526, %v2535
      %v2538 = vunpack.c.l.s4 1966171168
      %v2539 = vunpack.c.0.s8 %v2538
      %v2540 = vlaneseq
      %v2541 = vshrl.u32 %v2540, 7
      %v2542 = vsub.s32 %v2539, %v2541
      %v2543 = vrot.slane %v2527, %v2542
      %v2545 = vunpack.c.l.s4 1966171168
      %v2546 = vunpack.c.0.s8 %v2545
      %v2547 = vlaneseq
      %v2548 = vshrl.u32 %v2547, 7
      %v2549 = vsub.s32 %v2546, %v2548
      %v2550 = vrot.slane %v2528, %v2549
      %v2552 = vunpack.c.l.s4 1966171168
      %v2553 = vunpack.c.0.s8 %v2552
      %v2554 = vlaneseq
      %v2555 = vshrl.u32 %v2554, 7
      %v2556 = vsub.s32 %v2553, %v2555
      %v2557 = vrot.slane %v2529, %v2556
      %v2558 = vcombine.low %v2536, %v2543
      %v2559 = vcombine.low %v2550, %v2557
      %v2561 = vunpack.c.l.s4 1966171168
      %v2562 = vunpack.c.0.s8 %v2561
      %v2563 = vlaneseq
      %v2564 = vshrl.u32 %v2563, 7
      %v2565 = vsub.s32 %v2562, %v2564
      %v2566 = vrot.slane %v2558, %v2565
      %v2568 = vunpack.c.l.s4 1966171168
      %v2569 = vunpack.c.0.s8 %v2568
      %v2570 = vlaneseq
      %v2571 = vshrl.u32 %v2570, 7
      %v2572 = vsub.s32 %v2569, %v2571
      %v2573 = vrot.slane %v2559, %v2572
      %v2574 = vcombine.low %v2566, %v2573
      %v2575 = vcombine.low %v926, %v940
      %v2576 = vcombine.low %v948, %v950
      %v2577 = vcombine.low %v933, %v947
      %v2578 = vcombine.low %v949, %v974
      %v2580 = vunpack.c.l.s4 1966171168
      %v2581 = vunpack.c.0.s8 %v2580
      %v2582 = vlaneseq
      %v2583 = vshrl.u32 %v2582, 7
      %v2584 = vsub.s32 %v2581, %v2583
      %v2585 = vrot.slane %v2575, %v2584
      %v2587 = vunpack.c.l.s4 1966171168
      %v2588 = vunpack.c.0.s8 %v2587
      %v2589 = vlaneseq
      %v2590 = vshrl.u32 %v2589, 7
      %v2591 = vsub.s32 %v2588, %v2590
      %v2592 = vrot.slane %v2576, %v2591
      %v2594 = vunpack.c.l.s4 1966171168
      %v2595 = vunpack.c.0.s8 %v2594
      %v2596 = vlaneseq
      %v2597 = vshrl.u32 %v2596, 7
      %v2598 = vsub.s32 %v2595, %v2597
      %v2599 = vrot.slane %v2577, %v2598
      %v2601 = vunpack.c.l.s4 1966171168
      %v2602 = vunpack.c.0.s8 %v2601
      %v2603 = vlaneseq
      %v2604 = vshrl.u32 %v2603, 7
      %v2605 = vsub.s32 %v2602, %v2604
      %v2606 = vrot.slane %v2578, %v2605
      %v2607 = vcombine.low %v2585, %v2592
      %v2608 = vcombine.low %v2599, %v2606
      %v2610 = vunpack.c.l.s4 1966171168
      %v2611 = vunpack.c.0.s8 %v2610
      %v2612 = vlaneseq
      %v2613 = vshrl.u32 %v2612, 7
      %v2614 = vsub.s32 %v2611, %v2613
      %v2615 = vrot.slane %v2607, %v2614
      %v2617 = vunpack.c.l.s4 1966171168
      %v2618 = vunpack.c.0.s8 %v2617
      %v2619 = vlaneseq
      %v2620 = vshrl.u32 %v2619, 7
      %v2621 = vsub.s32 %v2618, %v2620
      %v2622 = vrot.slane %v2608, %v2621
      %v2623 = vcombine.low %v2615, %v2622
      %v2624 = vcombine.low %v988, %v996
      %v2625 = vcombine.low %v998, %v981
      %v2626 = vcombine.low %v995, %v997
      %v2627 = vcombine.low %v1022, %v1036
      %v2629 = vunpack.c.l.s4 1966171168
      %v2630 = vunpack.c.0.s8 %v2629
      %v2631 = vlaneseq
      %v2632 = vshrl.u32 %v2631, 7
      %v2633 = vsub.s32 %v2630, %v2632
      %v2634 = vrot.slane %v2624, %v2633
      %v2636 = vunpack.c.l.s4 1966171168
      %v2637 = vunpack.c.0.s8 %v2636
      %v2638 = vlaneseq
      %v2639 = vshrl.u32 %v2638, 7
      %v2640 = vsub.s32 %v2637, %v2639
      %v2641 = vrot.slane %v2625, %v2640
      %v2643 = vunpack.c.l.s4 1966171168
      %v2644 = vunpack.c.0.s8 %v2643
      %v2645 = vlaneseq
      %v2646 = vshrl.u32 %v2645, 7
      %v2647 = vsub.s32 %v2644, %v2646
      %v2648 = vrot.slane %v2626, %v2647
      %v2650 = vunpack.c.l.s4 1966171168
      %v2651 = vunpack.c.0.s8 %v2650
      %v2652 = vlaneseq
      %v2653 = vshrl.u32 %v2652, 7
      %v2654 = vsub.s32 %v2651, %v2653
      %v2655 = vrot.slane %v2627, %v2654
      %v2656 = vcombine.low %v2634, %v2641
      %v2657 = vcombine.low %v2648, %v2655
      %v2659 = vunpack.c.l.s4 1966171168
      %v2660 = vunpack.c.0.s8 %v2659
      %v2661 = vlaneseq
      %v2662 = vshrl.u32 %v2661, 7
      %v2663 = vsub.s32 %v2660, %v2662
      %v2664 = vrot.slane %v2656, %v2663
      %v2666 = vunpack.c.l.s4 1966171168
      %v2667 = vunpack.c.0.s8 %v2666
      %v2668 = vlaneseq
      %v2669 = vshrl.u32 %v2668, 7
      %v2670 = vsub.s32 %v2667, %v2669
      %v2671 = vrot.slane %v2657, %v2670
      %v2672 = vcombine.low %v2664, %v2671
      %v2673 = vcombine.low %v1044, %v1046
      %v2674 = vcombine.low %v1029, %v1043
      %v2675 = vcombine.low %v1045, %v1070
      %v2676 = vcombine.low %v1084, %v1092
      %v2678 = vunpack.c.l.s4 1966171168
      %v2679 = vunpack.c.0.s8 %v2678
      %v2680 = vlaneseq
      %v2681 = vshrl.u32 %v2680, 7
      %v2682 = vsub.s32 %v2679, %v2681
      %v2683 = vrot.slane %v2673, %v2682
      %v2685 = vunpack.c.l.s4 1966171168
      %v2686 = vunpack.c.0.s8 %v2685
      %v2687 = vlaneseq
      %v2688 = vshrl.u32 %v2687, 7
      %v2689 = vsub.s32 %v2686, %v2688
      %v2690 = vrot.slane %v2674, %v2689
      %v2692 = vunpack.c.l.s4 1966171168
      %v2693 = vunpack.c.0.s8 %v2692
      %v2694 = vlaneseq
      %v2695 = vshrl.u32 %v2694, 7
      %v2696 = vsub.s32 %v2693, %v2695
      %v2697 = vrot.slane %v2675, %v2696
      %v2699 = vunpack.c.l.s4 1966171168
      %v2700 = vunpack.c.0.s8 %v2699
      %v2701 = vlaneseq
      %v2702 = vshrl.u32 %v2701, 7
      %v2703 = vsub.s32 %v2700, %v2702
      %v2704 = vrot.slane %v2676, %v2703
      %v2705 = vcombine.low %v2683, %v2690
      %v2706 = vcombine.low %v2697, %v2704
      %v2708 = vunpack.c.l.s4 1966171168
      %v2709 = vunpack.c.0.s8 %v2708
      %v2710 = vlaneseq
      %v2711 = vshrl.u32 %v2710, 7
      %v2712 = vsub.s32 %v2709, %v2711
      %v2713 = vrot.slane %v2705, %v2712
      %v2715 = vunpack.c.l.s4 1966171168
      %v2716 = vunpack.c.0.s8 %v2715
      %v2717 = vlaneseq
      %v2718 = vshrl.u32 %v2717, 7
      %v2719 = vsub.s32 %v2716, %v2718
      %v2720 = vrot.slane %v2706, %v2719
      %v2721 = vcombine.low %v2713, %v2720
      %v2722 = vcombine.low %v1094, %v1077
      %v2723 = vcombine.low %v1091, %v1093
      %v2724 = vcombine.low %v1118, %v1132
      %v2725 = vcombine.low %v1140, %v1142
      %v2727 = vunpack.c.l.s4 1966171168
      %v2728 = vunpack.c.0.s8 %v2727
      %v2729 = vlaneseq
      %v2730 = vshrl.u32 %v2729, 7
      %v2731 = vsub.s32 %v2728, %v2730
      %v2732 = vrot.slane %v2722, %v2731
      %v2734 = vunpack.c.l.s4 1966171168
      %v2735 = vunpack.c.0.s8 %v2734
      %v2736 = vlaneseq
      %v2737 = vshrl.u32 %v2736, 7
      %v2738 = vsub.s32 %v2735, %v2737
      %v2739 = vrot.slane %v2723, %v2738
      %v2741 = vunpack.c.l.s4 1966171168
      %v2742 = vunpack.c.0.s8 %v2741
      %v2743 = vlaneseq
      %v2744 = vshrl.u32 %v2743, 7
      %v2745 = vsub.s32 %v2742, %v2744
      %v2746 = vrot.slane %v2724, %v2745
      %v2748 = vunpack.c.l.s4 1966171168
      %v2749 = vunpack.c.0.s8 %v2748
      %v2750 = vlaneseq
      %v2751 = vshrl.u32 %v2750, 7
      %v2752 = vsub.s32 %v2749, %v2751
      %v2753 = vrot.slane %v2725, %v2752
      %v2754 = vcombine.low %v2732, %v2739
      %v2755 = vcombine.low %v2746, %v2753
      %v2757 = vunpack.c.l.s4 1966171168
      %v2758 = vunpack.c.0.s8 %v2757
      %v2759 = vlaneseq
      %v2760 = vshrl.u32 %v2759, 7
      %v2761 = vsub.s32 %v2758, %v2760
      %v2762 = vrot.slane %v2754, %v2761
      %v2764 = vunpack.c.l.s4 1966171168
      %v2765 = vunpack.c.0.s8 %v2764
      %v2766 = vlaneseq
      %v2767 = vshrl.u32 %v2766, 7
      %v2768 = vsub.s32 %v2765, %v2767
      %v2769 = vrot.slane %v2755, %v2768
      %v2770 = vcombine.low %v2762, %v2769
      %v2771 = vcombine.low %v1125, %v1139
      %v2772 = vcombine.low %v1141, %v1166
      %v2773 = vcombine.low %v1180, %v1188
      %v2774 = vcombine.low %v1190, %v1173
      %v2776 = vunpack.c.l.s4 1966171168
      %v2777 = vunpack.c.0.s8 %v2776
      %v2778 = vlaneseq
      %v2779 = vshrl.u32 %v2778, 7
      %v2780 = vsub.s32 %v2777, %v2779
      %v2781 = vrot.slane %v2771, %v2780
      %v2783 = vunpack.c.l.s4 1966171168
      %v2784 = vunpack.c.0.s8 %v2783
      %v2785 = vlaneseq
      %v2786 = vshrl.u32 %v2785, 7
      %v2787 = vsub.s32 %v2784, %v2786
      %v2788 = vrot.slane %v2772, %v2787
      %v2790 = vunpack.c.l.s4 1966171168
      %v2791 = vunpack.c.0.s8 %v2790
      %v2792 = vlaneseq
      %v2793 = vshrl.u32 %v2792, 7
      %v2794 = vsub.s32 %v2791, %v2793
      %v2795 = vrot.slane %v2773, %v2794
      %v2797 = vunpack.c.l.s4 1966171168
      %v2798 = vunpack.c.0.s8 %v2797
      %v2799 = vlaneseq
      %v2800 = vshrl.u32 %v2799, 7
      %v2801 = vsub.s32 %v2798, %v2800
      %v2802 = vrot.slane %v2774, %v2801
      %v2803 = vcombine.low %v2781, %v2788
      %v2804 = vcombine.low %v2795, %v2802
      %v2806 = vunpack.c.l.s4 1966171168
      %v2807 = vunpack.c.0.s8 %v2806
      %v2808 = vlaneseq
      %v2809 = vshrl.u32 %v2808, 7
      %v2810 = vsub.s32 %v2807, %v2809
      %v2811 = vrot.slane %v2803, %v2810
      %v2813 = vunpack.c.l.s4 1966171168
      %v2814 = vunpack.c.0.s8 %v2813
      %v2815 = vlaneseq
      %v2816 = vshrl.u32 %v2815, 7
      %v2817 = vsub.s32 %v2814, %v2816
      %v2818 = vrot.slane %v2804, %v2817
      %v2819 = vcombine.low %v2811, %v2818
      %v2820 = vcombine.low %v1187, %v1189
      %v2822 = vunpack.c.l.s4 1966171168
      %v2823 = vunpack.c.0.s8 %v2822
      %v2824 = vlaneseq
      %v2825 = vshrl.u32 %v2824, 7
      %v2826 = vsub.s32 %v2823, %v2825
      %v2827 = vrot.slane %v2820, %v2826
      %v2829 = vunpack.c.l.s4 1966171168
      %v2830 = vunpack.c.0.s8 %v2829
      %v2831 = vlaneseq
      %v2832 = vshrl.u32 %v2831, 7
      %v2833 = vsub.s32 %v2830, %v2832
      %v2834 = vrot.slane %v2827, %v2833
      %v2835 = vcombine.low %v1228, %v1236
      %v2836 = vcombine.low %v1244, %v1252
      %v2837 = vcombine.low %v1260, %v1268
      %v2838 = vcombine.low %v1276, %v1285
      %v2840 = vunpack.c.l.s4 1966171168
      %v2841 = vunpack.c.0.s8 %v2840
      %v2842 = vlaneseq
      %v2843 = vshrl.u32 %v2842, 7
      %v2844 = vsub.s32 %v2841, %v2843
      %v2845 = vrot.slane %v2835, %v2844
      %v2847 = vunpack.c.l.s4 1966171168
      %v2848 = vunpack.c.0.s8 %v2847
      %v2849 = vlaneseq
      %v2850 = vshrl.u32 %v2849, 7
      %v2851 = vsub.s32 %v2848, %v2850
      %v2852 = vrot.slane %v2836, %v2851
      %v2854 = vunpack.c.l.s4 1966171168
      %v2855 = vunpack.c.0.s8 %v2854
      %v2856 = vlaneseq
      %v2857 = vshrl.u32 %v2856, 7
      %v2858 = vsub.s32 %v2855, %v2857
      %v2859 = vrot.slane %v2837, %v2858
      %v2861 = vunpack.c.l.s4 1966171168
      %v2862 = vunpack.c.0.s8 %v2861
      %v2863 = vlaneseq
      %v2864 = vshrl.u32 %v2863, 7
      %v2865 = vsub.s32 %v2862, %v2864
      %v2866 = vrot.slane %v2838, %v2865
      %v2867 = vcombine.low %v2845, %v2852
      %v2868 = vcombine.low %v2859, %v2866
      %v2870 = vunpack.c.l.s4 1966171168
      %v2871 = vunpack.c.0.s8 %v2870
      %v2872 = vlaneseq
      %v2873 = vshrl.u32 %v2872, 7
      %v2874 = vsub.s32 %v2871, %v2873
      %v2875 = vrot.slane %v2867, %v2874
      %v2877 = vunpack.c.l.s4 1966171168
      %v2878 = vunpack.c.0.s8 %v2877
      %v2879 = vlaneseq
      %v2880 = vshrl.u32 %v2879, 7
      %v2881 = vsub.s32 %v2878, %v2880
      %v2882 = vrot.slane %v2868, %v2881
      %v2883 = vcombine.low %v2875, %v2882
      %v2884 = vcombine.low %v1293, %v1301
      %v2885 = vcombine.low %v1309, %v1317
      %v2886 = vcombine.low %v1325, %v1333
      %v2887 = vcombine.low %v1342, %v1350
      %v2889 = vunpack.c.l.s4 1966171168
      %v2890 = vunpack.c.0.s8 %v2889
      %v2891 = vlaneseq
      %v2892 = vshrl.u32 %v2891, 7
      %v2893 = vsub.s32 %v2890, %v2892
      %v2894 = vrot.slane %v2884, %v2893
      %v2896 = vunpack.c.l.s4 1966171168
      %v2897 = vunpack.c.0.s8 %v2896
      %v2898 = vlaneseq
      %v2899 = vshrl.u32 %v2898, 7
      %v2900 = vsub.s32 %v2897, %v2899
      %v2901 = vrot.slane %v2885, %v2900
      %v2903 = vunpack.c.l.s4 1966171168
      %v2904 = vunpack.c.0.s8 %v2903
      %v2905 = vlaneseq
      %v2906 = vshrl.u32 %v2905, 7
      %v2907 = vsub.s32 %v2904, %v2906
      %v2908 = vrot.slane %v2886, %v2907
      %v2910 = vunpack.c.l.s4 1966171168
      %v2911 = vunpack.c.0.s8 %v2910
      %v2912 = vlaneseq
      %v2913 = vshrl.u32 %v2912, 7
      %v2914 = vsub.s32 %v2911, %v2913
      %v2915 = vrot.slane %v2887, %v2914
      %v2916 = vcombine.low %v2894, %v2901
      %v2917 = vcombine.low %v2908, %v2915
      %v2919 = vunpack.c.l.s4 1966171168
      %v2920 = vunpack.c.0.s8 %v2919
      %v2921 = vlaneseq
      %v2922 = vshrl.u32 %v2921, 7
      %v2923 = vsub.s32 %v2920, %v2922
      %v2924 = vrot.slane %v2916, %v2923
      %v2926 = vunpack.c.l.s4 1966171168
      %v2927 = vunpack.c.0.s8 %v2926
      %v2928 = vlaneseq
      %v2929 = vshrl.u32 %v2928, 7
      %v2930 = vsub.s32 %v2927, %v2929
      %v2931 = vrot.slane %v2917, %v2930
      %v2932 = vcombine.low %v2924, %v2931
      %v2933 = vcombine.low %v1358, %v1366
      %v2934 = vcombine.low %v1374, %v1382
      %v2935 = vcombine.low %v1390, %v1399
      %v2936 = vcombine.low %v1407, %v1415
      %v2938 = vunpack.c.l.s4 1966171168
      %v2939 = vunpack.c.0.s8 %v2938
      %v2940 = vlaneseq
      %v2941 = vshrl.u32 %v2940, 7
      %v2942 = vsub.s32 %v2939, %v2941
      %v2943 = vrot.slane %v2933, %v2942
      %v2945 = vunpack.c.l.s4 1966171168
      %v2946 = vunpack.c.0.s8 %v2945
      %v2947 = vlaneseq
      %v2948 = vshrl.u32 %v2947, 7
      %v2949 = vsub.s32 %v2946, %v2948
      %v2950 = vrot.slane %v2934, %v2949
      %v2952 = vunpack.c.l.s4 1966171168
      %v2953 = vunpack.c.0.s8 %v2952
      %v2954 = vlaneseq
      %v2955 = vshrl.u32 %v2954, 7
      %v2956 = vsub.s32 %v2953, %v2955
      %v2957 = vrot.slane %v2935, %v2956
      %v2959 = vunpack.c.l.s4 1966171168
      %v2960 = vunpack.c.0.s8 %v2959
      %v2961 = vlaneseq
      %v2962 = vshrl.u32 %v2961, 7
      %v2963 = vsub.s32 %v2960, %v2962
      %v2964 = vrot.slane %v2936, %v2963
      %v2965 = vcombine.low %v2943, %v2950
      %v2966 = vcombine.low %v2957, %v2964
      %v2968 = vunpack.c.l.s4 1966171168
      %v2969 = vunpack.c.0.s8 %v2968
      %v2970 = vlaneseq
      %v2971 = vshrl.u32 %v2970, 7
      %v2972 = vsub.s32 %v2969, %v2971
      %v2973 = vrot.slane %v2965, %v2972
      %v2975 = vunpack.c.l.s4 1966171168
      %v2976 = vunpack.c.0.s8 %v2975
      %v2977 = vlaneseq
      %v2978 = vshrl.u32 %v2977, 7
      %v2979 = vsub.s32 %v2976, %v2978
      %v2980 = vrot.slane %v2966, %v2979
      %v2981 = vcombine.low %v2973, %v2980
      %v2982 = vcombine.low %v1423, %v1431
      %v2983 = vcombine.low %v1439, %v1447
      %v2984 = vcombine.low %v1456, %v1464
      %v2985 = vcombine.low %v1472, %v1480
      %v2987 = vunpack.c.l.s4 1966171168
      %v2988 = vunpack.c.0.s8 %v2987
      %v2989 = vlaneseq
      %v2990 = vshrl.u32 %v2989, 7
      %v2991 = vsub.s32 %v2988, %v2990
      %v2992 = vrot.slane %v2982, %v2991
      %v2994 = vunpack.c.l.s4 1966171168
      %v2995 = vunpack.c.0.s8 %v2994
      %v2996 = vlaneseq
      %v2997 = vshrl.u32 %v2996, 7
      %v2998 = vsub.s32 %v2995, %v2997
      %v2999 = vrot.slane %v2983, %v2998
      %v3001 = vunpack.c.l.s4 1966171168
      %v3002 = vunpack.c.0.s8 %v3001
      %v3003 = vlaneseq
      %v3004 = vshrl.u32 %v3003, 7
      %v3005 = vsub.s32 %v3002, %v3004
      %v3006 = vrot.slane %v2984, %v3005
      %v3008 = vunpack.c.l.s4 1966171168
      %v3009 = vunpack.c.0.s8 %v3008
      %v3010 = vlaneseq
      %v3011 = vshrl.u32 %v3010, 7
      %v3012 = vsub.s32 %v3009, %v3011
      %v3013 = vrot.slane %v2985, %v3012
      %v3014 = vcombine.low %v2992, %v2999
      %v3015 = vcombine.low %v3006, %v3013
      %v3017 = vunpack.c.l.s4 1966171168
      %v3018 = vunpack.c.0.s8 %v3017
      %v3019 = vlaneseq
      %v3020 = vshrl.u32 %v3019, 7
      %v3021 = vsub.s32 %v3018, %v3020
      %v3022 = vrot.slane %v3014, %v3021
      %v3024 = vunpack.c.l.s4 1966171168
      %v3025 = vunpack.c.0.s8 %v3024
      %v3026 = vlaneseq
      %v3027 = vshrl.u32 %v3026, 7
      %v3028 = vsub.s32 %v3025, %v3027
      %v3029 = vrot.slane %v3015, %v3028
      %v3030 = vcombine.low %v3022, %v3029
      %v3031 = vcombine.low %v1488, %v1496
      %v3032 = vcombine.low %v1504, %v1513
      %v3033 = vcombine.low %v1521, %v1529
      %v3034 = vcombine.low %v1537, %v1545
      %v3036 = vunpack.c.l.s4 1966171168
      %v3037 = vunpack.c.0.s8 %v3036
      %v3038 = vlaneseq
      %v3039 = vshrl.u32 %v3038, 7
      %v3040 = vsub.s32 %v3037, %v3039
      %v3041 = vrot.slane %v3031, %v3040
      %v3043 = vunpack.c.l.s4 1966171168
      %v3044 = vunpack.c.0.s8 %v3043
      %v3045 = vlaneseq
      %v3046 = vshrl.u32 %v3045, 7
      %v3047 = vsub.s32 %v3044, %v3046
      %v3048 = vrot.slane %v3032, %v3047
      %v3050 = vunpack.c.l.s4 1966171168
      %v3051 = vunpack.c.0.s8 %v3050
      %v3052 = vlaneseq
      %v3053 = vshrl.u32 %v3052, 7
      %v3054 = vsub.s32 %v3051, %v3053
      %v3055 = vrot.slane %v3033, %v3054
      %v3057 = vunpack.c.l.s4 1966171168
      %v3058 = vunpack.c.0.s8 %v3057
      %v3059 = vlaneseq
      %v3060 = vshrl.u32 %v3059, 7
      %v3061 = vsub.s32 %v3058, %v3060
      %v3062 = vrot.slane %v3034, %v3061
      %v3063 = vcombine.low %v3041, %v3048
      %v3064 = vcombine.low %v3055, %v3062
      %v3066 = vunpack.c.l.s4 1966171168
      %v3067 = vunpack.c.0.s8 %v3066
      %v3068 = vlaneseq
      %v3069 = vshrl.u32 %v3068, 7
      %v3070 = vsub.s32 %v3067, %v3069
      %v3071 = vrot.slane %v3063, %v3070
      %v3073 = vunpack.c.l.s4 1966171168
      %v3074 = vunpack.c.0.s8 %v3073
      %v3075 = vlaneseq
      %v3076 = vshrl.u32 %v3075, 7
      %v3077 = vsub.s32 %v3074, %v3076
      %v3078 = vrot.slane %v3064, %v3077
      %v3079 = vcombine.low %v3071, %v3078
      %v3080 = vcombine.low %v1553, %v1561
      %v3081 = vcombine.low %v1570, %v1578
      %v3082 = vcombine.low %v1586, %v1594
      %v3083 = vcombine.low %v1602, %v1610
      %v3085 = vunpack.c.l.s4 1966171168
      %v3086 = vunpack.c.0.s8 %v3085
      %v3087 = vlaneseq
      %v3088 = vshrl.u32 %v3087, 7
      %v3089 = vsub.s32 %v3086, %v3088
      %v3090 = vrot.slane %v3080, %v3089
      %v3092 = vunpack.c.l.s4 1966171168
      %v3093 = vunpack.c.0.s8 %v3092
      %v3094 = vlaneseq
      %v3095 = vshrl.u32 %v3094, 7
      %v3096 = vsub.s32 %v3093, %v3095
      %v3097 = vrot.slane %v3081, %v3096
      %v3099 = vunpack.c.l.s4 1966171168
      %v3100 = vunpack.c.0.s8 %v3099
      %v3101 = vlaneseq
      %v3102 = vshrl.u32 %v3101, 7
      %v3103 = vsub.s32 %v3100, %v3102
      %v3104 = vrot.slane %v3082, %v3103
      %v3106 = vunpack.c.l.s4 1966171168
      %v3107 = vunpack.c.0.s8 %v3106
      %v3108 = vlaneseq
      %v3109 = vshrl.u32 %v3108, 7
      %v3110 = vsub.s32 %v3107, %v3109
      %v3111 = vrot.slane %v3083, %v3110
      %v3112 = vcombine.low %v3090, %v3097
      %v3113 = vcombine.low %v3104, %v3111
      %v3115 = vunpack.c.l.s4 1966171168
      %v3116 = vunpack.c.0.s8 %v3115
      %v3117 = vlaneseq
      %v3118 = vshrl.u32 %v3117, 7
      %v3119 = vsub.s32 %v3116, %v3118
      %v3120 = vrot.slane %v3112, %v3119
      %v3122 = vunpack.c.l.s4 1966171168
      %v3123 = vunpack.c.0.s8 %v3122
      %v3124 = vlaneseq
      %v3125 = vshrl.u32 %v3124, 7
      %v3126 = vsub.s32 %v3123, %v3125
      %v3127 = vrot.slane %v3113, %v3126
      %v3128 = vcombine.low %v3120, %v3127
      %v3129 = vcombine.low %v1618, %v1627
      %v3130 = vcombine.low %v1635, %v1643
      %v3131 = vcombine.low %v1651, %v1659
      %v3132 = vcombine.low %v1667, %v1675
      %v3134 = vunpack.c.l.s4 1966171168
      %v3135 = vunpack.c.0.s8 %v3134
      %v3136 = vlaneseq
      %v3137 = vshrl.u32 %v3136, 7
      %v3138 = vsub.s32 %v3135, %v3137
      %v3139 = vrot.slane %v3129, %v3138
      %v3141 = vunpack.c.l.s4 1966171168
      %v3142 = vunpack.c.0.s8 %v3141
      %v3143 = vlaneseq
      %v3144 = vshrl.u32 %v3143, 7
      %v3145 = vsub.s32 %v3142, %v3144
      %v3146 = vrot.slane %v3130, %v3145
      %v3148 = vunpack.c.l.s4 1966171168
      %v3149 = vunpack.c.0.s8 %v3148
      %v3150 = vlaneseq
      %v3151 = vshrl.u32 %v3150, 7
      %v3152 = vsub.s32 %v3149, %v3151
      %v3153 = vrot.slane %v3131, %v3152
      %v3155 = vunpack.c.l.s4 1966171168
      %v3156 = vunpack.c.0.s8 %v3155
      %v3157 = vlaneseq
      %v3158 = vshrl.u32 %v3157, 7
      %v3159 = vsub.s32 %v3156, %v3158
      %v3160 = vrot.slane %v3132, %v3159
      %v3161 = vcombine.low %v3139, %v3146
      %v3162 = vcombine.low %v3153, %v3160
      %v3164 = vunpack.c.l.s4 1966171168
      %v3165 = vunpack.c.0.s8 %v3164
      %v3166 = vlaneseq
      %v3167 = vshrl.u32 %v3166, 7
      %v3168 = vsub.s32 %v3165, %v3167
      %v3169 = vrot.slane %v3161, %v3168
      %v3171 = vunpack.c.l.s4 1966171168
      %v3172 = vunpack.c.0.s8 %v3171
      %v3173 = vlaneseq
      %v3174 = vshrl.u32 %v3173, 7
      %v3175 = vsub.s32 %v3172, %v3174
      %v3176 = vrot.slane %v3162, %v3175
      %v3177 = vcombine.low %v3169, %v3176
      %v3178 = vcombine.low %v1684, %v1692
      %v3179 = vcombine.low %v1700, %v1708
      %v3180 = vcombine.low %v1716, %v1724
      %v3181 = vcombine.low %v1732, %v1741
      %v3183 = vunpack.c.l.s4 1966171168
      %v3184 = vunpack.c.0.s8 %v3183
      %v3185 = vlaneseq
      %v3186 = vshrl.u32 %v3185, 7
      %v3187 = vsub.s32 %v3184, %v3186
      %v3188 = vrot.slane %v3178, %v3187
      %v3190 = vunpack.c.l.s4 1966171168
      %v3191 = vunpack.c.0.s8 %v3190
      %v3192 = vlaneseq
      %v3193 = vshrl.u32 %v3192, 7
      %v3194 = vsub.s32 %v3191, %v3193
      %v3195 = vrot.slane %v3179, %v3194
      %v3197 = vunpack.c.l.s4 1966171168
      %v3198 = vunpack.c.0.s8 %v3197
      %v3199 = vlaneseq
      %v3200 = vshrl.u32 %v3199, 7
      %v3201 = vsub.s32 %v3198, %v3200
      %v3202 = vrot.slane %v3180, %v3201
      %v3204 = vunpack.c.l.s4 1966171168
      %v3205 = vunpack.c.0.s8 %v3204
      %v3206 = vlaneseq
      %v3207 = vshrl.u32 %v3206, 7
      %v3208 = vsub.s32 %v3205, %v3207
      %v3209 = vrot.slane %v3181, %v3208
      %v3210 = vcombine.low %v3188, %v3195
      %v3211 = vcombine.low %v3202, %v3209
      %v3213 = vunpack.c.l.s4 1966171168
      %v3214 = vunpack.c.0.s8 %v3213
      %v3215 = vlaneseq
      %v3216 = vshrl.u32 %v3215, 7
      %v3217 = vsub.s32 %v3214, %v3216
      %v3218 = vrot.slane %v3210, %v3217
      %v3220 = vunpack.c.l.s4 1966171168
      %v3221 = vunpack.c.0.s8 %v3220
      %v3222 = vlaneseq
      %v3223 = vshrl.u32 %v3222, 7
      %v3224 = vsub.s32 %v3221, %v3223
      %v3225 = vrot.slane %v3211, %v3224
      %v3226 = vcombine.low %v3218, %v3225
      %v3227 = vcombine.low %v1749, %v1757
      %v3228 = vcombine.low %v1765, %v1773
      %v3229 = vcombine.low %v1781, %v1789
      %v3230 = vcombine.low %v1798, %v1806
      %v3232 = vunpack.c.l.s4 1966171168
      %v3233 = vunpack.c.0.s8 %v3232
      %v3234 = vlaneseq
      %v3235 = vshrl.u32 %v3234, 7
      %v3236 = vsub.s32 %v3233, %v3235
      %v3237 = vrot.slane %v3227, %v3236
      %v3239 = vunpack.c.l.s4 1966171168
      %v3240 = vunpack.c.0.s8 %v3239
      %v3241 = vlaneseq
      %v3242 = vshrl.u32 %v3241, 7
      %v3243 = vsub.s32 %v3240, %v3242
      %v3244 = vrot.slane %v3228, %v3243
      %v3246 = vunpack.c.l.s4 1966171168
      %v3247 = vunpack.c.0.s8 %v3246
      %v3248 = vlaneseq
      %v3249 = vshrl.u32 %v3248, 7
      %v3250 = vsub.s32 %v3247, %v3249
      %v3251 = vrot.slane %v3229, %v3250
      %v3253 = vunpack.c.l.s4 1966171168
      %v3254 = vunpack.c.0.s8 %v3253
      %v3255 = vlaneseq
      %v3256 = vshrl.u32 %v3255, 7
      %v3257 = vsub.s32 %v3254, %v3256
      %v3258 = vrot.slane %v3230, %v3257
      %v3259 = vcombine.low %v3237, %v3244
      %v3260 = vcombine.low %v3251, %v3258
      %v3262 = vunpack.c.l.s4 1966171168
      %v3263 = vunpack.c.0.s8 %v3262
      %v3264 = vlaneseq
      %v3265 = vshrl.u32 %v3264, 7
      %v3266 = vsub.s32 %v3263, %v3265
      %v3267 = vrot.slane %v3259, %v3266
      %v3269 = vunpack.c.l.s4 1966171168
      %v3270 = vunpack.c.0.s8 %v3269
      %v3271 = vlaneseq
      %v3272 = vshrl.u32 %v3271, 7
      %v3273 = vsub.s32 %v3270, %v3272
      %v3274 = vrot.slane %v3260, %v3273
      %v3275 = vcombine.low %v3267, %v3274
      %v3276 = vcombine.low %v1814, %v1822
      %v3277 = vcombine.low %v1830, %v1838
      %v3278 = vcombine.low %v1846, %v1855
      %v3279 = vcombine.low %v1863, %v1871
      %v3281 = vunpack.c.l.s4 1966171168
      %v3282 = vunpack.c.0.s8 %v3281
      %v3283 = vlaneseq
      %v3284 = vshrl.u32 %v3283, 7
      %v3285 = vsub.s32 %v3282, %v3284
      %v3286 = vrot.slane %v3276, %v3285
      %v3288 = vunpack.c.l.s4 1966171168
      %v3289 = vunpack.c.0.s8 %v3288
      %v3290 = vlaneseq
      %v3291 = vshrl.u32 %v3290, 7
      %v3292 = vsub.s32 %v3289, %v3291
      %v3293 = vrot.slane %v3277, %v3292
      %v3295 = vunpack.c.l.s4 1966171168
      %v3296 = vunpack.c.0.s8 %v3295
      %v3297 = vlaneseq
      %v3298 = vshrl.u32 %v3297, 7
      %v3299 = vsub.s32 %v3296, %v3298
      %v3300 = vrot.slane %v3278, %v3299
      %v3302 = vunpack.c.l.s4 1966171168
      %v3303 = vunpack.c.0.s8 %v3302
      %v3304 = vlaneseq
      %v3305 = vshrl.u32 %v3304, 7
      %v3306 = vsub.s32 %v3303, %v3305
      %v3307 = vrot.slane %v3279, %v3306
      %v3308 = vcombine.low %v3286, %v3293
      %v3309 = vcombine.low %v3300, %v3307
      %v3311 = vunpack.c.l.s4 1966171168
      %v3312 = vunpack.c.0.s8 %v3311
      %v3313 = vlaneseq
      %v3314 = vshrl.u32 %v3313, 7
      %v3315 = vsub.s32 %v3312, %v3314
      %v3316 = vrot.slane %v3308, %v3315
      %v3318 = vunpack.c.l.s4 1966171168
      %v3319 = vunpack.c.0.s8 %v3318
      %v3320 = vlaneseq
      %v3321 = vshrl.u32 %v3320, 7
      %v3322 = vsub.s32 %v3319, %v3321
      %v3323 = vrot.slane %v3309, %v3322
      %v3324 = vcombine.low %v3316, %v3323
      %v3325 = vcombine.low %v1879, %v1887
      %v3326 = vcombine.low %v1895, %v1903
      %v3327 = vcombine.low %v1912, %v1920
      %v3328 = vcombine.low %v1928, %v1936
      %v3330 = vunpack.c.l.s4 1966171168
      %v3331 = vunpack.c.0.s8 %v3330
      %v3332 = vlaneseq
      %v3333 = vshrl.u32 %v3332, 7
      %v3334 = vsub.s32 %v3331, %v3333
      %v3335 = vrot.slane %v3325, %v3334
      %v3337 = vunpack.c.l.s4 1966171168
      %v3338 = vunpack.c.0.s8 %v3337
      %v3339 = vlaneseq
      %v3340 = vshrl.u32 %v3339, 7
      %v3341 = vsub.s32 %v3338, %v3340
      %v3342 = vrot.slane %v3326, %v3341
      %v3344 = vunpack.c.l.s4 1966171168
      %v3345 = vunpack.c.0.s8 %v3344
      %v3346 = vlaneseq
      %v3347 = vshrl.u32 %v3346, 7
      %v3348 = vsub.s32 %v3345, %v3347
      %v3349 = vrot.slane %v3327, %v3348
      %v3351 = vunpack.c.l.s4 1966171168
      %v3352 = vunpack.c.0.s8 %v3351
      %v3353 = vlaneseq
      %v3354 = vshrl.u32 %v3353, 7
      %v3355 = vsub.s32 %v3352, %v3354
      %v3356 = vrot.slane %v3328, %v3355
      %v3357 = vcombine.low %v3335, %v3342
      %v3358 = vcombine.low %v3349, %v3356
      %v3360 = vunpack.c.l.s4 1966171168
      %v3361 = vunpack.c.0.s8 %v3360
      %v3362 = vlaneseq
      %v3363 = vshrl.u32 %v3362, 7
      %v3364 = vsub.s32 %v3361, %v3363
      %v3365 = vrot.slane %v3357, %v3364
      %v3367 = vunpack.c.l.s4 1966171168
      %v3368 = vunpack.c.0.s8 %v3367
      %v3369 = vlaneseq
      %v3370 = vshrl.u32 %v3369, 7
      %v3371 = vsub.s32 %v3368, %v3370
      %v3372 = vrot.slane %v3358, %v3371
      %v3373 = vcombine.low %v3365, %v3372
      %v3374 = vcombine.low %v1944, %v1952
      %v3375 = vcombine.low %v1960, %v1969
      %v3376 = vcombine.low %v1977, %v1985
      %v3377 = vcombine.low %v1993, %v2001
      %v3379 = vunpack.c.l.s4 1966171168
      %v3380 = vunpack.c.0.s8 %v3379
      %v3381 = vlaneseq
      %v3382 = vshrl.u32 %v3381, 7
      %v3383 = vsub.s32 %v3380, %v3382
      %v3384 = vrot.slane %v3374, %v3383
      %v3386 = vunpack.c.l.s4 1966171168
      %v3387 = vunpack.c.0.s8 %v3386
      %v3388 = vlaneseq
      %v3389 = vshrl.u32 %v3388, 7
      %v3390 = vsub.s32 %v3387, %v3389
      %v3391 = vrot.slane %v3375, %v3390
      %v3393 = vunpack.c.l.s4 1966171168
      %v3394 = vunpack.c.0.s8 %v3393
      %v3395 = vlaneseq
      %v3396 = vshrl.u32 %v3395, 7
      %v3397 = vsub.s32 %v3394, %v3396
      %v3398 = vrot.slane %v3376, %v3397
      %v3400 = vunpack.c.l.s4 1966171168
      %v3401 = vunpack.c.0.s8 %v3400
      %v3402 = vlaneseq
      %v3403 = vshrl.u32 %v3402, 7
      %v3404 = vsub.s32 %v3401, %v3403
      %v3405 = vrot.slane %v3377, %v3404
      %v3406 = vcombine.low %v3384, %v3391
      %v3407 = vcombine.low %v3398, %v3405
      %v3409 = vunpack.c.l.s4 1966171168
      %v3410 = vunpack.c.0.s8 %v3409
      %v3411 = vlaneseq
      %v3412 = vshrl.u32 %v3411, 7
      %v3413 = vsub.s32 %v3410, %v3412
      %v3414 = vrot.slane %v3406, %v3413
      %v3416 = vunpack.c.l.s4 1966171168
      %v3417 = vunpack.c.0.s8 %v3416
      %v3418 = vlaneseq
      %v3419 = vshrl.u32 %v3418, 7
      %v3420 = vsub.s32 %v3417, %v3419
      %v3421 = vrot.slane %v3407, %v3420
      %v3422 = vcombine.low %v3414, %v3421
      %v3423 = vcombine.low %v2009, %v2017
      %v3425 = vunpack.c.l.s4 1966171168
      %v3426 = vunpack.c.0.s8 %v3425
      %v3427 = vlaneseq
      %v3428 = vshrl.u32 %v3427, 7
      %v3429 = vsub.s32 %v3426, %v3428
      %v3430 = vrot.slane %v3423, %v3429
      %v3432 = vunpack.c.l.s4 1966171168
      %v3433 = vunpack.c.0.s8 %v3432
      %v3434 = vlaneseq
      %v3435 = vshrl.u32 %v3434, 7
      %v3436 = vsub.s32 %v3433, %v3435
      %v3437 = vrot.slane %v3430, %v3436
      %3438 = vrot.lane.b32.xlu0 %v2883, 4
      %v3439 = vpop.permute.xlu0 %3438
      %3440 = vrot.lane.b32.xlu0 %v2932, 4
      %v3441 = vpop.permute.xlu0 %3440
      %3442 = vrot.lane.b32.xlu0 %v2981, 4
      %v3443 = vpop.permute.xlu0 %3442
      %3444 = vrot.lane.b32.xlu0 %v3030, 4
      %v3445 = vpop.permute.xlu0 %3444
      %3446 = vrot.lane.b32.xlu0 %v3079, 4
      %v3447 = vpop.permute.xlu0 %3446
      %3448 = vrot.lane.b32.xlu0 %v3128, 4
      %v3449 = vpop.permute.xlu0 %3448
      %3450 = vrot.lane.b32.xlu0 %v3177, 4
      %v3451 = vpop.permute.xlu0 %3450
      %3452 = vrot.lane.b32.xlu0 %v3226, 4
      %v3453 = vpop.permute.xlu0 %3452
      %3454 = vrot.lane.b32.xlu0 %v3275, 4
      %v3455 = vpop.permute.xlu0 %3454
      %3456 = vrot.lane.b32.xlu0 %v3324, 4
      %v3457 = vpop.permute.xlu0 %3456
      %3458 = vrot.lane.b32.xlu0 %v3373, 4
      %v3459 = vpop.permute.xlu0 %3458
      %3460 = vrot.lane.b32.xlu0 %v3422, 4
      %v3461 = vpop.permute.xlu0 %3460
      %3462 = vrot.lane.b32.xlu0 %v3437, 4
      %v3463 = vpop.permute.xlu0 %3462
      %v3464 = vcombine.low %v556, %v564
      %v3465 = vcombine.low %v566, %v549
      %v3466 = vcombine.low %v563, %v565
      %v3467 = vcombine.low %v1191, %v604
      %v3469 = vunpack.c.l.s4 1966171168
      %v3470 = vunpack.c.0.s8 %v3469
      %v3471 = vlaneseq
      %v3472 = vshrl.u32 %v3471, 7
      %v3473 = vsub.s32 %v3470, %v3472
      %v3474 = vrot.slane %v3464, %v3473
      %v3476 = vunpack.c.l.s4 1966171168
      %v3477 = vunpack.c.0.s8 %v3476
      %v3478 = vlaneseq
      %v3479 = vshrl.u32 %v3478, 7
      %v3480 = vsub.s32 %v3477, %v3479
      %v3481 = vrot.slane %v3465, %v3480
      %v3483 = vunpack.c.l.s4 1966171168
      %v3484 = vunpack.c.0.s8 %v3483
      %v3485 = vlaneseq
      %v3486 = vshrl.u32 %v3485, 7
      %v3487 = vsub.s32 %v3484, %v3486
      %v3488 = vrot.slane %v3466, %v3487
      %v3490 = vunpack.c.l.s4 1966171168
      %v3491 = vunpack.c.0.s8 %v3490
      %v3492 = vlaneseq
      %v3493 = vshrl.u32 %v3492, 7
      %v3494 = vsub.s32 %v3491, %v3493
      %v3495 = vrot.slane %v3467, %v3494
      %v3496 = vcombine.low %v3474, %v3481
      %v3497 = vcombine.low %v3488, %v3495
      %v3499 = vunpack.c.l.s4 1966171168
      %v3500 = vunpack.c.0.s8 %v3499
      %v3501 = vlaneseq
      %v3502 = vshrl.u32 %v3501, 7
      %v3503 = vsub.s32 %v3500, %v3502
      %v3504 = vrot.slane %v3496, %v3503
      %v3506 = vunpack.c.l.s4 1966171168
      %v3507 = vunpack.c.0.s8 %v3506
      %v3508 = vlaneseq
      %v3509 = vshrl.u32 %v3508, 7
      %v3510 = vsub.s32 %v3507, %v3509
      %v3511 = vrot.slane %v3497, %v3510
      %v3512 = vcombine.low %v3504, %v3511
      %v3513 = vcombine.low %v612, %v614
      %v3514 = vcombine.low %v597, %v611
      %v3515 = vcombine.low %v613, %v1192
      %v3516 = vcombine.low %v652, %v660
      %v3518 = vunpack.c.l.s4 1966171168
      %v3519 = vunpack.c.0.s8 %v3518
      %v3520 = vlaneseq
      %v3521 = vshrl.u32 %v3520, 7
      %v3522 = vsub.s32 %v3519, %v3521
      %v3523 = vrot.slane %v3513, %v3522
      %v3525 = vunpack.c.l.s4 1966171168
      %v3526 = vunpack.c.0.s8 %v3525
      %v3527 = vlaneseq
      %v3528 = vshrl.u32 %v3527, 7
      %v3529 = vsub.s32 %v3526, %v3528
      %v3530 = vrot.slane %v3514, %v3529
      %v3532 = vunpack.c.l.s4 1966171168
      %v3533 = vunpack.c.0.s8 %v3532
      %v3534 = vlaneseq
      %v3535 = vshrl.u32 %v3534, 7
      %v3536 = vsub.s32 %v3533, %v3535
      %v3537 = vrot.slane %v3515, %v3536
      %v3539 = vunpack.c.l.s4 1966171168
      %v3540 = vunpack.c.0.s8 %v3539
      %v3541 = vlaneseq
      %v3542 = vshrl.u32 %v3541, 7
      %v3543 = vsub.s32 %v3540, %v3542
      %v3544 = vrot.slane %v3516, %v3543
      %v3545 = vcombine.low %v3523, %v3530
      %v3546 = vcombine.low %v3537, %v3544
      %v3548 = vunpack.c.l.s4 1966171168
      %v3549 = vunpack.c.0.s8 %v3548
      %v3550 = vlaneseq
      %v3551 = vshrl.u32 %v3550, 7
      %v3552 = vsub.s32 %v3549, %v3551
      %v3553 = vrot.slane %v3545, %v3552
      %v3555 = vunpack.c.l.s4 1966171168
      %v3556 = vunpack.c.0.s8 %v3555
      %v3557 = vlaneseq
      %v3558 = vshrl.u32 %v3557, 7
      %v3559 = vsub.s32 %v3556, %v3558
      %v3560 = vrot.slane %v3546, %v3559
      %v3561 = vcombine.low %v3553, %v3560
      %v3562 = vcombine.low %v662, %v645
      %v3563 = vcombine.low %v659, %v661
      %v3564 = vcombine.low %v1193, %v700
      %v3565 = vcombine.low %v708, %v710
      %v3567 = vunpack.c.l.s4 1966171168
      %v3568 = vunpack.c.0.s8 %v3567
      %v3569 = vlaneseq
      %v3570 = vshrl.u32 %v3569, 7
      %v3571 = vsub.s32 %v3568, %v3570
      %v3572 = vrot.slane %v3562, %v3571
      %v3574 = vunpack.c.l.s4 1966171168
      %v3575 = vunpack.c.0.s8 %v3574
      %v3576 = vlaneseq
      %v3577 = vshrl.u32 %v3576, 7
      %v3578 = vsub.s32 %v3575, %v3577
      %v3579 = vrot.slane %v3563, %v3578
      %v3581 = vunpack.c.l.s4 1966171168
      %v3582 = vunpack.c.0.s8 %v3581
      %v3583 = vlaneseq
      %v3584 = vshrl.u32 %v3583, 7
      %v3585 = vsub.s32 %v3582, %v3584
      %v3586 = vrot.slane %v3564, %v3585
      %v3588 = vunpack.c.l.s4 1966171168
      %v3589 = vunpack.c.0.s8 %v3588
      %v3590 = vlaneseq
      %v3591 = vshrl.u32 %v3590, 7
      %v3592 = vsub.s32 %v3589, %v3591
      %v3593 = vrot.slane %v3565, %v3592
      %v3594 = vcombine.low %v3572, %v3579
      %v3595 = vcombine.low %v3586, %v3593
      %v3597 = vunpack.c.l.s4 1966171168
      %v3598 = vunpack.c.0.s8 %v3597
      %v3599 = vlaneseq
      %v3600 = vshrl.u32 %v3599, 7
      %v3601 = vsub.s32 %v3598, %v3600
      %v3602 = vrot.slane %v3594, %v3601
      %v3604 = vunpack.c.l.s4 1966171168
      %v3605 = vunpack.c.0.s8 %v3604
      %v3606 = vlaneseq
      %v3607 = vshrl.u32 %v3606, 7
      %v3608 = vsub.s32 %v3605, %v3607
      %v3609 = vrot.slane %v3595, %v3608
      %v3610 = vcombine.low %v3602, %v3609
      %v3611 = vcombine.low %v693, %v707
      %v3612 = vcombine.low %v709, %v1194
      %v3613 = vcombine.low %v748, %v756
      %v3614 = vcombine.low %v758, %v741
      %v3616 = vunpack.c.l.s4 1966171168
      %v3617 = vunpack.c.0.s8 %v3616
      %v3618 = vlaneseq
      %v3619 = vshrl.u32 %v3618, 7
      %v3620 = vsub.s32 %v3617, %v3619
      %v3621 = vrot.slane %v3611, %v3620
      %v3623 = vunpack.c.l.s4 1966171168
      %v3624 = vunpack.c.0.s8 %v3623
      %v3625 = vlaneseq
      %v3626 = vshrl.u32 %v3625, 7
      %v3627 = vsub.s32 %v3624, %v3626
      %v3628 = vrot.slane %v3612, %v3627
      %v3630 = vunpack.c.l.s4 1966171168
      %v3631 = vunpack.c.0.s8 %v3630
      %v3632 = vlaneseq
      %v3633 = vshrl.u32 %v3632, 7
      %v3634 = vsub.s32 %v3631, %v3633
      %v3635 = vrot.slane %v3613, %v3634
      %v3637 = vunpack.c.l.s4 1966171168
      %v3638 = vunpack.c.0.s8 %v3637
      %v3639 = vlaneseq
      %v3640 = vshrl.u32 %v3639, 7
      %v3641 = vsub.s32 %v3638, %v3640
      %v3642 = vrot.slane %v3614, %v3641
      %v3643 = vcombine.low %v3621, %v3628
      %v3644 = vcombine.low %v3635, %v3642
      %v3646 = vunpack.c.l.s4 1966171168
      %v3647 = vunpack.c.0.s8 %v3646
      %v3648 = vlaneseq
      %v3649 = vshrl.u32 %v3648, 7
      %v3650 = vsub.s32 %v3647, %v3649
      %v3651 = vrot.slane %v3643, %v3650
      %v3653 = vunpack.c.l.s4 1966171168
      %v3654 = vunpack.c.0.s8 %v3653
      %v3655 = vlaneseq
      %v3656 = vshrl.u32 %v3655, 7
      %v3657 = vsub.s32 %v3654, %v3656
      %v3658 = vrot.slane %v3644, %v3657
      %v3659 = vcombine.low %v3651, %v3658
      %v3660 = vcombine.low %v755, %v757
      %v3661 = vcombine.low %v1195, %v796
      %v3662 = vcombine.low %v804, %v806
      %v3663 = vcombine.low %v789, %v803
      %v3665 = vunpack.c.l.s4 1966171168
      %v3666 = vunpack.c.0.s8 %v3665
      %v3667 = vlaneseq
      %v3668 = vshrl.u32 %v3667, 7
      %v3669 = vsub.s32 %v3666, %v3668
      %v3670 = vrot.slane %v3660, %v3669
      %v3672 = vunpack.c.l.s4 1966171168
      %v3673 = vunpack.c.0.s8 %v3672
      %v3674 = vlaneseq
      %v3675 = vshrl.u32 %v3674, 7
      %v3676 = vsub.s32 %v3673, %v3675
      %v3677 = vrot.slane %v3661, %v3676
      %v3679 = vunpack.c.l.s4 1966171168
      %v3680 = vunpack.c.0.s8 %v3679
      %v3681 = vlaneseq
      %v3682 = vshrl.u32 %v3681, 7
      %v3683 = vsub.s32 %v3680, %v3682
      %v3684 = vrot.slane %v3662, %v3683
      %v3686 = vunpack.c.l.s4 1966171168
      %v3687 = vunpack.c.0.s8 %v3686
      %v3688 = vlaneseq
      %v3689 = vshrl.u32 %v3688, 7
      %v3690 = vsub.s32 %v3687, %v3689
      %v3691 = vrot.slane %v3663, %v3690
      %v3692 = vcombine.low %v3670, %v3677
      %v3693 = vcombine.low %v3684, %v3691
      %v3695 = vunpack.c.l.s4 1966171168
      %v3696 = vunpack.c.0.s8 %v3695
      %v3697 = vlaneseq
      %v3698 = vshrl.u32 %v3697, 7
      %v3699 = vsub.s32 %v3696, %v3698
      %v3700 = vrot.slane %v3692, %v3699
      %v3702 = vunpack.c.l.s4 1966171168
      %v3703 = vunpack.c.0.s8 %v3702
      %v3704 = vlaneseq
      %v3705 = vshrl.u32 %v3704, 7
      %v3706 = vsub.s32 %v3703, %v3705
      %v3707 = vrot.slane %v3693, %v3706
      %v3708 = vcombine.low %v3700, %v3707
      %v3709 = vcombine.low %v805, %v1196
      %v3710 = vcombine.low %v844, %v852
      %v3711 = vcombine.low %v854, %v837
      %v3712 = vcombine.low %v851, %v853
      %v3714 = vunpack.c.l.s4 1966171168
      %v3715 = vunpack.c.0.s8 %v3714
      %v3716 = vlaneseq
      %v3717 = vshrl.u32 %v3716, 7
      %v3718 = vsub.s32 %v3715, %v3717
      %v3719 = vrot.slane %v3709, %v3718
      %v3721 = vunpack.c.l.s4 1966171168
      %v3722 = vunpack.c.0.s8 %v3721
      %v3723 = vlaneseq
      %v3724 = vshrl.u32 %v3723, 7
      %v3725 = vsub.s32 %v3722, %v3724
      %v3726 = vrot.slane %v3710, %v3725
      %v3728 = vunpack.c.l.s4 1966171168
      %v3729 = vunpack.c.0.s8 %v3728
      %v3730 = vlaneseq
      %v3731 = vshrl.u32 %v3730, 7
      %v3732 = vsub.s32 %v3729, %v3731
      %v3733 = vrot.slane %v3711, %v3732
      %v3735 = vunpack.c.l.s4 1966171168
      %v3736 = vunpack.c.0.s8 %v3735
      %v3737 = vlaneseq
      %v3738 = vshrl.u32 %v3737, 7
      %v3739 = vsub.s32 %v3736, %v3738
      %v3740 = vrot.slane %v3712, %v3739
      %v3741 = vcombine.low %v3719, %v3726
      %v3742 = vcombine.low %v3733, %v3740
      %v3744 = vunpack.c.l.s4 1966171168
      %v3745 = vunpack.c.0.s8 %v3744
      %v3746 = vlaneseq
      %v3747 = vshrl.u32 %v3746, 7
      %v3748 = vsub.s32 %v3745, %v3747
      %v3749 = vrot.slane %v3741, %v3748
      %v3751 = vunpack.c.l.s4 1966171168
      %v3752 = vunpack.c.0.s8 %v3751
      %v3753 = vlaneseq
      %v3754 = vshrl.u32 %v3753, 7
      %v3755 = vsub.s32 %v3752, %v3754
      %v3756 = vrot.slane %v3742, %v3755
      %v3757 = vcombine.low %v3749, %v3756
      %v3758 = vcombine.low %v1197, %v892
      %v3759 = vcombine.low %v900, %v902
      %v3760 = vcombine.low %v885, %v899
      %v3761 = vcombine.low %v901, %v1198
      %v3763 = vunpack.c.l.s4 1966171168
      %v3764 = vunpack.c.0.s8 %v3763
      %v3765 = vlaneseq
      %v3766 = vshrl.u32 %v3765, 7
      %v3767 = vsub.s32 %v3764, %v3766
      %v3768 = vrot.slane %v3758, %v3767
      %v3770 = vunpack.c.l.s4 1966171168
      %v3771 = vunpack.c.0.s8 %v3770
      %v3772 = vlaneseq
      %v3773 = vshrl.u32 %v3772, 7
      %v3774 = vsub.s32 %v3771, %v3773
      %v3775 = vrot.slane %v3759, %v3774
      %v3777 = vunpack.c.l.s4 1966171168
      %v3778 = vunpack.c.0.s8 %v3777
      %v3779 = vlaneseq
      %v3780 = vshrl.u32 %v3779, 7
      %v3781 = vsub.s32 %v3778, %v3780
      %v3782 = vrot.slane %v3760, %v3781
      %v3784 = vunpack.c.l.s4 1966171168
      %v3785 = vunpack.c.0.s8 %v3784
      %v3786 = vlaneseq
      %v3787 = vshrl.u32 %v3786, 7
      %v3788 = vsub.s32 %v3785, %v3787
      %v3789 = vrot.slane %v3761, %v3788
      %v3790 = vcombine.low %v3768, %v3775
      %v3791 = vcombine.low %v3782, %v3789
      %v3793 = vunpack.c.l.s4 1966171168
      %v3794 = vunpack.c.0.s8 %v3793
      %v3795 = vlaneseq
      %v3796 = vshrl.u32 %v3795, 7
      %v3797 = vsub.s32 %v3794, %v3796
      %v3798 = vrot.slane %v3790, %v3797
      %v3800 = vunpack.c.l.s4 1966171168
      %v3801 = vunpack.c.0.s8 %v3800
      %v3802 = vlaneseq
      %v3803 = vshrl.u32 %v3802, 7
      %v3804 = vsub.s32 %v3801, %v3803
      %v3805 = vrot.slane %v3791, %v3804
      %v3806 = vcombine.low %v3798, %v3805
      %v3807 = vcombine.low %v940, %v948
      %v3808 = vcombine.low %v950, %v933
      %v3809 = vcombine.low %v947, %v949
      %v3810 = vcombine.low %v1199, %v988
      %v3812 = vunpack.c.l.s4 1966171168
      %v3813 = vunpack.c.0.s8 %v3812
      %v3814 = vlaneseq
      %v3815 = vshrl.u32 %v3814, 7
      %v3816 = vsub.s32 %v3813, %v3815
      %v3817 = vrot.slane %v3807, %v3816
      %v3819 = vunpack.c.l.s4 1966171168
      %v3820 = vunpack.c.0.s8 %v3819
      %v3821 = vlaneseq
      %v3822 = vshrl.u32 %v3821, 7
      %v3823 = vsub.s32 %v3820, %v3822
      %v3824 = vrot.slane %v3808, %v3823
      %v3826 = vunpack.c.l.s4 1966171168
      %v3827 = vunpack.c.0.s8 %v3826
      %v3828 = vlaneseq
      %v3829 = vshrl.u32 %v3828, 7
      %v3830 = vsub.s32 %v3827, %v3829
      %v3831 = vrot.slane %v3809, %v3830
      %v3833 = vunpack.c.l.s4 1966171168
      %v3834 = vunpack.c.0.s8 %v3833
      %v3835 = vlaneseq
      %v3836 = vshrl.u32 %v3835, 7
      %v3837 = vsub.s32 %v3834, %v3836
      %v3838 = vrot.slane %v3810, %v3837
      %v3839 = vcombine.low %v3817, %v3824
      %v3840 = vcombine.low %v3831, %v3838
      %v3842 = vunpack.c.l.s4 1966171168
      %v3843 = vunpack.c.0.s8 %v3842
      %v3844 = vlaneseq
      %v3845 = vshrl.u32 %v3844, 7
      %v3846 = vsub.s32 %v3843, %v3845
      %v3847 = vrot.slane %v3839, %v3846
      %v3849 = vunpack.c.l.s4 1966171168
      %v3850 = vunpack.c.0.s8 %v3849
      %v3851 = vlaneseq
      %v3852 = vshrl.u32 %v3851, 7
      %v3853 = vsub.s32 %v3850, %v3852
      %v3854 = vrot.slane %v3840, %v3853
      %v3855 = vcombine.low %v3847, %v3854
      %v3856 = vcombine.low %v996, %v998
      %v3857 = vcombine.low %v981, %v995
      %v3858 = vcombine.low %v997, %v1200
      %v3859 = vcombine.low %v1036, %v1044
      %v3861 = vunpack.c.l.s4 1966171168
      %v3862 = vunpack.c.0.s8 %v3861
      %v3863 = vlaneseq
      %v3864 = vshrl.u32 %v3863, 7
      %v3865 = vsub.s32 %v3862, %v3864
      %v3866 = vrot.slane %v3856, %v3865
      %v3868 = vunpack.c.l.s4 1966171168
      %v3869 = vunpack.c.0.s8 %v3868
      %v3870 = vlaneseq
      %v3871 = vshrl.u32 %v3870, 7
      %v3872 = vsub.s32 %v3869, %v3871
      %v3873 = vrot.slane %v3857, %v3872
      %v3875 = vunpack.c.l.s4 1966171168
      %v3876 = vunpack.c.0.s8 %v3875
      %v3877 = vlaneseq
      %v3878 = vshrl.u32 %v3877, 7
      %v3879 = vsub.s32 %v3876, %v3878
      %v3880 = vrot.slane %v3858, %v3879
      %v3882 = vunpack.c.l.s4 1966171168
      %v3883 = vunpack.c.0.s8 %v3882
      %v3884 = vlaneseq
      %v3885 = vshrl.u32 %v3884, 7
      %v3886 = vsub.s32 %v3883, %v3885
      %v3887 = vrot.slane %v3859, %v3886
      %v3888 = vcombine.low %v3866, %v3873
      %v3889 = vcombine.low %v3880, %v3887
      %v3891 = vunpack.c.l.s4 1966171168
      %v3892 = vunpack.c.0.s8 %v3891
      %v3893 = vlaneseq
      %v3894 = vshrl.u32 %v3893, 7
      %v3895 = vsub.s32 %v3892, %v3894
      %v3896 = vrot.slane %v3888, %v3895
      %v3898 = vunpack.c.l.s4 1966171168
      %v3899 = vunpack.c.0.s8 %v3898
      %v3900 = vlaneseq
      %v3901 = vshrl.u32 %v3900, 7
      %v3902 = vsub.s32 %v3899, %v3901
      %v3903 = vrot.slane %v3889, %v3902
      %v3904 = vcombine.low %v3896, %v3903
      %v3905 = vcombine.low %v1046, %v1029
      %v3906 = vcombine.low %v1043, %v1045
      %v3907 = vcombine.low %v1201, %v1084
      %v3908 = vcombine.low %v1092, %v1094
      %v3910 = vunpack.c.l.s4 1966171168
      %v3911 = vunpack.c.0.s8 %v3910
      %v3912 = vlaneseq
      %v3913 = vshrl.u32 %v3912, 7
      %v3914 = vsub.s32 %v3911, %v3913
      %v3915 = vrot.slane %v3905, %v3914
      %v3917 = vunpack.c.l.s4 1966171168
      %v3918 = vunpack.c.0.s8 %v3917
      %v3919 = vlaneseq
      %v3920 = vshrl.u32 %v3919, 7
      %v3921 = vsub.s32 %v3918, %v3920
      %v3922 = vrot.slane %v3906, %v3921
      %v3924 = vunpack.c.l.s4 1966171168
      %v3925 = vunpack.c.0.s8 %v3924
      %v3926 = vlaneseq
      %v3927 = vshrl.u32 %v3926, 7
      %v3928 = vsub.s32 %v3925, %v3927
      %v3929 = vrot.slane %v3907, %v3928
      %v3931 = vunpack.c.l.s4 1966171168
      %v3932 = vunpack.c.0.s8 %v3931
      %v3933 = vlaneseq
      %v3934 = vshrl.u32 %v3933, 7
      %v3935 = vsub.s32 %v3932, %v3934
      %v3936 = vrot.slane %v3908, %v3935
      %v3937 = vcombine.low %v3915, %v3922
      %v3938 = vcombine.low %v3929, %v3936
      %v3940 = vunpack.c.l.s4 1966171168
      %v3941 = vunpack.c.0.s8 %v3940
      %v3942 = vlaneseq
      %v3943 = vshrl.u32 %v3942, 7
      %v3944 = vsub.s32 %v3941, %v3943
      %v3945 = vrot.slane %v3937, %v3944
      %v3947 = vunpack.c.l.s4 1966171168
      %v3948 = vunpack.c.0.s8 %v3947
      %v3949 = vlaneseq
      %v3950 = vshrl.u32 %v3949, 7
      %v3951 = vsub.s32 %v3948, %v3950
      %v3952 = vrot.slane %v3938, %v3951
      %v3953 = vcombine.low %v3945, %v3952
      %v3954 = vcombine.low %v1077, %v1091
      %v3955 = vcombine.low %v1093, %v1202
      %v3956 = vcombine.low %v1132, %v1140
      %v3957 = vcombine.low %v1142, %v1125
      %v3959 = vunpack.c.l.s4 1966171168
      %v3960 = vunpack.c.0.s8 %v3959
      %v3961 = vlaneseq
      %v3962 = vshrl.u32 %v3961, 7
      %v3963 = vsub.s32 %v3960, %v3962
      %v3964 = vrot.slane %v3954, %v3963
      %v3966 = vunpack.c.l.s4 1966171168
      %v3967 = vunpack.c.0.s8 %v3966
      %v3968 = vlaneseq
      %v3969 = vshrl.u32 %v3968, 7
      %v3970 = vsub.s32 %v3967, %v3969
      %v3971 = vrot.slane %v3955, %v3970
      %v3973 = vunpack.c.l.s4 1966171168
      %v3974 = vunpack.c.0.s8 %v3973
      %v3975 = vlaneseq
      %v3976 = vshrl.u32 %v3975, 7
      %v3977 = vsub.s32 %v3974, %v3976
      %v3978 = vrot.slane %v3956, %v3977
      %v3980 = vunpack.c.l.s4 1966171168
      %v3981 = vunpack.c.0.s8 %v3980
      %v3982 = vlaneseq
      %v3983 = vshrl.u32 %v3982, 7
      %v3984 = vsub.s32 %v3981, %v3983
      %v3985 = vrot.slane %v3957, %v3984
      %v3986 = vcombine.low %v3964, %v3971
      %v3987 = vcombine.low %v3978, %v3985
      %v3989 = vunpack.c.l.s4 1966171168
      %v3990 = vunpack.c.0.s8 %v3989
      %v3991 = vlaneseq
      %v3992 = vshrl.u32 %v3991, 7
      %v3993 = vsub.s32 %v3990, %v3992
      %v3994 = vrot.slane %v3986, %v3993
      %v3996 = vunpack.c.l.s4 1966171168
      %v3997 = vunpack.c.0.s8 %v3996
      %v3998 = vlaneseq
      %v3999 = vshrl.u32 %v3998, 7
      %v4000 = vsub.s32 %v3997, %v3999
      %v4001 = vrot.slane %v3987, %v4000
      %v4002 = vcombine.low %v3994, %v4001
      %v4003 = vcombine.low %v1139, %v1141
      %v4004 = vcombine.low %v1203, %v1180
      %v4005 = vcombine.low %v1188, %v1190
      %v4006 = vcombine.low %v1173, %v1187
      %v4008 = vunpack.c.l.s4 1966171168
      %v4009 = vunpack.c.0.s8 %v4008
      %v4010 = vlaneseq
      %v4011 = vshrl.u32 %v4010, 7
      %v4012 = vsub.s32 %v4009, %v4011
      %v4013 = vrot.slane %v4003, %v4012
      %v4015 = vunpack.c.l.s4 1966171168
      %v4016 = vunpack.c.0.s8 %v4015
      %v4017 = vlaneseq
      %v4018 = vshrl.u32 %v4017, 7
      %v4019 = vsub.s32 %v4016, %v4018
      %v4020 = vrot.slane %v4004, %v4019
      %v4022 = vunpack.c.l.s4 1966171168
      %v4023 = vunpack.c.0.s8 %v4022
      %v4024 = vlaneseq
      %v4025 = vshrl.u32 %v4024, 7
      %v4026 = vsub.s32 %v4023, %v4025
      %v4027 = vrot.slane %v4005, %v4026
      %v4029 = vunpack.c.l.s4 1966171168
      %v4030 = vunpack.c.0.s8 %v4029
      %v4031 = vlaneseq
      %v4032 = vshrl.u32 %v4031, 7
      %v4033 = vsub.s32 %v4030, %v4032
      %v4034 = vrot.slane %v4006, %v4033
      %v4035 = vcombine.low %v4013, %v4020
      %v4036 = vcombine.low %v4027, %v4034
      %v4038 = vunpack.c.l.s4 1966171168
      %v4039 = vunpack.c.0.s8 %v4038
      %v4040 = vlaneseq
      %v4041 = vshrl.u32 %v4040, 7
      %v4042 = vsub.s32 %v4039, %v4041
      %v4043 = vrot.slane %v4035, %v4042
      %v4045 = vunpack.c.l.s4 1966171168
      %v4046 = vunpack.c.0.s8 %v4045
      %v4047 = vlaneseq
      %v4048 = vshrl.u32 %v4047, 7
      %v4049 = vsub.s32 %v4046, %v4048
      %v4050 = vrot.slane %v4036, %v4049
      %v4051 = vcombine.low %v4043, %v4050
      %v4052 = vcombine.low %v1189, %v1204
      %v4054 = vunpack.c.l.s4 1966171168
      %v4055 = vunpack.c.0.s8 %v4054
      %v4056 = vlaneseq
      %v4057 = vshrl.u32 %v4056, 7
      %v4058 = vsub.s32 %v4055, %v4057
      %v4059 = vrot.slane %v4052, %v4058
      %v4061 = vunpack.c.l.s4 1966171168
      %v4062 = vunpack.c.0.s8 %v4061
      %v4063 = vlaneseq
      %v4064 = vshrl.u32 %v4063, 7
      %v4065 = vsub.s32 %v4062, %v4064
      %v4066 = vrot.slane %v4059, %v4065
      %4067 = vrot.lane.b32.xlu0 %v3512, 8
      %v4068 = vpop.permute.xlu0 %4067
      %4069 = vrot.lane.b32.xlu0 %v3561, 8
      %v4070 = vpop.permute.xlu0 %4069
      %4071 = vrot.lane.b32.xlu0 %v3610, 8
      %v4072 = vpop.permute.xlu0 %4071
      %4073 = vrot.lane.b32.xlu0 %v3659, 8
      %v4074 = vpop.permute.xlu0 %4073
      %4075 = vrot.lane.b32.xlu0 %v3708, 8
      %v4076 = vpop.permute.xlu0 %4075
      %4077 = vrot.lane.b32.xlu0 %v3757, 8
      %v4078 = vpop.permute.xlu0 %4077
      %4079 = vrot.lane.b32.xlu0 %v3806, 8
      %v4080 = vpop.permute.xlu0 %4079
      %4081 = vrot.lane.b32.xlu0 %v3855, 8
      %v4082 = vpop.permute.xlu0 %4081
      %4083 = vrot.lane.b32.xlu0 %v3904, 8
      %v4084 = vpop.permute.xlu0 %4083
      %4085 = vrot.lane.b32.xlu0 %v3953, 8
      %v4086 = vpop.permute.xlu0 %4085
      %4087 = vrot.lane.b32.xlu0 %v4002, 8
      %v4088 = vpop.permute.xlu0 %4087
      %4089 = vrot.lane.b32.xlu0 %v4051, 8
      %v4090 = vpop.permute.xlu0 %4089
      %4091 = vrot.lane.b32.xlu0 %v4066, 8
      %v4092 = vpop.permute.xlu0 %4091
      %v4093 = vcombine.low %v590, %v604
      %v4094 = vcombine.low %v613, %v638
      %v4096 = vunpack.c.l.s4 1966171168
      %v4097 = vunpack.c.0.s8 %v4096
      %v4098 = vlaneseq
      %v4099 = vshrl.u32 %v4098, 7
      %v4100 = vsub.s32 %v4097, %v4099
      %v4101 = vrot.slane %v4093, %v4100
      %v4103 = vunpack.c.l.s4 1966171168
      %v4104 = vunpack.c.0.s8 %v4103
      %v4105 = vlaneseq
      %v4106 = vshrl.u32 %v4105, 7
      %v4107 = vsub.s32 %v4104, %v4106
      %v4108 = vrot.slane %v4094, %v4107
      %v4109 = vcombine.low %v4101, %v3523
      %v4110 = vcombine.low %v3530, %v4108
      %v4112 = vunpack.c.l.s4 1966171168
      %v4113 = vunpack.c.0.s8 %v4112
      %v4114 = vlaneseq
      %v4115 = vshrl.u32 %v4114, 7
      %v4116 = vsub.s32 %v4113, %v4115
      %v4117 = vrot.slane %v4109, %v4116
      %v4119 = vunpack.c.l.s4 1966171168
      %v4120 = vunpack.c.0.s8 %v4119
      %v4121 = vlaneseq
      %v4122 = vshrl.u32 %v4121, 7
      %v4123 = vsub.s32 %v4120, %v4122
      %v4124 = vrot.slane %v4110, %v4123
      %v4125 = vcombine.low %v4117, %v4124
      %v4126 = vcombine.low %v686, %v700
      %v4128 = vunpack.c.l.s4 1966171168
      %v4129 = vunpack.c.0.s8 %v4128
      %v4130 = vlaneseq
      %v4131 = vshrl.u32 %v4130, 7
      %v4132 = vsub.s32 %v4129, %v4131
      %v4133 = vrot.slane %v4126, %v4132
      %v4134 = vcombine.low %v3544, %v3572
      %v4135 = vcombine.low %v3579, %v4133
      %v4137 = vunpack.c.l.s4 1966171168
      %v4138 = vunpack.c.0.s8 %v4137
      %v4139 = vlaneseq
      %v4140 = vshrl.u32 %v4139, 7
      %v4141 = vsub.s32 %v4138, %v4140
      %v4142 = vrot.slane %v4134, %v4141
      %v4144 = vunpack.c.l.s4 1966171168
      %v4145 = vunpack.c.0.s8 %v4144
      %v4146 = vlaneseq
      %v4147 = vshrl.u32 %v4146, 7
      %v4148 = vsub.s32 %v4145, %v4147
      %v4149 = vrot.slane %v4135, %v4148
      %v4150 = vcombine.low %v4142, %v4149
      %v4151 = vcombine.low %v709, %v734
      %v4153 = vunpack.c.l.s4 1966171168
      %v4154 = vunpack.c.0.s8 %v4153
      %v4155 = vlaneseq
      %v4156 = vshrl.u32 %v4155, 7
      %v4157 = vsub.s32 %v4154, %v4156
      %v4158 = vrot.slane %v4151, %v4157
      %v4159 = vcombine.low %v3593, %v3621
      %v4160 = vcombine.low %v4158, %v3635
      %v4162 = vunpack.c.l.s4 1966171168
      %v4163 = vunpack.c.0.s8 %v4162
      %v4164 = vlaneseq
      %v4165 = vshrl.u32 %v4164, 7
      %v4166 = vsub.s32 %v4163, %v4165
      %v4167 = vrot.slane %v4159, %v4166
      %v4169 = vunpack.c.l.s4 1966171168
      %v4170 = vunpack.c.0.s8 %v4169
      %v4171 = vlaneseq
      %v4172 = vshrl.u32 %v4171, 7
      %v4173 = vsub.s32 %v4170, %v4172
      %v4174 = vrot.slane %v4160, %v4173
      %v4175 = vcombine.low %v4167, %v4174
      %v4176 = vcombine.low %v782, %v796
      %v4178 = vunpack.c.l.s4 1966171168
      %v4179 = vunpack.c.0.s8 %v4178
      %v4180 = vlaneseq
      %v4181 = vshrl.u32 %v4180, 7
      %v4182 = vsub.s32 %v4179, %v4181
      %v4183 = vrot.slane %v4176, %v4182
      %v4184 = vcombine.low %v3642, %v3670
      %v4185 = vcombine.low %v4183, %v3684
      %v4187 = vunpack.c.l.s4 1966171168
      %v4188 = vunpack.c.0.s8 %v4187
      %v4189 = vlaneseq
      %v4190 = vshrl.u32 %v4189, 7
      %v4191 = vsub.s32 %v4188, %v4190
      %v4192 = vrot.slane %v4184, %v4191
      %v4194 = vunpack.c.l.s4 1966171168
      %v4195 = vunpack.c.0.s8 %v4194
      %v4196 = vlaneseq
      %v4197 = vshrl.u32 %v4196, 7
      %v4198 = vsub.s32 %v4195, %v4197
      %v4199 = vrot.slane %v4185, %v4198
      %v4200 = vcombine.low %v4192, %v4199
      %v4201 = vcombine.low %v805, %v830
      %v4203 = vunpack.c.l.s4 1966171168
      %v4204 = vunpack.c.0.s8 %v4203
      %v4205 = vlaneseq
      %v4206 = vshrl.u32 %v4205, 7
      %v4207 = vsub.s32 %v4204, %v4206
      %v4208 = vrot.slane %v4201, %v4207
      %v4209 = vcombine.low %v3691, %v4208
      %v4210 = vcombine.low %v3726, %v3733
      %v4212 = vunpack.c.l.s4 1966171168
      %v4213 = vunpack.c.0.s8 %v4212
      %v4214 = vlaneseq
      %v4215 = vshrl.u32 %v4214, 7
      %v4216 = vsub.s32 %v4213, %v4215
      %v4217 = vrot.slane %v4209, %v4216
      %v4219 = vunpack.c.l.s4 1966171168
      %v4220 = vunpack.c.0.s8 %v4219
      %v4221 = vlaneseq
      %v4222 = vshrl.u32 %v4221, 7
      %v4223 = vsub.s32 %v4220, %v4222
      %v4224 = vrot.slane %v4210, %v4223
      %v4225 = vcombine.low %v4217, %v4224
      %v4226 = vcombine.low %v878, %v892
      %v4228 = vunpack.c.l.s4 1966171168
      %v4229 = vunpack.c.0.s8 %v4228
      %v4230 = vlaneseq
      %v4231 = vshrl.u32 %v4230, 7
      %v4232 = vsub.s32 %v4229, %v4231
      %v4233 = vrot.slane %v4226, %v4232
      %v4234 = vcombine.low %v3740, %v4233
      %v4235 = vcombine.low %v3775, %v3782
      %v4237 = vunpack.c.l.s4 1966171168
      %v4238 = vunpack.c.0.s8 %v4237
      %v4239 = vlaneseq
      %v4240 = vshrl.u32 %v4239, 7
      %v4241 = vsub.s32 %v4238, %v4240
      %v4242 = vrot.slane %v4234, %v4241
      %v4244 = vunpack.c.l.s4 1966171168
      %v4245 = vunpack.c.0.s8 %v4244
      %v4246 = vlaneseq
      %v4247 = vshrl.u32 %v4246, 7
      %v4248 = vsub.s32 %v4245, %v4247
      %v4249 = vrot.slane %v4235, %v4248
      %v4250 = vcombine.low %v4242, %v4249
      %v4251 = vcombine.low %v901, %v926
      %v4253 = vunpack.c.l.s4 1966171168
      %v4254 = vunpack.c.0.s8 %v4253
      %v4255 = vlaneseq
      %v4256 = vshrl.u32 %v4255, 7
      %v4257 = vsub.s32 %v4254, %v4256
      %v4258 = vrot.slane %v4251, %v4257
      %v4259 = vcombine.low %v4258, %v3817
      %v4260 = vcombine.low %v3824, %v3831
      %v4262 = vunpack.c.l.s4 1966171168
      %v4263 = vunpack.c.0.s8 %v4262
      %v4264 = vlaneseq
      %v4265 = vshrl.u32 %v4264, 7
      %v4266 = vsub.s32 %v4263, %v4265
      %v4267 = vrot.slane %v4259, %v4266
      %v4269 = vunpack.c.l.s4 1966171168
      %v4270 = vunpack.c.0.s8 %v4269
      %v4271 = vlaneseq
      %v4272 = vshrl.u32 %v4271, 7
      %v4273 = vsub.s32 %v4270, %v4272
      %v4274 = vrot.slane %v4260, %v4273
      %v4275 = vcombine.low %v4267, %v4274
      %v4276 = vcombine.low %v974, %v988
      %v4277 = vcombine.low %v997, %v1022
      %v4279 = vunpack.c.l.s4 1966171168
      %v4280 = vunpack.c.0.s8 %v4279
      %v4281 = vlaneseq
      %v4282 = vshrl.u32 %v4281, 7
      %v4283 = vsub.s32 %v4280, %v4282
      %v4284 = vrot.slane %v4276, %v4283
      %v4286 = vunpack.c.l.s4 1966171168
      %v4287 = vunpack.c.0.s8 %v4286
      %v4288 = vlaneseq
      %v4289 = vshrl.u32 %v4288, 7
      %v4290 = vsub.s32 %v4287, %v4289
      %v4291 = vrot.slane %v4277, %v4290
      %v4292 = vcombine.low %v4284, %v3866
      %v4293 = vcombine.low %v3873, %v4291
      %v4295 = vunpack.c.l.s4 1966171168
      %v4296 = vunpack.c.0.s8 %v4295
      %v4297 = vlaneseq
      %v4298 = vshrl.u32 %v4297, 7
      %v4299 = vsub.s32 %v4296, %v4298
      %v4300 = vrot.slane %v4292, %v4299
      %v4302 = vunpack.c.l.s4 1966171168
      %v4303 = vunpack.c.0.s8 %v4302
      %v4304 = vlaneseq
      %v4305 = vshrl.u32 %v4304, 7
      %v4306 = vsub.s32 %v4303, %v4305
      %v4307 = vrot.slane %v4293, %v4306
      %v4308 = vcombine.low %v4300, %v4307
      %v4309 = vcombine.low %v1070, %v1084
      %v4311 = vunpack.c.l.s4 1966171168
      %v4312 = vunpack.c.0.s8 %v4311
      %v4313 = vlaneseq
      %v4314 = vshrl.u32 %v4313, 7
      %v4315 = vsub.s32 %v4312, %v4314
      %v4316 = vrot.slane %v4309, %v4315
      %v4317 = vcombine.low %v3887, %v3915
      %v4318 = vcombine.low %v3922, %v4316
      %v4320 = vunpack.c.l.s4 1966171168
      %v4321 = vunpack.c.0.s8 %v4320
      %v4322 = vlaneseq
      %v4323 = vshrl.u32 %v4322, 7
      %v4324 = vsub.s32 %v4321, %v4323
      %v4325 = vrot.slane %v4317, %v4324
      %v4327 = vunpack.c.l.s4 1966171168
      %v4328 = vunpack.c.0.s8 %v4327
      %v4329 = vlaneseq
      %v4330 = vshrl.u32 %v4329, 7
      %v4331 = vsub.s32 %v4328, %v4330
      %v4332 = vrot.slane %v4318, %v4331
      %v4333 = vcombine.low %v4325, %v4332
      %v4334 = vcombine.low %v1093, %v1118
      %v4336 = vunpack.c.l.s4 1966171168
      %v4337 = vunpack.c.0.s8 %v4336
      %v4338 = vlaneseq
      %v4339 = vshrl.u32 %v4338, 7
      %v4340 = vsub.s32 %v4337, %v4339
      %v4341 = vrot.slane %v4334, %v4340
      %v4342 = vcombine.low %v3936, %v3964
      %v4343 = vcombine.low %v4341, %v3978
      %v4345 = vunpack.c.l.s4 1966171168
      %v4346 = vunpack.c.0.s8 %v4345
      %v4347 = vlaneseq
      %v4348 = vshrl.u32 %v4347, 7
      %v4349 = vsub.s32 %v4346, %v4348
      %v4350 = vrot.slane %v4342, %v4349
      %v4352 = vunpack.c.l.s4 1966171168
      %v4353 = vunpack.c.0.s8 %v4352
      %v4354 = vlaneseq
      %v4355 = vshrl.u32 %v4354, 7
      %v4356 = vsub.s32 %v4353, %v4355
      %v4357 = vrot.slane %v4343, %v4356
      %v4358 = vcombine.low %v4350, %v4357
      %v4359 = vcombine.low %v1166, %v1180
      %v4361 = vunpack.c.l.s4 1966171168
      %v4362 = vunpack.c.0.s8 %v4361
      %v4363 = vlaneseq
      %v4364 = vshrl.u32 %v4363, 7
      %v4365 = vsub.s32 %v4362, %v4364
      %v4366 = vrot.slane %v4359, %v4365
      %v4367 = vcombine.low %v3985, %v4013
      %v4368 = vcombine.low %v4366, %v4027
      %v4370 = vunpack.c.l.s4 1966171168
      %v4371 = vunpack.c.0.s8 %v4370
      %v4372 = vlaneseq
      %v4373 = vshrl.u32 %v4372, 7
      %v4374 = vsub.s32 %v4371, %v4373
      %v4375 = vrot.slane %v4367, %v4374
      %v4377 = vunpack.c.l.s4 1966171168
      %v4378 = vunpack.c.0.s8 %v4377
      %v4379 = vlaneseq
      %v4380 = vshrl.u32 %v4379, 7
      %v4381 = vsub.s32 %v4378, %v4380
      %v4382 = vrot.slane %v4368, %v4381
      %v4383 = vcombine.low %v4375, %v4382
      %v4384 = vcombine.low %v1189, %v2042
      %v4385 = vcombine.low %v2056, %v2064
      %v4386 = vcombine.low %v2066, %v2049
      %v4388 = vunpack.c.l.s4 1966171168
      %v4389 = vunpack.c.0.s8 %v4388
      %v4390 = vlaneseq
      %v4391 = vshrl.u32 %v4390, 7
      %v4392 = vsub.s32 %v4389, %v4391
      %v4393 = vrot.slane %v4384, %v4392
      %v4395 = vunpack.c.l.s4 1966171168
      %v4396 = vunpack.c.0.s8 %v4395
      %v4397 = vlaneseq
      %v4398 = vshrl.u32 %v4397, 7
      %v4399 = vsub.s32 %v4396, %v4398
      %v4400 = vrot.slane %v4385, %v4399
      %v4402 = vunpack.c.l.s4 1966171168
      %v4403 = vunpack.c.0.s8 %v4402
      %v4404 = vlaneseq
      %v4405 = vshrl.u32 %v4404, 7
      %v4406 = vsub.s32 %v4403, %v4405
      %v4407 = vrot.slane %v4386, %v4406
      %v4408 = vcombine.low %v4034, %v4393
      %v4409 = vcombine.low %v4400, %v4407
      %v4411 = vunpack.c.l.s4 1966171168
      %v4412 = vunpack.c.0.s8 %v4411
      %v4413 = vlaneseq
      %v4414 = vshrl.u32 %v4413, 7
      %v4415 = vsub.s32 %v4412, %v4414
      %v4416 = vrot.slane %v4408, %v4415
      %v4418 = vunpack.c.l.s4 1966171168
      %v4419 = vunpack.c.0.s8 %v4418
      %v4420 = vlaneseq
      %v4421 = vshrl.u32 %v4420, 7
      %v4422 = vsub.s32 %v4419, %v4421
      %v4423 = vrot.slane %v4409, %v4422
      %v4424 = vcombine.low %v4416, %v4423
      %v4425 = vcombine.low %v2063, %v2065
      %v4427 = vunpack.c.l.s4 1966171168
      %v4428 = vunpack.c.0.s8 %v4427
      %v4429 = vlaneseq
      %v4430 = vshrl.u32 %v4429, 7
      %v4431 = vsub.s32 %v4428, %v4430
      %v4432 = vrot.slane %v4425, %v4431
      %v4434 = vunpack.c.l.s4 1966171168
      %v4435 = vunpack.c.0.s8 %v4434
      %v4436 = vlaneseq
      %v4437 = vshrl.u32 %v4436, 7
      %v4438 = vsub.s32 %v4435, %v4437
      %v4439 = vrot.slane %v4432, %v4438
      %4440 = vrot.lane.b32.xlu0 %v4125, 12
      %v4441 = vpop.permute.xlu0 %4440
      %4442 = vrot.lane.b32.xlu0 %v4150, 12
      %v4443 = vpop.permute.xlu0 %4442
      %4444 = vrot.lane.b32.xlu0 %v4175, 12
      %v4445 = vpop.permute.xlu0 %4444
      %4446 = vrot.lane.b32.xlu0 %v4200, 12
      %v4447 = vpop.permute.xlu0 %4446
      %4448 = vrot.lane.b32.xlu0 %v4225, 12
      %v4449 = vpop.permute.xlu0 %4448
      %4450 = vrot.lane.b32.xlu0 %v4250, 12
      %v4451 = vpop.permute.xlu0 %4450
      %4452 = vrot.lane.b32.xlu0 %v4275, 12
      %v4453 = vpop.permute.xlu0 %4452
      %4454 = vrot.lane.b32.xlu0 %v4308, 12
      %v4455 = vpop.permute.xlu0 %4454
      %4456 = vrot.lane.b32.xlu0 %v4333, 12
      %v4457 = vpop.permute.xlu0 %4456
      %4458 = vrot.lane.b32.xlu0 %v4358, 12
      %v4459 = vpop.permute.xlu0 %4458
      %4460 = vrot.lane.b32.xlu0 %v4383, 12
      %v4461 = vpop.permute.xlu0 %4460
      %4462 = vrot.lane.b32.xlu0 %v4424, 12
      %v4463 = vpop.permute.xlu0 %4462
      %4464 = vrot.lane.b32.xlu0 %v4439, 12
      %v4465 = vpop.permute.xlu0 %4464
      %v4466 = vcombine.low %v1285, %v1293
      %v4467 = vcombine.low %v1301, %v1309
      %v4468 = vcombine.low %v1317, %v1325
      %v4469 = vcombine.low %v1333, %v1342
      %v4471 = vunpack.c.l.s4 1966171168
      %v4472 = vunpack.c.0.s8 %v4471
      %v4473 = vlaneseq
      %v4474 = vshrl.u32 %v4473, 7
      %v4475 = vsub.s32 %v4472, %v4474
      %v4476 = vrot.slane %v4466, %v4475
      %v4478 = vunpack.c.l.s4 1966171168
      %v4479 = vunpack.c.0.s8 %v4478
      %v4480 = vlaneseq
      %v4481 = vshrl.u32 %v4480, 7
      %v4482 = vsub.s32 %v4479, %v4481
      %v4483 = vrot.slane %v4467, %v4482
      %v4485 = vunpack.c.l.s4 1966171168
      %v4486 = vunpack.c.0.s8 %v4485
      %v4487 = vlaneseq
      %v4488 = vshrl.u32 %v4487, 7
      %v4489 = vsub.s32 %v4486, %v4488
      %v4490 = vrot.slane %v4468, %v4489
      %v4492 = vunpack.c.l.s4 1966171168
      %v4493 = vunpack.c.0.s8 %v4492
      %v4494 = vlaneseq
      %v4495 = vshrl.u32 %v4494, 7
      %v4496 = vsub.s32 %v4493, %v4495
      %v4497 = vrot.slane %v4469, %v4496
      %v4498 = vcombine.low %v4476, %v4483
      %v4499 = vcombine.low %v4490, %v4497
      %v4501 = vunpack.c.l.s4 1966171168
      %v4502 = vunpack.c.0.s8 %v4501
      %v4503 = vlaneseq
      %v4504 = vshrl.u32 %v4503, 7
      %v4505 = vsub.s32 %v4502, %v4504
      %v4506 = vrot.slane %v4498, %v4505
      %v4508 = vunpack.c.l.s4 1966171168
      %v4509 = vunpack.c.0.s8 %v4508
      %v4510 = vlaneseq
      %v4511 = vshrl.u32 %v4510, 7
      %v4512 = vsub.s32 %v4509, %v4511
      %v4513 = vrot.slane %v4499, %v4512
      %v4514 = vcombine.low %v4506, %v4513
      %v4515 = vcombine.low %v1350, %v1358
      %v4516 = vcombine.low %v1366, %v1374
      %v4517 = vcombine.low %v1382, %v1390
      %v4518 = vcombine.low %v1399, %v1407
      %v4520 = vunpack.c.l.s4 1966171168
      %v4521 = vunpack.c.0.s8 %v4520
      %v4522 = vlaneseq
      %v4523 = vshrl.u32 %v4522, 7
      %v4524 = vsub.s32 %v4521, %v4523
      %v4525 = vrot.slane %v4515, %v4524
      %v4527 = vunpack.c.l.s4 1966171168
      %v4528 = vunpack.c.0.s8 %v4527
      %v4529 = vlaneseq
      %v4530 = vshrl.u32 %v4529, 7
      %v4531 = vsub.s32 %v4528, %v4530
      %v4532 = vrot.slane %v4516, %v4531
      %v4534 = vunpack.c.l.s4 1966171168
      %v4535 = vunpack.c.0.s8 %v4534
      %v4536 = vlaneseq
      %v4537 = vshrl.u32 %v4536, 7
      %v4538 = vsub.s32 %v4535, %v4537
      %v4539 = vrot.slane %v4517, %v4538
      %v4541 = vunpack.c.l.s4 1966171168
      %v4542 = vunpack.c.0.s8 %v4541
      %v4543 = vlaneseq
      %v4544 = vshrl.u32 %v4543, 7
      %v4545 = vsub.s32 %v4542, %v4544
      %v4546 = vrot.slane %v4518, %v4545
      %v4547 = vcombine.low %v4525, %v4532
      %v4548 = vcombine.low %v4539, %v4546
      %v4550 = vunpack.c.l.s4 1966171168
      %v4551 = vunpack.c.0.s8 %v4550
      %v4552 = vlaneseq
      %v4553 = vshrl.u32 %v4552, 7
      %v4554 = vsub.s32 %v4551, %v4553
      %v4555 = vrot.slane %v4547, %v4554
      %v4557 = vunpack.c.l.s4 1966171168
      %v4558 = vunpack.c.0.s8 %v4557
      %v4559 = vlaneseq
      %v4560 = vshrl.u32 %v4559, 7
      %v4561 = vsub.s32 %v4558, %v4560
      %v4562 = vrot.slane %v4548, %v4561
      %v4563 = vcombine.low %v4555, %v4562
      %v4564 = vcombine.low %v1415, %v1423
      %v4565 = vcombine.low %v1431, %v1439
      %v4566 = vcombine.low %v1447, %v1456
      %v4567 = vcombine.low %v1464, %v1472
      %v4569 = vunpack.c.l.s4 1966171168
      %v4570 = vunpack.c.0.s8 %v4569
      %v4571 = vlaneseq
      %v4572 = vshrl.u32 %v4571, 7
      %v4573 = vsub.s32 %v4570, %v4572
      %v4574 = vrot.slane %v4564, %v4573
      %v4576 = vunpack.c.l.s4 1966171168
      %v4577 = vunpack.c.0.s8 %v4576
      %v4578 = vlaneseq
      %v4579 = vshrl.u32 %v4578, 7
      %v4580 = vsub.s32 %v4577, %v4579
      %v4581 = vrot.slane %v4565, %v4580
      %v4583 = vunpack.c.l.s4 1966171168
      %v4584 = vunpack.c.0.s8 %v4583
      %v4585 = vlaneseq
      %v4586 = vshrl.u32 %v4585, 7
      %v4587 = vsub.s32 %v4584, %v4586
      %v4588 = vrot.slane %v4566, %v4587
      %v4590 = vunpack.c.l.s4 1966171168
      %v4591 = vunpack.c.0.s8 %v4590
      %v4592 = vlaneseq
      %v4593 = vshrl.u32 %v4592, 7
      %v4594 = vsub.s32 %v4591, %v4593
      %v4595 = vrot.slane %v4567, %v4594
      %v4596 = vcombine.low %v4574, %v4581
      %v4597 = vcombine.low %v4588, %v4595
      %v4599 = vunpack.c.l.s4 1966171168
      %v4600 = vunpack.c.0.s8 %v4599
      %v4601 = vlaneseq
      %v4602 = vshrl.u32 %v4601, 7
      %v4603 = vsub.s32 %v4600, %v4602
      %v4604 = vrot.slane %v4596, %v4603
      %v4606 = vunpack.c.l.s4 1966171168
      %v4607 = vunpack.c.0.s8 %v4606
      %v4608 = vlaneseq
      %v4609 = vshrl.u32 %v4608, 7
      %v4610 = vsub.s32 %v4607, %v4609
      %v4611 = vrot.slane %v4597, %v4610
      %v4612 = vcombine.low %v4604, %v4611
      %v4613 = vcombine.low %v1480, %v1488
      %v4614 = vcombine.low %v1496, %v1504
      %v4615 = vcombine.low %v1513, %v1521
      %v4616 = vcombine.low %v1529, %v1537
      %v4618 = vunpack.c.l.s4 1966171168
      %v4619 = vunpack.c.0.s8 %v4618
      %v4620 = vlaneseq
      %v4621 = vshrl.u32 %v4620, 7
      %v4622 = vsub.s32 %v4619, %v4621
      %v4623 = vrot.slane %v4613, %v4622
      %v4625 = vunpack.c.l.s4 1966171168
      %v4626 = vunpack.c.0.s8 %v4625
      %v4627 = vlaneseq
      %v4628 = vshrl.u32 %v4627, 7
      %v4629 = vsub.s32 %v4626, %v4628
      %v4630 = vrot.slane %v4614, %v4629
      %v4632 = vunpack.c.l.s4 1966171168
      %v4633 = vunpack.c.0.s8 %v4632
      %v4634 = vlaneseq
      %v4635 = vshrl.u32 %v4634, 7
      %v4636 = vsub.s32 %v4633, %v4635
      %v4637 = vrot.slane %v4615, %v4636
      %v4639 = vunpack.c.l.s4 1966171168
      %v4640 = vunpack.c.0.s8 %v4639
      %v4641 = vlaneseq
      %v4642 = vshrl.u32 %v4641, 7
      %v4643 = vsub.s32 %v4640, %v4642
      %v4644 = vrot.slane %v4616, %v4643
      %v4645 = vcombine.low %v4623, %v4630
      %v4646 = vcombine.low %v4637, %v4644
      %v4648 = vunpack.c.l.s4 1966171168
      %v4649 = vunpack.c.0.s8 %v4648
      %v4650 = vlaneseq
      %v4651 = vshrl.u32 %v4650, 7
      %v4652 = vsub.s32 %v4649, %v4651
      %v4653 = vrot.slane %v4645, %v4652
      %v4655 = vunpack.c.l.s4 1966171168
      %v4656 = vunpack.c.0.s8 %v4655
      %v4657 = vlaneseq
      %v4658 = vshrl.u32 %v4657, 7
      %v4659 = vsub.s32 %v4656, %v4658
      %v4660 = vrot.slane %v4646, %v4659
      %v4661 = vcombine.low %v4653, %v4660
      %v4662 = vcombine.low %v1545, %v1553
      %v4663 = vcombine.low %v1561, %v1570
      %v4664 = vcombine.low %v1578, %v1586
      %v4665 = vcombine.low %v1594, %v1602
      %v4667 = vunpack.c.l.s4 1966171168
      %v4668 = vunpack.c.0.s8 %v4667
      %v4669 = vlaneseq
      %v4670 = vshrl.u32 %v4669, 7
      %v4671 = vsub.s32 %v4668, %v4670
      %v4672 = vrot.slane %v4662, %v4671
      %v4674 = vunpack.c.l.s4 1966171168
      %v4675 = vunpack.c.0.s8 %v4674
      %v4676 = vlaneseq
      %v4677 = vshrl.u32 %v4676, 7
      %v4678 = vsub.s32 %v4675, %v4677
      %v4679 = vrot.slane %v4663, %v4678
      %v4681 = vunpack.c.l.s4 1966171168
      %v4682 = vunpack.c.0.s8 %v4681
      %v4683 = vlaneseq
      %v4684 = vshrl.u32 %v4683, 7
      %v4685 = vsub.s32 %v4682, %v4684
      %v4686 = vrot.slane %v4664, %v4685
      %v4688 = vunpack.c.l.s4 1966171168
      %v4689 = vunpack.c.0.s8 %v4688
      %v4690 = vlaneseq
      %v4691 = vshrl.u32 %v4690, 7
      %v4692 = vsub.s32 %v4689, %v4691
      %v4693 = vrot.slane %v4665, %v4692
      %v4694 = vcombine.low %v4672, %v4679
      %v4695 = vcombine.low %v4686, %v4693
      %v4697 = vunpack.c.l.s4 1966171168
      %v4698 = vunpack.c.0.s8 %v4697
      %v4699 = vlaneseq
      %v4700 = vshrl.u32 %v4699, 7
      %v4701 = vsub.s32 %v4698, %v4700
      %v4702 = vrot.slane %v4694, %v4701
      %v4704 = vunpack.c.l.s4 1966171168
      %v4705 = vunpack.c.0.s8 %v4704
      %v4706 = vlaneseq
      %v4707 = vshrl.u32 %v4706, 7
      %v4708 = vsub.s32 %v4705, %v4707
      %v4709 = vrot.slane %v4695, %v4708
      %v4710 = vcombine.low %v4702, %v4709
      %v4711 = vcombine.low %v1610, %v1618
      %v4712 = vcombine.low %v1627, %v1635
      %v4713 = vcombine.low %v1643, %v1651
      %v4714 = vcombine.low %v1659, %v1667
      %v4716 = vunpack.c.l.s4 1966171168
      %v4717 = vunpack.c.0.s8 %v4716
      %v4718 = vlaneseq
      %v4719 = vshrl.u32 %v4718, 7
      %v4720 = vsub.s32 %v4717, %v4719
      %v4721 = vrot.slane %v4711, %v4720
      %v4723 = vunpack.c.l.s4 1966171168
      %v4724 = vunpack.c.0.s8 %v4723
      %v4725 = vlaneseq
      %v4726 = vshrl.u32 %v4725, 7
      %v4727 = vsub.s32 %v4724, %v4726
      %v4728 = vrot.slane %v4712, %v4727
      %v4730 = vunpack.c.l.s4 1966171168
      %v4731 = vunpack.c.0.s8 %v4730
      %v4732 = vlaneseq
      %v4733 = vshrl.u32 %v4732, 7
      %v4734 = vsub.s32 %v4731, %v4733
      %v4735 = vrot.slane %v4713, %v4734
      %v4737 = vunpack.c.l.s4 1966171168
      %v4738 = vunpack.c.0.s8 %v4737
      %v4739 = vlaneseq
      %v4740 = vshrl.u32 %v4739, 7
      %v4741 = vsub.s32 %v4738, %v4740
      %v4742 = vrot.slane %v4714, %v4741
      %v4743 = vcombine.low %v4721, %v4728
      %v4744 = vcombine.low %v4735, %v4742
      %v4746 = vunpack.c.l.s4 1966171168
      %v4747 = vunpack.c.0.s8 %v4746
      %v4748 = vlaneseq
      %v4749 = vshrl.u32 %v4748, 7
      %v4750 = vsub.s32 %v4747, %v4749
      %v4751 = vrot.slane %v4743, %v4750
      %v4753 = vunpack.c.l.s4 1966171168
      %v4754 = vunpack.c.0.s8 %v4753
      %v4755 = vlaneseq
      %v4756 = vshrl.u32 %v4755, 7
      %v4757 = vsub.s32 %v4754, %v4756
      %v4758 = vrot.slane %v4744, %v4757
      %v4759 = vcombine.low %v4751, %v4758
      %v4760 = vcombine.low %v1675, %v1684
      %v4761 = vcombine.low %v1692, %v1700
      %v4762 = vcombine.low %v1708, %v1716
      %v4763 = vcombine.low %v1724, %v1732
      %v4765 = vunpack.c.l.s4 1966171168
      %v4766 = vunpack.c.0.s8 %v4765
      %v4767 = vlaneseq
      %v4768 = vshrl.u32 %v4767, 7
      %v4769 = vsub.s32 %v4766, %v4768
      %v4770 = vrot.slane %v4760, %v4769
      %v4772 = vunpack.c.l.s4 1966171168
      %v4773 = vunpack.c.0.s8 %v4772
      %v4774 = vlaneseq
      %v4775 = vshrl.u32 %v4774, 7
      %v4776 = vsub.s32 %v4773, %v4775
      %v4777 = vrot.slane %v4761, %v4776
      %v4779 = vunpack.c.l.s4 1966171168
      %v4780 = vunpack.c.0.s8 %v4779
      %v4781 = vlaneseq
      %v4782 = vshrl.u32 %v4781, 7
      %v4783 = vsub.s32 %v4780, %v4782
      %v4784 = vrot.slane %v4762, %v4783
      %v4786 = vunpack.c.l.s4 1966171168
      %v4787 = vunpack.c.0.s8 %v4786
      %v4788 = vlaneseq
      %v4789 = vshrl.u32 %v4788, 7
      %v4790 = vsub.s32 %v4787, %v4789
      %v4791 = vrot.slane %v4763, %v4790
      %v4792 = vcombine.low %v4770, %v4777
      %v4793 = vcombine.low %v4784, %v4791
      %v4795 = vunpack.c.l.s4 1966171168
      %v4796 = vunpack.c.0.s8 %v4795
      %v4797 = vlaneseq
      %v4798 = vshrl.u32 %v4797, 7
      %v4799 = vsub.s32 %v4796, %v4798
      %v4800 = vrot.slane %v4792, %v4799
      %v4802 = vunpack.c.l.s4 1966171168
      %v4803 = vunpack.c.0.s8 %v4802
      %v4804 = vlaneseq
      %v4805 = vshrl.u32 %v4804, 7
      %v4806 = vsub.s32 %v4803, %v4805
      %v4807 = vrot.slane %v4793, %v4806
      %v4808 = vcombine.low %v4800, %v4807
      %v4809 = vcombine.low %v1741, %v1749
      %v4810 = vcombine.low %v1757, %v1765
      %v4811 = vcombine.low %v1773, %v1781
      %v4812 = vcombine.low %v1789, %v1798
      %v4814 = vunpack.c.l.s4 1966171168
      %v4815 = vunpack.c.0.s8 %v4814
      %v4816 = vlaneseq
      %v4817 = vshrl.u32 %v4816, 7
      %v4818 = vsub.s32 %v4815, %v4817
      %v4819 = vrot.slane %v4809, %v4818
      %v4821 = vunpack.c.l.s4 1966171168
      %v4822 = vunpack.c.0.s8 %v4821
      %v4823 = vlaneseq
      %v4824 = vshrl.u32 %v4823, 7
      %v4825 = vsub.s32 %v4822, %v4824
      %v4826 = vrot.slane %v4810, %v4825
      %v4828 = vunpack.c.l.s4 1966171168
      %v4829 = vunpack.c.0.s8 %v4828
      %v4830 = vlaneseq
      %v4831 = vshrl.u32 %v4830, 7
      %v4832 = vsub.s32 %v4829, %v4831
      %v4833 = vrot.slane %v4811, %v4832
      %v4835 = vunpack.c.l.s4 1966171168
      %v4836 = vunpack.c.0.s8 %v4835
      %v4837 = vlaneseq
      %v4838 = vshrl.u32 %v4837, 7
      %v4839 = vsub.s32 %v4836, %v4838
      %v4840 = vrot.slane %v4812, %v4839
      %v4841 = vcombine.low %v4819, %v4826
      %v4842 = vcombine.low %v4833, %v4840
      %v4844 = vunpack.c.l.s4 1966171168
      %v4845 = vunpack.c.0.s8 %v4844
      %v4846 = vlaneseq
      %v4847 = vshrl.u32 %v4846, 7
      %v4848 = vsub.s32 %v4845, %v4847
      %v4849 = vrot.slane %v4841, %v4848
      %v4851 = vunpack.c.l.s4 1966171168
      %v4852 = vunpack.c.0.s8 %v4851
      %v4853 = vlaneseq
      %v4854 = vshrl.u32 %v4853, 7
      %v4855 = vsub.s32 %v4852, %v4854
      %v4856 = vrot.slane %v4842, %v4855
      %v4857 = vcombine.low %v4849, %v4856
      %v4858 = vcombine.low %v1806, %v1814
      %v4859 = vcombine.low %v1822, %v1830
      %v4860 = vcombine.low %v1838, %v1846
      %v4861 = vcombine.low %v1855, %v1863
      %v4863 = vunpack.c.l.s4 1966171168
      %v4864 = vunpack.c.0.s8 %v4863
      %v4865 = vlaneseq
      %v4866 = vshrl.u32 %v4865, 7
      %v4867 = vsub.s32 %v4864, %v4866
      %v4868 = vrot.slane %v4858, %v4867
      %v4870 = vunpack.c.l.s4 1966171168
      %v4871 = vunpack.c.0.s8 %v4870
      %v4872 = vlaneseq
      %v4873 = vshrl.u32 %v4872, 7
      %v4874 = vsub.s32 %v4871, %v4873
      %v4875 = vrot.slane %v4859, %v4874
      %v4877 = vunpack.c.l.s4 1966171168
      %v4878 = vunpack.c.0.s8 %v4877
      %v4879 = vlaneseq
      %v4880 = vshrl.u32 %v4879, 7
      %v4881 = vsub.s32 %v4878, %v4880
      %v4882 = vrot.slane %v4860, %v4881
      %v4884 = vunpack.c.l.s4 1966171168
      %v4885 = vunpack.c.0.s8 %v4884
      %v4886 = vlaneseq
      %v4887 = vshrl.u32 %v4886, 7
      %v4888 = vsub.s32 %v4885, %v4887
      %v4889 = vrot.slane %v4861, %v4888
      %v4890 = vcombine.low %v4868, %v4875
      %v4891 = vcombine.low %v4882, %v4889
      %v4893 = vunpack.c.l.s4 1966171168
      %v4894 = vunpack.c.0.s8 %v4893
      %v4895 = vlaneseq
      %v4896 = vshrl.u32 %v4895, 7
      %v4897 = vsub.s32 %v4894, %v4896
      %v4898 = vrot.slane %v4890, %v4897
      %v4900 = vunpack.c.l.s4 1966171168
      %v4901 = vunpack.c.0.s8 %v4900
      %v4902 = vlaneseq
      %v4903 = vshrl.u32 %v4902, 7
      %v4904 = vsub.s32 %v4901, %v4903
      %v4905 = vrot.slane %v4891, %v4904
      %v4906 = vcombine.low %v4898, %v4905
      %v4907 = vcombine.low %v1871, %v1879
      %v4908 = vcombine.low %v1887, %v1895
      %v4909 = vcombine.low %v1903, %v1912
      %v4910 = vcombine.low %v1920, %v1928
      %v4912 = vunpack.c.l.s4 1966171168
      %v4913 = vunpack.c.0.s8 %v4912
      %v4914 = vlaneseq
      %v4915 = vshrl.u32 %v4914, 7
      %v4916 = vsub.s32 %v4913, %v4915
      %v4917 = vrot.slane %v4907, %v4916
      %v4919 = vunpack.c.l.s4 1966171168
      %v4920 = vunpack.c.0.s8 %v4919
      %v4921 = vlaneseq
      %v4922 = vshrl.u32 %v4921, 7
      %v4923 = vsub.s32 %v4920, %v4922
      %v4924 = vrot.slane %v4908, %v4923
      %v4926 = vunpack.c.l.s4 1966171168
      %v4927 = vunpack.c.0.s8 %v4926
      %v4928 = vlaneseq
      %v4929 = vshrl.u32 %v4928, 7
      %v4930 = vsub.s32 %v4927, %v4929
      %v4931 = vrot.slane %v4909, %v4930
      %v4933 = vunpack.c.l.s4 1966171168
      %v4934 = vunpack.c.0.s8 %v4933
      %v4935 = vlaneseq
      %v4936 = vshrl.u32 %v4935, 7
      %v4937 = vsub.s32 %v4934, %v4936
      %v4938 = vrot.slane %v4910, %v4937
      %v4939 = vcombine.low %v4917, %v4924
      %v4940 = vcombine.low %v4931, %v4938
      %v4942 = vunpack.c.l.s4 1966171168
      %v4943 = vunpack.c.0.s8 %v4942
      %v4944 = vlaneseq
      %v4945 = vshrl.u32 %v4944, 7
      %v4946 = vsub.s32 %v4943, %v4945
      %v4947 = vrot.slane %v4939, %v4946
      %v4949 = vunpack.c.l.s4 1966171168
      %v4950 = vunpack.c.0.s8 %v4949
      %v4951 = vlaneseq
      %v4952 = vshrl.u32 %v4951, 7
      %v4953 = vsub.s32 %v4950, %v4952
      %v4954 = vrot.slane %v4940, %v4953
      %v4955 = vcombine.low %v4947, %v4954
      %v4956 = vcombine.low %v1936, %v1944
      %v4957 = vcombine.low %v1952, %v1960
      %v4958 = vcombine.low %v1969, %v1977
      %v4959 = vcombine.low %v1985, %v1993
      %v4961 = vunpack.c.l.s4 1966171168
      %v4962 = vunpack.c.0.s8 %v4961
      %v4963 = vlaneseq
      %v4964 = vshrl.u32 %v4963, 7
      %v4965 = vsub.s32 %v4962, %v4964
      %v4966 = vrot.slane %v4956, %v4965
      %v4968 = vunpack.c.l.s4 1966171168
      %v4969 = vunpack.c.0.s8 %v4968
      %v4970 = vlaneseq
      %v4971 = vshrl.u32 %v4970, 7
      %v4972 = vsub.s32 %v4969, %v4971
      %v4973 = vrot.slane %v4957, %v4972
      %v4975 = vunpack.c.l.s4 1966171168
      %v4976 = vunpack.c.0.s8 %v4975
      %v4977 = vlaneseq
      %v4978 = vshrl.u32 %v4977, 7
      %v4979 = vsub.s32 %v4976, %v4978
      %v4980 = vrot.slane %v4958, %v4979
      %v4982 = vunpack.c.l.s4 1966171168
      %v4983 = vunpack.c.0.s8 %v4982
      %v4984 = vlaneseq
      %v4985 = vshrl.u32 %v4984, 7
      %v4986 = vsub.s32 %v4983, %v4985
      %v4987 = vrot.slane %v4959, %v4986
      %v4988 = vcombine.low %v4966, %v4973
      %v4989 = vcombine.low %v4980, %v4987
      %v4991 = vunpack.c.l.s4 1966171168
      %v4992 = vunpack.c.0.s8 %v4991
      %v4993 = vlaneseq
      %v4994 = vshrl.u32 %v4993, 7
      %v4995 = vsub.s32 %v4992, %v4994
      %v4996 = vrot.slane %v4988, %v4995
      %v4998 = vunpack.c.l.s4 1966171168
      %v4999 = vunpack.c.0.s8 %v4998
      %v5000 = vlaneseq
      %v5001 = vshrl.u32 %v5000, 7
      %v5002 = vsub.s32 %v4999, %v5001
      %v5003 = vrot.slane %v4989, %v5002
      %v5004 = vcombine.low %v4996, %v5003
      %v5005 = vcombine.low %v2001, %v2009
      %v5006 = vcombine.low %v2017, %v2076
      %v5007 = vcombine.low %v2084, %v2092
      %v5008 = vcombine.low %v2100, %v2108
      %v5010 = vunpack.c.l.s4 1966171168
      %v5011 = vunpack.c.0.s8 %v5010
      %v5012 = vlaneseq
      %v5013 = vshrl.u32 %v5012, 7
      %v5014 = vsub.s32 %v5011, %v5013
      %v5015 = vrot.slane %v5005, %v5014
      %v5017 = vunpack.c.l.s4 1966171168
      %v5018 = vunpack.c.0.s8 %v5017
      %v5019 = vlaneseq
      %v5020 = vshrl.u32 %v5019, 7
      %v5021 = vsub.s32 %v5018, %v5020
      %v5022 = vrot.slane %v5006, %v5021
      %v5024 = vunpack.c.l.s4 1966171168
      %v5025 = vunpack.c.0.s8 %v5024
      %v5026 = vlaneseq
      %v5027 = vshrl.u32 %v5026, 7
      %v5028 = vsub.s32 %v5025, %v5027
      %v5029 = vrot.slane %v5007, %v5028
      %v5031 = vunpack.c.l.s4 1966171168
      %v5032 = vunpack.c.0.s8 %v5031
      %v5033 = vlaneseq
      %v5034 = vshrl.u32 %v5033, 7
      %v5035 = vsub.s32 %v5032, %v5034
      %v5036 = vrot.slane %v5008, %v5035
      %v5037 = vcombine.low %v5015, %v5022
      %v5038 = vcombine.low %v5029, %v5036
      %v5040 = vunpack.c.l.s4 1966171168
      %v5041 = vunpack.c.0.s8 %v5040
      %v5042 = vlaneseq
      %v5043 = vshrl.u32 %v5042, 7
      %v5044 = vsub.s32 %v5041, %v5043
      %v5045 = vrot.slane %v5037, %v5044
      %v5047 = vunpack.c.l.s4 1966171168
      %v5048 = vunpack.c.0.s8 %v5047
      %v5049 = vlaneseq
      %v5050 = vshrl.u32 %v5049, 7
      %v5051 = vsub.s32 %v5048, %v5050
      %v5052 = vrot.slane %v5038, %v5051
      %v5053 = vcombine.low %v5045, %v5052
      %v5054 = vcombine.low %v2116, %v2124
      %v5056 = vunpack.c.l.s4 1966171168
      %v5057 = vunpack.c.0.s8 %v5056
      %v5058 = vlaneseq
      %v5059 = vshrl.u32 %v5058, 7
      %v5060 = vsub.s32 %v5057, %v5059
      %v5061 = vrot.slane %v5054, %v5060
      %v5063 = vunpack.c.l.s4 1966171168
      %v5064 = vunpack.c.0.s8 %v5063
      %v5065 = vlaneseq
      %v5066 = vshrl.u32 %v5065, 7
      %v5067 = vsub.s32 %v5064, %v5066
      %v5068 = vrot.slane %v5061, %v5067
      %5069 = vrot.lane.b32.xlu0 %v4514, 16
      %v5070 = vpop.permute.xlu0 %5069
      %5071 = vrot.lane.b32.xlu0 %v4563, 16
      %v5072 = vpop.permute.xlu0 %5071
      %5073 = vrot.lane.b32.xlu0 %v4612, 16
      %v5074 = vpop.permute.xlu0 %5073
      %5075 = vrot.lane.b32.xlu0 %v4661, 16
      %v5076 = vpop.permute.xlu0 %5075
      %5077 = vrot.lane.b32.xlu0 %v4710, 16
      %v5078 = vpop.permute.xlu0 %5077
      %5079 = vrot.lane.b32.xlu0 %v4759, 16
      %v5080 = vpop.permute.xlu0 %5079
      %5081 = vrot.lane.b32.xlu0 %v4808, 16
      %v5082 = vpop.permute.xlu0 %5081
      %5083 = vrot.lane.b32.xlu0 %v4857, 16
      %v5084 = vpop.permute.xlu0 %5083
      %5085 = vrot.lane.b32.xlu0 %v4906, 16
      %v5086 = vpop.permute.xlu0 %5085
      %5087 = vrot.lane.b32.xlu0 %v4955, 16
      %v5088 = vpop.permute.xlu0 %5087
      %5089 = vrot.lane.b32.xlu0 %v5004, 16
      %v5090 = vpop.permute.xlu0 %5089
      %5091 = vrot.lane.b32.xlu0 %v5053, 16
      %v5092 = vpop.permute.xlu0 %5091
      %5093 = vrot.lane.b32.xlu0 %v5068, 16
      %v5094 = vpop.permute.xlu0 %5093
      %v5095 = vcombine.low %v1192, %v652
      %v5097 = vunpack.c.l.s4 1966171168
      %v5098 = vunpack.c.0.s8 %v5097
      %v5099 = vlaneseq
      %v5100 = vshrl.u32 %v5099, 7
      %v5101 = vsub.s32 %v5098, %v5100
      %v5102 = vrot.slane %v5095, %v5101
      %v5103 = vcombine.low %v2305, %v5102
      %v5105 = vunpack.c.l.s4 1966171168
      %v5106 = vunpack.c.0.s8 %v5105
      %v5107 = vlaneseq
      %v5108 = vshrl.u32 %v5107, 7
      %v5109 = vsub.s32 %v5106, %v5108
      %v5110 = vrot.slane %v5103, %v5109
      %v5111 = vcombine.low %v2321, %v5110
      %v5112 = vcombine.low %v661, %v1193
      %v5114 = vunpack.c.l.s4 1966171168
      %v5115 = vunpack.c.0.s8 %v5114
      %v5116 = vlaneseq
      %v5117 = vshrl.u32 %v5116, 7
      %v5118 = vsub.s32 %v5115, %v5117
      %v5119 = vrot.slane %v5112, %v5118
      %v5120 = vcombine.low %v5119, %v2361
      %v5122 = vunpack.c.l.s4 1966171168
      %v5123 = vunpack.c.0.s8 %v5122
      %v5124 = vlaneseq
      %v5125 = vshrl.u32 %v5124, 7
      %v5126 = vsub.s32 %v5123, %v5125
      %v5127 = vrot.slane %v5120, %v5126
      %v5128 = vcombine.low %v2370, %v5127
      %v5129 = vcombine.low %v1194, %v748
      %v5131 = vunpack.c.l.s4 1966171168
      %v5132 = vunpack.c.0.s8 %v5131
      %v5133 = vlaneseq
      %v5134 = vshrl.u32 %v5133, 7
      %v5135 = vsub.s32 %v5132, %v5134
      %v5136 = vrot.slane %v5129, %v5135
      %v5137 = vcombine.low %v5136, %v2410
      %v5139 = vunpack.c.l.s4 1966171168
      %v5140 = vunpack.c.0.s8 %v5139
      %v5141 = vlaneseq
      %v5142 = vshrl.u32 %v5141, 7
      %v5143 = vsub.s32 %v5140, %v5142
      %v5144 = vrot.slane %v5137, %v5143
      %v5145 = vcombine.low %v2419, %v5144
      %v5146 = vcombine.low %v757, %v1195
      %v5148 = vunpack.c.l.s4 1966171168
      %v5149 = vunpack.c.0.s8 %v5148
      %v5150 = vlaneseq
      %v5151 = vshrl.u32 %v5150, 7
      %v5152 = vsub.s32 %v5149, %v5151
      %v5153 = vrot.slane %v5146, %v5152
      %v5154 = vcombine.low %v2438, %v5153
      %v5156 = vunpack.c.l.s4 1966171168
      %v5157 = vunpack.c.0.s8 %v5156
      %v5158 = vlaneseq
      %v5159 = vshrl.u32 %v5158, 7
      %v5160 = vsub.s32 %v5157, %v5159
      %v5161 = vrot.slane %v5154, %v5160
      %v5162 = vcombine.low %v5161, %v2475
      %v5163 = vcombine.low %v1196, %v844
      %v5165 = vunpack.c.l.s4 1966171168
      %v5166 = vunpack.c.0.s8 %v5165
      %v5167 = vlaneseq
      %v5168 = vshrl.u32 %v5167, 7
      %v5169 = vsub.s32 %v5166, %v5168
      %v5170 = vrot.slane %v5163, %v5169
      %v5171 = vcombine.low %v2487, %v5170
      %v5173 = vunpack.c.l.s4 1966171168
      %v5174 = vunpack.c.0.s8 %v5173
      %v5175 = vlaneseq
      %v5176 = vshrl.u32 %v5175, 7
      %v5177 = vsub.s32 %v5174, %v5176
      %v5178 = vrot.slane %v5171, %v5177
      %v5179 = vcombine.low %v5178, %v2524
      %v5180 = vcombine.low %v853, %v1197
      %v5182 = vunpack.c.l.s4 1966171168
      %v5183 = vunpack.c.0.s8 %v5182
      %v5184 = vlaneseq
      %v5185 = vshrl.u32 %v5184, 7
      %v5186 = vsub.s32 %v5183, %v5185
      %v5187 = vrot.slane %v5180, %v5186
      %v5188 = vcombine.low %v5187, %v2543
      %v5190 = vunpack.c.l.s4 1966171168
      %v5191 = vunpack.c.0.s8 %v5190
      %v5192 = vlaneseq
      %v5193 = vshrl.u32 %v5192, 7
      %v5194 = vsub.s32 %v5191, %v5193
      %v5195 = vrot.slane %v5188, %v5194
      %v5196 = vcombine.low %v5195, %v2573
      %v5197 = vcombine.low %v1198, %v940
      %v5198 = vcombine.low %v949, %v1199
      %v5200 = vunpack.c.l.s4 1966171168
      %v5201 = vunpack.c.0.s8 %v5200
      %v5202 = vlaneseq
      %v5203 = vshrl.u32 %v5202, 7
      %v5204 = vsub.s32 %v5201, %v5203
      %v5205 = vrot.slane %v5197, %v5204
      %v5207 = vunpack.c.l.s4 1966171168
      %v5208 = vunpack.c.0.s8 %v5207
      %v5209 = vlaneseq
      %v5210 = vshrl.u32 %v5209, 7
      %v5211 = vsub.s32 %v5208, %v5210
      %v5212 = vrot.slane %v5198, %v5211
      %v5213 = vcombine.low %v5205, %v2592
      %v5214 = vcombine.low %v2599, %v5212
      %v5216 = vunpack.c.l.s4 1966171168
      %v5217 = vunpack.c.0.s8 %v5216
      %v5218 = vlaneseq
      %v5219 = vshrl.u32 %v5218, 7
      %v5220 = vsub.s32 %v5217, %v5219
      %v5221 = vrot.slane %v5213, %v5220
      %v5223 = vunpack.c.l.s4 1966171168
      %v5224 = vunpack.c.0.s8 %v5223
      %v5225 = vlaneseq
      %v5226 = vshrl.u32 %v5225, 7
      %v5227 = vsub.s32 %v5224, %v5226
      %v5228 = vrot.slane %v5214, %v5227
      %v5229 = vcombine.low %v5221, %v5228
      %v5230 = vcombine.low %v1200, %v1036
      %v5232 = vunpack.c.l.s4 1966171168
      %v5233 = vunpack.c.0.s8 %v5232
      %v5234 = vlaneseq
      %v5235 = vshrl.u32 %v5234, 7
      %v5236 = vsub.s32 %v5233, %v5235
      %v5237 = vrot.slane %v5230, %v5236
      %v5238 = vcombine.low %v2648, %v5237
      %v5240 = vunpack.c.l.s4 1966171168
      %v5241 = vunpack.c.0.s8 %v5240
      %v5242 = vlaneseq
      %v5243 = vshrl.u32 %v5242, 7
      %v5244 = vsub.s32 %v5241, %v5243
      %v5245 = vrot.slane %v5238, %v5244
      %v5246 = vcombine.low %v2664, %v5245
      %v5247 = vcombine.low %v1045, %v1201
      %v5249 = vunpack.c.l.s4 1966171168
      %v5250 = vunpack.c.0.s8 %v5249
      %v5251 = vlaneseq
      %v5252 = vshrl.u32 %v5251, 7
      %v5253 = vsub.s32 %v5250, %v5252
      %v5254 = vrot.slane %v5247, %v5253
      %v5255 = vcombine.low %v5254, %v2704
      %v5257 = vunpack.c.l.s4 1966171168
      %v5258 = vunpack.c.0.s8 %v5257
      %v5259 = vlaneseq
      %v5260 = vshrl.u32 %v5259, 7
      %v5261 = vsub.s32 %v5258, %v5260
      %v5262 = vrot.slane %v5255, %v5261
      %v5263 = vcombine.low %v2713, %v5262
      %v5264 = vcombine.low %v1202, %v1132
      %v5266 = vunpack.c.l.s4 1966171168
      %v5267 = vunpack.c.0.s8 %v5266
      %v5268 = vlaneseq
      %v5269 = vshrl.u32 %v5268, 7
      %v5270 = vsub.s32 %v5267, %v5269
      %v5271 = vrot.slane %v5264, %v5270
      %v5272 = vcombine.low %v5271, %v2753
      %v5274 = vunpack.c.l.s4 1966171168
      %v5275 = vunpack.c.0.s8 %v5274
      %v5276 = vlaneseq
      %v5277 = vshrl.u32 %v5276, 7
      %v5278 = vsub.s32 %v5275, %v5277
      %v5279 = vrot.slane %v5272, %v5278
      %v5280 = vcombine.low %v2762, %v5279
      %v5281 = vcombine.low %v1141, %v1203
      %v5283 = vunpack.c.l.s4 1966171168
      %v5284 = vunpack.c.0.s8 %v5283
      %v5285 = vlaneseq
      %v5286 = vshrl.u32 %v5285, 7
      %v5287 = vsub.s32 %v5284, %v5286
      %v5288 = vrot.slane %v5281, %v5287
      %v5289 = vcombine.low %v2781, %v5288
      %v5291 = vunpack.c.l.s4 1966171168
      %v5292 = vunpack.c.0.s8 %v5291
      %v5293 = vlaneseq
      %v5294 = vshrl.u32 %v5293, 7
      %v5295 = vsub.s32 %v5292, %v5294
      %v5296 = vrot.slane %v5289, %v5295
      %v5297 = vcombine.low %v5296, %v2818
      %v5298 = vcombine.low %v1204, %v2056
      %v5299 = vcombine.low %v2064, %v2066
      %v5300 = vcombine.low %v2049, %v2063
      %v5302 = vunpack.c.l.s4 1966171168
      %v5303 = vunpack.c.0.s8 %v5302
      %v5304 = vlaneseq
      %v5305 = vshrl.u32 %v5304, 7
      %v5306 = vsub.s32 %v5303, %v5305
      %v5307 = vrot.slane %v5298, %v5306
      %v5309 = vunpack.c.l.s4 1966171168
      %v5310 = vunpack.c.0.s8 %v5309
      %v5311 = vlaneseq
      %v5312 = vshrl.u32 %v5311, 7
      %v5313 = vsub.s32 %v5310, %v5312
      %v5314 = vrot.slane %v5299, %v5313
      %v5316 = vunpack.c.l.s4 1966171168
      %v5317 = vunpack.c.0.s8 %v5316
      %v5318 = vlaneseq
      %v5319 = vshrl.u32 %v5318, 7
      %v5320 = vsub.s32 %v5317, %v5319
      %v5321 = vrot.slane %v5300, %v5320
      %v5322 = vcombine.low %v2827, %v5307
      %v5323 = vcombine.low %v5314, %v5321
      %v5325 = vunpack.c.l.s4 1966171168
      %v5326 = vunpack.c.0.s8 %v5325
      %v5327 = vlaneseq
      %v5328 = vshrl.u32 %v5327, 7
      %v5329 = vsub.s32 %v5326, %v5328
      %v5330 = vrot.slane %v5322, %v5329
      %v5332 = vunpack.c.l.s4 1966171168
      %v5333 = vunpack.c.0.s8 %v5332
      %v5334 = vlaneseq
      %v5335 = vshrl.u32 %v5334, 7
      %v5336 = vsub.s32 %v5333, %v5335
      %v5337 = vrot.slane %v5323, %v5336
      %v5338 = vcombine.low %v5330, %v5337
      %v5339 = vcombine.low %v2065, %v2067
      %v5341 = vunpack.c.l.s4 1966171168
      %v5342 = vunpack.c.0.s8 %v5341
      %v5343 = vlaneseq
      %v5344 = vshrl.u32 %v5343, 7
      %v5345 = vsub.s32 %v5342, %v5344
      %v5346 = vrot.slane %v5339, %v5345
      %v5348 = vunpack.c.l.s4 1966171168
      %v5349 = vunpack.c.0.s8 %v5348
      %v5350 = vlaneseq
      %v5351 = vshrl.u32 %v5350, 7
      %v5352 = vsub.s32 %v5349, %v5351
      %v5353 = vrot.slane %v5346, %v5352
      %5354 = vrot.lane.b32.xlu0 %v5111, 20
      %v5355 = vpop.permute.xlu0 %5354
      %5356 = vrot.lane.b32.xlu0 %v5128, 20
      %v5357 = vpop.permute.xlu0 %5356
      %5358 = vrot.lane.b32.xlu0 %v5145, 20
      %v5359 = vpop.permute.xlu0 %5358
      %5360 = vrot.lane.b32.xlu0 %v5162, 20
      %v5361 = vpop.permute.xlu0 %5360
      %5362 = vrot.lane.b32.xlu0 %v5179, 20
      %v5363 = vpop.permute.xlu0 %5362
      %5364 = vrot.lane.b32.xlu0 %v5196, 20
      %v5365 = vpop.permute.xlu0 %5364
      %5366 = vrot.lane.b32.xlu0 %v5229, 20
      %v5367 = vpop.permute.xlu0 %5366
      %5368 = vrot.lane.b32.xlu0 %v5246, 20
      %v5369 = vpop.permute.xlu0 %5368
      %5370 = vrot.lane.b32.xlu0 %v5263, 20
      %v5371 = vpop.permute.xlu0 %5370
      %5372 = vrot.lane.b32.xlu0 %v5280, 20
      %v5373 = vpop.permute.xlu0 %5372
      %5374 = vrot.lane.b32.xlu0 %v5297, 20
      %v5375 = vpop.permute.xlu0 %5374
      %5376 = vrot.lane.b32.xlu0 %v5338, 20
      %v5377 = vpop.permute.xlu0 %5376
      %5378 = vrot.lane.b32.xlu0 %v5353, 20
      %v5379 = vpop.permute.xlu0 %5378
      %v5380 = vcombine.low %v2312, %v2340
      %v5381 = vcombine.low %v2347, %v2354
      %v5383 = vunpack.c.l.s4 1966171168
      %v5384 = vunpack.c.0.s8 %v5383
      %v5385 = vlaneseq
      %v5386 = vshrl.u32 %v5385, 7
      %v5387 = vsub.s32 %v5384, %v5386
      %v5388 = vrot.slane %v5380, %v5387
      %v5390 = vunpack.c.l.s4 1966171168
      %v5391 = vunpack.c.0.s8 %v5390
      %v5392 = vlaneseq
      %v5393 = vshrl.u32 %v5392, 7
      %v5394 = vsub.s32 %v5391, %v5393
      %v5395 = vrot.slane %v5381, %v5394
      %v5396 = vcombine.low %v5388, %v5395
      %v5397 = vcombine.low %v2361, %v2389
      %v5398 = vcombine.low %v2396, %v2403
      %v5400 = vunpack.c.l.s4 1966171168
      %v5401 = vunpack.c.0.s8 %v5400
      %v5402 = vlaneseq
      %v5403 = vshrl.u32 %v5402, 7
      %v5404 = vsub.s32 %v5401, %v5403
      %v5405 = vrot.slane %v5397, %v5404
      %v5407 = vunpack.c.l.s4 1966171168
      %v5408 = vunpack.c.0.s8 %v5407
      %v5409 = vlaneseq
      %v5410 = vshrl.u32 %v5409, 7
      %v5411 = vsub.s32 %v5408, %v5410
      %v5412 = vrot.slane %v5398, %v5411
      %v5413 = vcombine.low %v5405, %v5412
      %v5414 = vcombine.low %v2410, %v2438
      %v5415 = vcombine.low %v2445, %v2452
      %v5417 = vunpack.c.l.s4 1966171168
      %v5418 = vunpack.c.0.s8 %v5417
      %v5419 = vlaneseq
      %v5420 = vshrl.u32 %v5419, 7
      %v5421 = vsub.s32 %v5418, %v5420
      %v5422 = vrot.slane %v5414, %v5421
      %v5424 = vunpack.c.l.s4 1966171168
      %v5425 = vunpack.c.0.s8 %v5424
      %v5426 = vlaneseq
      %v5427 = vshrl.u32 %v5426, 7
      %v5428 = vsub.s32 %v5425, %v5427
      %v5429 = vrot.slane %v5415, %v5428
      %v5430 = vcombine.low %v5422, %v5429
      %v5431 = vcombine.low %v2459, %v2487
      %v5432 = vcombine.low %v2494, %v2501
      %v5434 = vunpack.c.l.s4 1966171168
      %v5435 = vunpack.c.0.s8 %v5434
      %v5436 = vlaneseq
      %v5437 = vshrl.u32 %v5436, 7
      %v5438 = vsub.s32 %v5435, %v5437
      %v5439 = vrot.slane %v5431, %v5438
      %v5441 = vunpack.c.l.s4 1966171168
      %v5442 = vunpack.c.0.s8 %v5441
      %v5443 = vlaneseq
      %v5444 = vshrl.u32 %v5443, 7
      %v5445 = vsub.s32 %v5442, %v5444
      %v5446 = vrot.slane %v5432, %v5445
      %v5447 = vcombine.low %v5439, %v5446
      %v5448 = vcombine.low %v2508, %v2536
      %v5449 = vcombine.low %v2543, %v2550
      %v5451 = vunpack.c.l.s4 1966171168
      %v5452 = vunpack.c.0.s8 %v5451
      %v5453 = vlaneseq
      %v5454 = vshrl.u32 %v5453, 7
      %v5455 = vsub.s32 %v5452, %v5454
      %v5456 = vrot.slane %v5448, %v5455
      %v5458 = vunpack.c.l.s4 1966171168
      %v5459 = vunpack.c.0.s8 %v5458
      %v5460 = vlaneseq
      %v5461 = vshrl.u32 %v5460, 7
      %v5462 = vsub.s32 %v5459, %v5461
      %v5463 = vrot.slane %v5449, %v5462
      %v5464 = vcombine.low %v5456, %v5463
      %v5465 = vcombine.low %v2557, %v2585
      %v5466 = vcombine.low %v2592, %v2599
      %v5468 = vunpack.c.l.s4 1966171168
      %v5469 = vunpack.c.0.s8 %v5468
      %v5470 = vlaneseq
      %v5471 = vshrl.u32 %v5470, 7
      %v5472 = vsub.s32 %v5469, %v5471
      %v5473 = vrot.slane %v5465, %v5472
      %v5475 = vunpack.c.l.s4 1966171168
      %v5476 = vunpack.c.0.s8 %v5475
      %v5477 = vlaneseq
      %v5478 = vshrl.u32 %v5477, 7
      %v5479 = vsub.s32 %v5476, %v5478
      %v5480 = vrot.slane %v5466, %v5479
      %v5481 = vcombine.low %v5473, %v5480
      %v5482 = vcombine.low %v2606, %v2634
      %v5483 = vcombine.low %v2641, %v2648
      %v5485 = vunpack.c.l.s4 1966171168
      %v5486 = vunpack.c.0.s8 %v5485
      %v5487 = vlaneseq
      %v5488 = vshrl.u32 %v5487, 7
      %v5489 = vsub.s32 %v5486, %v5488
      %v5490 = vrot.slane %v5482, %v5489
      %v5492 = vunpack.c.l.s4 1966171168
      %v5493 = vunpack.c.0.s8 %v5492
      %v5494 = vlaneseq
      %v5495 = vshrl.u32 %v5494, 7
      %v5496 = vsub.s32 %v5493, %v5495
      %v5497 = vrot.slane %v5483, %v5496
      %v5498 = vcombine.low %v5490, %v5497
      %v5499 = vcombine.low %v2655, %v2683
      %v5500 = vcombine.low %v2690, %v2697
      %v5502 = vunpack.c.l.s4 1966171168
      %v5503 = vunpack.c.0.s8 %v5502
      %v5504 = vlaneseq
      %v5505 = vshrl.u32 %v5504, 7
      %v5506 = vsub.s32 %v5503, %v5505
      %v5507 = vrot.slane %v5499, %v5506
      %v5509 = vunpack.c.l.s4 1966171168
      %v5510 = vunpack.c.0.s8 %v5509
      %v5511 = vlaneseq
      %v5512 = vshrl.u32 %v5511, 7
      %v5513 = vsub.s32 %v5510, %v5512
      %v5514 = vrot.slane %v5500, %v5513
      %v5515 = vcombine.low %v5507, %v5514
      %v5516 = vcombine.low %v2704, %v2732
      %v5517 = vcombine.low %v2739, %v2746
      %v5519 = vunpack.c.l.s4 1966171168
      %v5520 = vunpack.c.0.s8 %v5519
      %v5521 = vlaneseq
      %v5522 = vshrl.u32 %v5521, 7
      %v5523 = vsub.s32 %v5520, %v5522
      %v5524 = vrot.slane %v5516, %v5523
      %v5526 = vunpack.c.l.s4 1966171168
      %v5527 = vunpack.c.0.s8 %v5526
      %v5528 = vlaneseq
      %v5529 = vshrl.u32 %v5528, 7
      %v5530 = vsub.s32 %v5527, %v5529
      %v5531 = vrot.slane %v5517, %v5530
      %v5532 = vcombine.low %v5524, %v5531
      %v5533 = vcombine.low %v2753, %v2781
      %v5534 = vcombine.low %v2788, %v2795
      %v5536 = vunpack.c.l.s4 1966171168
      %v5537 = vunpack.c.0.s8 %v5536
      %v5538 = vlaneseq
      %v5539 = vshrl.u32 %v5538, 7
      %v5540 = vsub.s32 %v5537, %v5539
      %v5541 = vrot.slane %v5533, %v5540
      %v5543 = vunpack.c.l.s4 1966171168
      %v5544 = vunpack.c.0.s8 %v5543
      %v5545 = vlaneseq
      %v5546 = vshrl.u32 %v5545, 7
      %v5547 = vsub.s32 %v5544, %v5546
      %v5548 = vrot.slane %v5534, %v5547
      %v5549 = vcombine.low %v5541, %v5548
      %v5550 = vcombine.low %v2042, %v2056
      %v5552 = vunpack.c.l.s4 1966171168
      %v5553 = vunpack.c.0.s8 %v5552
      %v5554 = vlaneseq
      %v5555 = vshrl.u32 %v5554, 7
      %v5556 = vsub.s32 %v5553, %v5555
      %v5557 = vrot.slane %v5550, %v5556
      %v5558 = vcombine.low %v2802, %v2827
      %v5559 = vcombine.low %v5557, %v5314
      %v5561 = vunpack.c.l.s4 1966171168
      %v5562 = vunpack.c.0.s8 %v5561
      %v5563 = vlaneseq
      %v5564 = vshrl.u32 %v5563, 7
      %v5565 = vsub.s32 %v5562, %v5564
      %v5566 = vrot.slane %v5558, %v5565
      %v5568 = vunpack.c.l.s4 1966171168
      %v5569 = vunpack.c.0.s8 %v5568
      %v5570 = vlaneseq
      %v5571 = vshrl.u32 %v5570, 7
      %v5572 = vsub.s32 %v5569, %v5571
      %v5573 = vrot.slane %v5559, %v5572
      %v5574 = vcombine.low %v5566, %v5573
      %v5575 = vcombine.low %v2065, %v2149
      %v5576 = vcombine.low %v2163, %v2171
      %v5577 = vcombine.low %v2173, %v2156
      %v5579 = vunpack.c.l.s4 1966171168
      %v5580 = vunpack.c.0.s8 %v5579
      %v5581 = vlaneseq
      %v5582 = vshrl.u32 %v5581, 7
      %v5583 = vsub.s32 %v5580, %v5582
      %v5584 = vrot.slane %v5575, %v5583
      %v5586 = vunpack.c.l.s4 1966171168
      %v5587 = vunpack.c.0.s8 %v5586
      %v5588 = vlaneseq
      %v5589 = vshrl.u32 %v5588, 7
      %v5590 = vsub.s32 %v5587, %v5589
      %v5591 = vrot.slane %v5576, %v5590
      %v5593 = vunpack.c.l.s4 1966171168
      %v5594 = vunpack.c.0.s8 %v5593
      %v5595 = vlaneseq
      %v5596 = vshrl.u32 %v5595, 7
      %v5597 = vsub.s32 %v5594, %v5596
      %v5598 = vrot.slane %v5577, %v5597
      %v5599 = vcombine.low %v5321, %v5584
      %v5600 = vcombine.low %v5591, %v5598
      %v5602 = vunpack.c.l.s4 1966171168
      %v5603 = vunpack.c.0.s8 %v5602
      %v5604 = vlaneseq
      %v5605 = vshrl.u32 %v5604, 7
      %v5606 = vsub.s32 %v5603, %v5605
      %v5607 = vrot.slane %v5599, %v5606
      %v5609 = vunpack.c.l.s4 1966171168
      %v5610 = vunpack.c.0.s8 %v5609
      %v5611 = vlaneseq
      %v5612 = vshrl.u32 %v5611, 7
      %v5613 = vsub.s32 %v5610, %v5612
      %v5614 = vrot.slane %v5600, %v5613
      %v5615 = vcombine.low %v5607, %v5614
      %v5616 = vcombine.low %v2170, %v2172
      %v5618 = vunpack.c.l.s4 1966171168
      %v5619 = vunpack.c.0.s8 %v5618
      %v5620 = vlaneseq
      %v5621 = vshrl.u32 %v5620, 7
      %v5622 = vsub.s32 %v5619, %v5621
      %v5623 = vrot.slane %v5616, %v5622
      %v5625 = vunpack.c.l.s4 1966171168
      %v5626 = vunpack.c.0.s8 %v5625
      %v5627 = vlaneseq
      %v5628 = vshrl.u32 %v5627, 7
      %v5629 = vsub.s32 %v5626, %v5628
      %v5630 = vrot.slane %v5623, %v5629
      %5631 = vrot.lane.b32.xlu0 %v5396, 24
      %v5632 = vpop.permute.xlu0 %5631
      %5633 = vrot.lane.b32.xlu0 %v5413, 24
      %v5634 = vpop.permute.xlu0 %5633
      %5635 = vrot.lane.b32.xlu0 %v5430, 24
      %v5636 = vpop.permute.xlu0 %5635
      %5637 = vrot.lane.b32.xlu0 %v5447, 24
      %v5638 = vpop.permute.xlu0 %5637
      %5639 = vrot.lane.b32.xlu0 %v5464, 24
      %v5640 = vpop.permute.xlu0 %5639
      %5641 = vrot.lane.b32.xlu0 %v5481, 24
      %v5642 = vpop.permute.xlu0 %5641
      %5643 = vrot.lane.b32.xlu0 %v5498, 24
      %v5644 = vpop.permute.xlu0 %5643
      %5645 = vrot.lane.b32.xlu0 %v5515, 24
      %v5646 = vpop.permute.xlu0 %5645
      %5647 = vrot.lane.b32.xlu0 %v5532, 24
      %v5648 = vpop.permute.xlu0 %5647
      %5649 = vrot.lane.b32.xlu0 %v5549, 24
      %v5650 = vpop.permute.xlu0 %5649
      %5651 = vrot.lane.b32.xlu0 %v5574, 24
      %v5652 = vpop.permute.xlu0 %5651
      %5653 = vrot.lane.b32.xlu0 %v5615, 24
      %v5654 = vpop.permute.xlu0 %5653
      %5655 = vrot.lane.b32.xlu0 %v5630, 24
      %v5656 = vpop.permute.xlu0 %5655
      %v5657 = vcombine.low %v2915, %v2943
      %v5658 = vcombine.low %v2950, %v2957
      %v5660 = vunpack.c.l.s4 1966171168
      %v5661 = vunpack.c.0.s8 %v5660
      %v5662 = vlaneseq
      %v5663 = vshrl.u32 %v5662, 7
      %v5664 = vsub.s32 %v5661, %v5663
      %v5665 = vrot.slane %v5657, %v5664
      %v5667 = vunpack.c.l.s4 1966171168
      %v5668 = vunpack.c.0.s8 %v5667
      %v5669 = vlaneseq
      %v5670 = vshrl.u32 %v5669, 7
      %v5671 = vsub.s32 %v5668, %v5670
      %v5672 = vrot.slane %v5658, %v5671
      %v5673 = vcombine.low %v5665, %v5672
      %v5674 = vcombine.low %v2964, %v2992
      %v5675 = vcombine.low %v2999, %v3006
      %v5677 = vunpack.c.l.s4 1966171168
      %v5678 = vunpack.c.0.s8 %v5677
      %v5679 = vlaneseq
      %v5680 = vshrl.u32 %v5679, 7
      %v5681 = vsub.s32 %v5678, %v5680
      %v5682 = vrot.slane %v5674, %v5681
      %v5684 = vunpack.c.l.s4 1966171168
      %v5685 = vunpack.c.0.s8 %v5684
      %v5686 = vlaneseq
      %v5687 = vshrl.u32 %v5686, 7
      %v5688 = vsub.s32 %v5685, %v5687
      %v5689 = vrot.slane %v5675, %v5688
      %v5690 = vcombine.low %v5682, %v5689
      %v5691 = vcombine.low %v3013, %v3041
      %v5692 = vcombine.low %v3048, %v3055
      %v5694 = vunpack.c.l.s4 1966171168
      %v5695 = vunpack.c.0.s8 %v5694
      %v5696 = vlaneseq
      %v5697 = vshrl.u32 %v5696, 7
      %v5698 = vsub.s32 %v5695, %v5697
      %v5699 = vrot.slane %v5691, %v5698
      %v5701 = vunpack.c.l.s4 1966171168
      %v5702 = vunpack.c.0.s8 %v5701
      %v5703 = vlaneseq
      %v5704 = vshrl.u32 %v5703, 7
      %v5705 = vsub.s32 %v5702, %v5704
      %v5706 = vrot.slane %v5692, %v5705
      %v5707 = vcombine.low %v5699, %v5706
      %v5708 = vcombine.low %v3062, %v3090
      %v5709 = vcombine.low %v3097, %v3104
      %v5711 = vunpack.c.l.s4 1966171168
      %v5712 = vunpack.c.0.s8 %v5711
      %v5713 = vlaneseq
      %v5714 = vshrl.u32 %v5713, 7
      %v5715 = vsub.s32 %v5712, %v5714
      %v5716 = vrot.slane %v5708, %v5715
      %v5718 = vunpack.c.l.s4 1966171168
      %v5719 = vunpack.c.0.s8 %v5718
      %v5720 = vlaneseq
      %v5721 = vshrl.u32 %v5720, 7
      %v5722 = vsub.s32 %v5719, %v5721
      %v5723 = vrot.slane %v5709, %v5722
      %v5724 = vcombine.low %v5716, %v5723
      %v5725 = vcombine.low %v3111, %v3139
      %v5726 = vcombine.low %v3146, %v3153
      %v5728 = vunpack.c.l.s4 1966171168
      %v5729 = vunpack.c.0.s8 %v5728
      %v5730 = vlaneseq
      %v5731 = vshrl.u32 %v5730, 7
      %v5732 = vsub.s32 %v5729, %v5731
      %v5733 = vrot.slane %v5725, %v5732
      %v5735 = vunpack.c.l.s4 1966171168
      %v5736 = vunpack.c.0.s8 %v5735
      %v5737 = vlaneseq
      %v5738 = vshrl.u32 %v5737, 7
      %v5739 = vsub.s32 %v5736, %v5738
      %v5740 = vrot.slane %v5726, %v5739
      %v5741 = vcombine.low %v5733, %v5740
      %v5742 = vcombine.low %v3160, %v3188
      %v5743 = vcombine.low %v3195, %v3202
      %v5745 = vunpack.c.l.s4 1966171168
      %v5746 = vunpack.c.0.s8 %v5745
      %v5747 = vlaneseq
      %v5748 = vshrl.u32 %v5747, 7
      %v5749 = vsub.s32 %v5746, %v5748
      %v5750 = vrot.slane %v5742, %v5749
      %v5752 = vunpack.c.l.s4 1966171168
      %v5753 = vunpack.c.0.s8 %v5752
      %v5754 = vlaneseq
      %v5755 = vshrl.u32 %v5754, 7
      %v5756 = vsub.s32 %v5753, %v5755
      %v5757 = vrot.slane %v5743, %v5756
      %v5758 = vcombine.low %v5750, %v5757
      %v5759 = vcombine.low %v3209, %v3237
      %v5760 = vcombine.low %v3244, %v3251
      %v5762 = vunpack.c.l.s4 1966171168
      %v5763 = vunpack.c.0.s8 %v5762
      %v5764 = vlaneseq
      %v5765 = vshrl.u32 %v5764, 7
      %v5766 = vsub.s32 %v5763, %v5765
      %v5767 = vrot.slane %v5759, %v5766
      %v5769 = vunpack.c.l.s4 1966171168
      %v5770 = vunpack.c.0.s8 %v5769
      %v5771 = vlaneseq
      %v5772 = vshrl.u32 %v5771, 7
      %v5773 = vsub.s32 %v5770, %v5772
      %v5774 = vrot.slane %v5760, %v5773
      %v5775 = vcombine.low %v5767, %v5774
      %v5776 = vcombine.low %v3258, %v3286
      %v5777 = vcombine.low %v3293, %v3300
      %v5779 = vunpack.c.l.s4 1966171168
      %v5780 = vunpack.c.0.s8 %v5779
      %v5781 = vlaneseq
      %v5782 = vshrl.u32 %v5781, 7
      %v5783 = vsub.s32 %v5780, %v5782
      %v5784 = vrot.slane %v5776, %v5783
      %v5786 = vunpack.c.l.s4 1966171168
      %v5787 = vunpack.c.0.s8 %v5786
      %v5788 = vlaneseq
      %v5789 = vshrl.u32 %v5788, 7
      %v5790 = vsub.s32 %v5787, %v5789
      %v5791 = vrot.slane %v5777, %v5790
      %v5792 = vcombine.low %v5784, %v5791
      %v5793 = vcombine.low %v3307, %v3335
      %v5794 = vcombine.low %v3342, %v3349
      %v5796 = vunpack.c.l.s4 1966171168
      %v5797 = vunpack.c.0.s8 %v5796
      %v5798 = vlaneseq
      %v5799 = vshrl.u32 %v5798, 7
      %v5800 = vsub.s32 %v5797, %v5799
      %v5801 = vrot.slane %v5793, %v5800
      %v5803 = vunpack.c.l.s4 1966171168
      %v5804 = vunpack.c.0.s8 %v5803
      %v5805 = vlaneseq
      %v5806 = vshrl.u32 %v5805, 7
      %v5807 = vsub.s32 %v5804, %v5806
      %v5808 = vrot.slane %v5794, %v5807
      %v5809 = vcombine.low %v5801, %v5808
      %v5810 = vcombine.low %v3356, %v3384
      %v5811 = vcombine.low %v3391, %v3398
      %v5813 = vunpack.c.l.s4 1966171168
      %v5814 = vunpack.c.0.s8 %v5813
      %v5815 = vlaneseq
      %v5816 = vshrl.u32 %v5815, 7
      %v5817 = vsub.s32 %v5814, %v5816
      %v5818 = vrot.slane %v5810, %v5817
      %v5820 = vunpack.c.l.s4 1966171168
      %v5821 = vunpack.c.0.s8 %v5820
      %v5822 = vlaneseq
      %v5823 = vshrl.u32 %v5822, 7
      %v5824 = vsub.s32 %v5821, %v5823
      %v5825 = vrot.slane %v5811, %v5824
      %v5826 = vcombine.low %v5818, %v5825
      %v5827 = vcombine.low %v2076, %v2084
      %v5828 = vcombine.low %v2092, %v2100
      %v5830 = vunpack.c.l.s4 1966171168
      %v5831 = vunpack.c.0.s8 %v5830
      %v5832 = vlaneseq
      %v5833 = vshrl.u32 %v5832, 7
      %v5834 = vsub.s32 %v5831, %v5833
      %v5835 = vrot.slane %v5827, %v5834
      %v5837 = vunpack.c.l.s4 1966171168
      %v5838 = vunpack.c.0.s8 %v5837
      %v5839 = vlaneseq
      %v5840 = vshrl.u32 %v5839, 7
      %v5841 = vsub.s32 %v5838, %v5840
      %v5842 = vrot.slane %v5828, %v5841
      %v5843 = vcombine.low %v3405, %v3430
      %v5844 = vcombine.low %v5835, %v5842
      %v5846 = vunpack.c.l.s4 1966171168
      %v5847 = vunpack.c.0.s8 %v5846
      %v5848 = vlaneseq
      %v5849 = vshrl.u32 %v5848, 7
      %v5850 = vsub.s32 %v5847, %v5849
      %v5851 = vrot.slane %v5843, %v5850
      %v5853 = vunpack.c.l.s4 1966171168
      %v5854 = vunpack.c.0.s8 %v5853
      %v5855 = vlaneseq
      %v5856 = vshrl.u32 %v5855, 7
      %v5857 = vsub.s32 %v5854, %v5856
      %v5858 = vrot.slane %v5844, %v5857
      %v5859 = vcombine.low %v5851, %v5858
      %v5860 = vcombine.low %v2108, %v2116
      %v5861 = vcombine.low %v2124, %v2183
      %v5862 = vcombine.low %v2191, %v2199
      %v5863 = vcombine.low %v2207, %v2215
      %v5865 = vunpack.c.l.s4 1966171168
      %v5866 = vunpack.c.0.s8 %v5865
      %v5867 = vlaneseq
      %v5868 = vshrl.u32 %v5867, 7
      %v5869 = vsub.s32 %v5866, %v5868
      %v5870 = vrot.slane %v5860, %v5869
      %v5872 = vunpack.c.l.s4 1966171168
      %v5873 = vunpack.c.0.s8 %v5872
      %v5874 = vlaneseq
      %v5875 = vshrl.u32 %v5874, 7
      %v5876 = vsub.s32 %v5873, %v5875
      %v5877 = vrot.slane %v5861, %v5876
      %v5879 = vunpack.c.l.s4 1966171168
      %v5880 = vunpack.c.0.s8 %v5879
      %v5881 = vlaneseq
      %v5882 = vshrl.u32 %v5881, 7
      %v5883 = vsub.s32 %v5880, %v5882
      %v5884 = vrot.slane %v5862, %v5883
      %v5886 = vunpack.c.l.s4 1966171168
      %v5887 = vunpack.c.0.s8 %v5886
      %v5888 = vlaneseq
      %v5889 = vshrl.u32 %v5888, 7
      %v5890 = vsub.s32 %v5887, %v5889
      %v5891 = vrot.slane %v5863, %v5890
      %v5892 = vcombine.low %v5870, %v5877
      %v5893 = vcombine.low %v5884, %v5891
      %v5895 = vunpack.c.l.s4 1966171168
      %v5896 = vunpack.c.0.s8 %v5895
      %v5897 = vlaneseq
      %v5898 = vshrl.u32 %v5897, 7
      %v5899 = vsub.s32 %v5896, %v5898
      %v5900 = vrot.slane %v5892, %v5899
      %v5902 = vunpack.c.l.s4 1966171168
      %v5903 = vunpack.c.0.s8 %v5902
      %v5904 = vlaneseq
      %v5905 = vshrl.u32 %v5904, 7
      %v5906 = vsub.s32 %v5903, %v5905
      %v5907 = vrot.slane %v5893, %v5906
      %v5908 = vcombine.low %v5900, %v5907
      %v5909 = vcombine.low %v2223, %v2231
      %v5911 = vunpack.c.l.s4 1966171168
      %v5912 = vunpack.c.0.s8 %v5911
      %v5913 = vlaneseq
      %v5914 = vshrl.u32 %v5913, 7
      %v5915 = vsub.s32 %v5912, %v5914
      %v5916 = vrot.slane %v5909, %v5915
      %v5918 = vunpack.c.l.s4 1966171168
      %v5919 = vunpack.c.0.s8 %v5918
      %v5920 = vlaneseq
      %v5921 = vshrl.u32 %v5920, 7
      %v5922 = vsub.s32 %v5919, %v5921
      %v5923 = vrot.slane %v5916, %v5922
      %5924 = vrot.lane.b32.xlu0 %v5673, 28
      %v5925 = vpop.permute.xlu0 %5924
      %5926 = vrot.lane.b32.xlu0 %v5690, 28
      %v5927 = vpop.permute.xlu0 %5926
      %5928 = vrot.lane.b32.xlu0 %v5707, 28
      %v5929 = vpop.permute.xlu0 %5928
      %5930 = vrot.lane.b32.xlu0 %v5724, 28
      %v5931 = vpop.permute.xlu0 %5930
      %5932 = vrot.lane.b32.xlu0 %v5741, 28
      %v5933 = vpop.permute.xlu0 %5932
      %5934 = vrot.lane.b32.xlu0 %v5758, 28
      %v5935 = vpop.permute.xlu0 %5934
      %5936 = vrot.lane.b32.xlu0 %v5775, 28
      %v5937 = vpop.permute.xlu0 %5936
      %5938 = vrot.lane.b32.xlu0 %v5792, 28
      %v5939 = vpop.permute.xlu0 %5938
      %5940 = vrot.lane.b32.xlu0 %v5809, 28
      %v5941 = vpop.permute.xlu0 %5940
      %5942 = vrot.lane.b32.xlu0 %v5826, 28
      %v5943 = vpop.permute.xlu0 %5942
      %5944 = vrot.lane.b32.xlu0 %v5859, 28
      %v5945 = vpop.permute.xlu0 %5944
      %5946 = vrot.lane.b32.xlu0 %v5908, 28
      %v5947 = vpop.permute.xlu0 %5946
      %5948 = vrot.lane.b32.xlu0 %v5923, 28
      %v5949 = vpop.permute.xlu0 %5948
      %v5950 = vcombine.low %v3579, %v3586
      %v5952 = vunpack.c.l.s4 1966171168
      %v5953 = vunpack.c.0.s8 %v5952
      %v5954 = vlaneseq
      %v5955 = vshrl.u32 %v5954, 7
      %v5956 = vsub.s32 %v5953, %v5955
      %v5957 = vrot.slane %v5950, %v5956
      %v5958 = vcombine.low %v4142, %v5957
      %v5959 = vcombine.low %v3628, %v3635
      %v5961 = vunpack.c.l.s4 1966171168
      %v5962 = vunpack.c.0.s8 %v5961
      %v5963 = vlaneseq
      %v5964 = vshrl.u32 %v5963, 7
      %v5965 = vsub.s32 %v5962, %v5964
      %v5966 = vrot.slane %v5959, %v5965
      %v5967 = vcombine.low %v4167, %v5966
      %v5968 = vcombine.low %v3677, %v3684
      %v5970 = vunpack.c.l.s4 1966171168
      %v5971 = vunpack.c.0.s8 %v5970
      %v5972 = vlaneseq
      %v5973 = vshrl.u32 %v5972, 7
      %v5974 = vsub.s32 %v5971, %v5973
      %v5975 = vrot.slane %v5968, %v5974
      %v5976 = vcombine.low %v4192, %v5975
      %v5977 = vcombine.low %v3691, %v3719
      %v5979 = vunpack.c.l.s4 1966171168
      %v5980 = vunpack.c.0.s8 %v5979
      %v5981 = vlaneseq
      %v5982 = vshrl.u32 %v5981, 7
      %v5983 = vsub.s32 %v5980, %v5982
      %v5984 = vrot.slane %v5977, %v5983
      %v5985 = vcombine.low %v5984, %v4224
      %v5986 = vcombine.low %v3740, %v3768
      %v5988 = vunpack.c.l.s4 1966171168
      %v5989 = vunpack.c.0.s8 %v5988
      %v5990 = vlaneseq
      %v5991 = vshrl.u32 %v5990, 7
      %v5992 = vsub.s32 %v5989, %v5991
      %v5993 = vrot.slane %v5986, %v5992
      %v5994 = vcombine.low %v5993, %v4249
      %v5995 = vcombine.low %v3789, %v3817
      %v5997 = vunpack.c.l.s4 1966171168
      %v5998 = vunpack.c.0.s8 %v5997
      %v5999 = vlaneseq
      %v6000 = vshrl.u32 %v5999, 7
      %v6001 = vsub.s32 %v5998, %v6000
      %v6002 = vrot.slane %v5995, %v6001
      %v6003 = vcombine.low %v6002, %v4274
      %v6004 = vcombine.low %v3838, %v3866
      %v6005 = vcombine.low %v3873, %v3880
      %v6007 = vunpack.c.l.s4 1966171168
      %v6008 = vunpack.c.0.s8 %v6007
      %v6009 = vlaneseq
      %v6010 = vshrl.u32 %v6009, 7
      %v6011 = vsub.s32 %v6008, %v6010
      %v6012 = vrot.slane %v6004, %v6011
      %v6014 = vunpack.c.l.s4 1966171168
      %v6015 = vunpack.c.0.s8 %v6014
      %v6016 = vlaneseq
      %v6017 = vshrl.u32 %v6016, 7
      %v6018 = vsub.s32 %v6015, %v6017
      %v6019 = vrot.slane %v6005, %v6018
      %v6020 = vcombine.low %v6012, %v6019
      %v6021 = vcombine.low %v3922, %v3929
      %v6023 = vunpack.c.l.s4 1966171168
      %v6024 = vunpack.c.0.s8 %v6023
      %v6025 = vlaneseq
      %v6026 = vshrl.u32 %v6025, 7
      %v6027 = vsub.s32 %v6024, %v6026
      %v6028 = vrot.slane %v6021, %v6027
      %v6029 = vcombine.low %v4325, %v6028
      %v6030 = vcombine.low %v3971, %v3978
      %v6032 = vunpack.c.l.s4 1966171168
      %v6033 = vunpack.c.0.s8 %v6032
      %v6034 = vlaneseq
      %v6035 = vshrl.u32 %v6034, 7
      %v6036 = vsub.s32 %v6033, %v6035
      %v6037 = vrot.slane %v6030, %v6036
      %v6038 = vcombine.low %v4350, %v6037
      %v6039 = vcombine.low %v4020, %v4027
      %v6041 = vunpack.c.l.s4 1966171168
      %v6042 = vunpack.c.0.s8 %v6041
      %v6043 = vlaneseq
      %v6044 = vshrl.u32 %v6043, 7
      %v6045 = vsub.s32 %v6042, %v6044
      %v6046 = vrot.slane %v6039, %v6045
      %v6047 = vcombine.low %v4375, %v6046
      %v6048 = vcombine.low %v4034, %v4059
      %v6050 = vunpack.c.l.s4 1966171168
      %v6051 = vunpack.c.0.s8 %v6050
      %v6052 = vlaneseq
      %v6053 = vshrl.u32 %v6052, 7
      %v6054 = vsub.s32 %v6051, %v6053
      %v6055 = vrot.slane %v6048, %v6054
      %v6056 = vcombine.low %v6055, %v4423
      %v6057 = vcombine.low %v2067, %v2163
      %v6058 = vcombine.low %v2171, %v2173
      %v6059 = vcombine.low %v2156, %v2170
      %v6061 = vunpack.c.l.s4 1966171168
      %v6062 = vunpack.c.0.s8 %v6061
      %v6063 = vlaneseq
      %v6064 = vshrl.u32 %v6063, 7
      %v6065 = vsub.s32 %v6062, %v6064
      %v6066 = vrot.slane %v6057, %v6065
      %v6068 = vunpack.c.l.s4 1966171168
      %v6069 = vunpack.c.0.s8 %v6068
      %v6070 = vlaneseq
      %v6071 = vshrl.u32 %v6070, 7
      %v6072 = vsub.s32 %v6069, %v6071
      %v6073 = vrot.slane %v6058, %v6072
      %v6075 = vunpack.c.l.s4 1966171168
      %v6076 = vunpack.c.0.s8 %v6075
      %v6077 = vlaneseq
      %v6078 = vshrl.u32 %v6077, 7
      %v6079 = vsub.s32 %v6076, %v6078
      %v6080 = vrot.slane %v6059, %v6079
      %v6081 = vcombine.low %v4432, %v6066
      %v6082 = vcombine.low %v6073, %v6080
      %v6084 = vunpack.c.l.s4 1966171168
      %v6085 = vunpack.c.0.s8 %v6084
      %v6086 = vlaneseq
      %v6087 = vshrl.u32 %v6086, 7
      %v6088 = vsub.s32 %v6085, %v6087
      %v6089 = vrot.slane %v6081, %v6088
      %v6091 = vunpack.c.l.s4 1966171168
      %v6092 = vunpack.c.0.s8 %v6091
      %v6093 = vlaneseq
      %v6094 = vshrl.u32 %v6093, 7
      %v6095 = vsub.s32 %v6092, %v6094
      %v6096 = vrot.slane %v6082, %v6095
      %v6097 = vcombine.low %v6089, %v6096
      %v6098 = vcombine.low %v2172, %v2174
      %v6100 = vunpack.c.l.s4 1966171168
      %v6101 = vunpack.c.0.s8 %v6100
      %v6102 = vlaneseq
      %v6103 = vshrl.u32 %v6102, 7
      %v6104 = vsub.s32 %v6101, %v6103
      %v6105 = vrot.slane %v6098, %v6104
      %v6107 = vunpack.c.l.s4 1966171168
      %v6108 = vunpack.c.0.s8 %v6107
      %v6109 = vlaneseq
      %v6110 = vshrl.u32 %v6109, 7
      %v6111 = vsub.s32 %v6108, %v6110
      %v6112 = vrot.slane %v6105, %v6111
      %6113 = vrot.lane.b32.xlu0 %v5958, 32
      %v6114 = vpop.permute.xlu0 %6113
      %6115 = vrot.lane.b32.xlu0 %v5967, 32
      %v6116 = vpop.permute.xlu0 %6115
      %6117 = vrot.lane.b32.xlu0 %v5976, 32
      %v6118 = vpop.permute.xlu0 %6117
      %6119 = vrot.lane.b32.xlu0 %v5985, 32
      %v6120 = vpop.permute.xlu0 %6119
      %6121 = vrot.lane.b32.xlu0 %v5994, 32
      %v6122 = vpop.permute.xlu0 %6121
      %6123 = vrot.lane.b32.xlu0 %v6003, 32
      %v6124 = vpop.permute.xlu0 %6123
      %6125 = vrot.lane.b32.xlu0 %v6020, 32
      %v6126 = vpop.permute.xlu0 %6125
      %6127 = vrot.lane.b32.xlu0 %v6029, 32
      %v6128 = vpop.permute.xlu0 %6127
      %6129 = vrot.lane.b32.xlu0 %v6038, 32
      %v6130 = vpop.permute.xlu0 %6129
      %6131 = vrot.lane.b32.xlu0 %v6047, 32
      %v6132 = vpop.permute.xlu0 %6131
      %6133 = vrot.lane.b32.xlu0 %v6056, 32
      %v6134 = vpop.permute.xlu0 %6133
      %6135 = vrot.lane.b32.xlu0 %v6097, 32
      %v6136 = vpop.permute.xlu0 %6135
      %6137 = vrot.lane.b32.xlu0 %v6112, 32
      %v6138 = vpop.permute.xlu0 %6137
      %vm6139 = vcmask 31744
      %v6142 = vsel %vm6139, %v2280, %v3439
      %v6145 = vsel %vm6139, %v2329, %v3441
      %v6148 = vsel %vm6139, %v2378, %v3443
      %v6151 = vsel %vm6139, %v2427, %v3445
      %v6154 = vsel %vm6139, %v2476, %v3447
      %v6157 = vsel %vm6139, %v2525, %v3449
      %v6160 = vsel %vm6139, %v2574, %v3451
      %v6163 = vsel %vm6139, %v2623, %v3453
      %v6166 = vsel %vm6139, %v2672, %v3455
      %v6169 = vsel %vm6139, %v2721, %v3457
      %v6172 = vsel %vm6139, %v2770, %v3459
      %v6175 = vsel %vm6139, %v2819, %v3461
      %v6178 = vsel %vm6139, %v2834, %v3463
      %vm6179 = vcmask 64512
      %v6181 = vsel %vm6179, %v6142, %v4068
      %v6183 = vsel %vm6179, %v6145, %v4070
      %v6185 = vsel %vm6179, %v6148, %v4072
      %v6187 = vsel %vm6179, %v6151, %v4074
      %v6189 = vsel %vm6179, %v6154, %v4076
      %v6191 = vsel %vm6179, %v6157, %v4078
      %v6193 = vsel %vm6179, %v6160, %v4080
      %v6195 = vsel %vm6179, %v6163, %v4082
      %v6197 = vsel %vm6179, %v6166, %v4084
      %v6199 = vsel %vm6179, %v6169, %v4086
      %v6201 = vsel %vm6179, %v6172, %v4088
      %v6203 = vsel %vm6179, %v6175, %v4090
      %v6205 = vsel %vm6179, %v6178, %v4092
      %vm6206 = vcmask 97280
      %v6208 = vsel %vm6206, %v6181, %v4441
      %v6210 = vsel %vm6206, %v6183, %v4443
      %v6212 = vsel %vm6206, %v6185, %v4445
      %v6214 = vsel %vm6206, %v6187, %v4447
      %v6216 = vsel %vm6206, %v6189, %v4449
      %v6218 = vsel %vm6206, %v6191, %v4451
      %v6220 = vsel %vm6206, %v6193, %v4453
      %v6222 = vsel %vm6206, %v6195, %v4455
      %v6224 = vsel %vm6206, %v6197, %v4457
      %v6226 = vsel %vm6206, %v6199, %v4459
      %v6228 = vsel %vm6206, %v6201, %v4461
      %v6230 = vsel %vm6206, %v6203, %v4463
      %v6232 = vsel %vm6206, %v6205, %v4465
      %vm6233 = vcmask 130048
      %v6235 = vsel %vm6233, %v6208, %v5070
      %v6237 = vsel %vm6233, %v6210, %v5072
      %v6239 = vsel %vm6233, %v6212, %v5074
      %v6241 = vsel %vm6233, %v6214, %v5076
      %v6243 = vsel %vm6233, %v6216, %v5078
      %v6245 = vsel %vm6233, %v6218, %v5080
      %v6247 = vsel %vm6233, %v6220, %v5082
      %v6249 = vsel %vm6233, %v6222, %v5084
      %v6251 = vsel %vm6233, %v6224, %v5086
      %v6253 = vsel %vm6233, %v6226, %v5088
      %v6255 = vsel %vm6233, %v6228, %v5090
      %v6257 = vsel %vm6233, %v6230, %v5092
      %v6259 = vsel %vm6233, %v6232, %v5094
      %vm6260 = vcmask 162816
      %v6262 = vsel %vm6260, %v6235, %v5355
      %v6264 = vsel %vm6260, %v6237, %v5357
      %v6266 = vsel %vm6260, %v6239, %v5359
      %v6268 = vsel %vm6260, %v6241, %v5361
      %v6270 = vsel %vm6260, %v6243, %v5363
      %v6272 = vsel %vm6260, %v6245, %v5365
      %v6274 = vsel %vm6260, %v6247, %v5367
      %v6276 = vsel %vm6260, %v6249, %v5369
      %v6278 = vsel %vm6260, %v6251, %v5371
      %v6280 = vsel %vm6260, %v6253, %v5373
      %v6282 = vsel %vm6260, %v6255, %v5375
      %v6284 = vsel %vm6260, %v6257, %v5377
      %v6286 = vsel %vm6260, %v6259, %v5379
      %vm6287 = vcmask 195584
      %v6289 = vsel %vm6287, %v6262, %v5632
      %v6291 = vsel %vm6287, %v6264, %v5634
      %v6293 = vsel %vm6287, %v6266, %v5636
      %v6295 = vsel %vm6287, %v6268, %v5638
      %v6297 = vsel %vm6287, %v6270, %v5640
      %v6299 = vsel %vm6287, %v6272, %v5642
      %v6301 = vsel %vm6287, %v6274, %v5644
      %v6303 = vsel %vm6287, %v6276, %v5646
      %v6305 = vsel %vm6287, %v6278, %v5648
      %v6307 = vsel %vm6287, %v6280, %v5650
      %v6309 = vsel %vm6287, %v6282, %v5652
      %v6311 = vsel %vm6287, %v6284, %v5654
      %v6313 = vsel %vm6287, %v6286, %v5656
      %vm6314 = vcmask 228352
      %v6316 = vsel %vm6314, %v6289, %v5925
      %v6318 = vsel %vm6314, %v6291, %v5927
      %v6320 = vsel %vm6314, %v6293, %v5929
      %v6322 = vsel %vm6314, %v6295, %v5931
      %v6324 = vsel %vm6314, %v6297, %v5933
      %v6326 = vsel %vm6314, %v6299, %v5935
      %v6328 = vsel %vm6314, %v6301, %v5937
      %v6330 = vsel %vm6314, %v6303, %v5939
      %v6332 = vsel %vm6314, %v6305, %v5941
      %v6334 = vsel %vm6314, %v6307, %v5943
      %v6336 = vsel %vm6314, %v6309, %v5945
      %v6338 = vsel %vm6314, %v6311, %v5947
      %v6340 = vsel %vm6314, %v6313, %v5949
      %vm6341 = vcmask 261120
      %v6343 = vsel %vm6341, %v6316, %v6114
      %v6345 = vsel %vm6341, %v6318, %v6116
      %v6347 = vsel %vm6341, %v6320, %v6118
      %v6349 = vsel %vm6341, %v6322, %v6120
      %v6351 = vsel %vm6341, %v6324, %v6122
      %v6353 = vsel %vm6341, %v6326, %v6124
      %v6355 = vsel %vm6341, %v6328, %v6126
      %v6357 = vsel %vm6341, %v6330, %v6128
      %v6359 = vsel %vm6341, %v6332, %v6130
      %v6361 = vsel %vm6341, %v6334, %v6132
      %v6363 = vsel %vm6341, %v6336, %v6134
      %v6365 = vsel %vm6341, %v6338, %v6136
      %v6367 = vsel %vm6341, %v6340, %v6138
      %v6368 = vld [vmem:[%s311] sm:$0xf]
      %v6369 = vld [vmem:[%s311 + $0x4] sm:$0xf]
      %v6370 = vld [vmem:[%s311 + $0x8] sm:$0xf]
      %v6371 = vld [vmem:[%s311 + $0xc] sm:$0xf]
      %v6372 = vld [vmem:[%s311 + $0x10] sm:$0x3]
      %v6378 = vunpack.c.l.b16 %v6368
      %v6379 = vunpack.c.l.b16 %v6369
      %v6380 = vunpack.c.l.b16 %v6370
      %v6381 = vunpack.c.l.b16 %v6371
      %v6382 = vunpack.c.l.b16 %v6372
      %v6383 = vpack.c.b16 %v6379, %v6378
      %v6384 = vpack.c.b16 %v6381, %v6380
      %v6385 = vpack.c.b16 %v6382, %v6382
      %vm6388 = vcmask 293888
      %v6389 = vsel %vm6388, %v6343, 0
      %v6391 = vsel %vm6388, %v6345, 0
      %v6393 = vsel %vm6388, %v6347, 0
      %v6395 = vsel %vm6388, %v6349, 0
      %v6397 = vsel %vm6388, %v6351, 0
      %v6399 = vsel %vm6388, %v6353, 0
      %v6401 = vsel %vm6388, %v6355, 0
      %v6403 = vsel %vm6388, %v6357, 0
      %v6405 = vsel %vm6388, %v6359, 0
      %v6407 = vsel %vm6388, %v6361, 0
      %v6409 = vsel %vm6388, %v6363, 0
      %v6411 = vsel %vm6388, %v6365, 0
      %v6413 = vsel %vm6388, %v6367, 0
      %vm6415 = vcmask 1041408
      %v6417 = vsel %vm6415, %v6385, 0
      %6419 = vmatprep.subr.bf16.mxu0 0
      %6420 = vmatpush1.bf16.msra.mxu0 %v6383
      %6421 = vmatprep.subr.bf16.mxu0 0
      %6422 = vmatpush1.bf16.msra.mxu0 %v6384
      %6423 = vmatprep.subr.bf16.mxu0 0
      %6424 = vmatpush1.bf16.msra.mxu0 %v6417
      %6425 = vmatprep.subr.bf16.mxu0 0
      %6426 = vmatpush1.bf16.msra.mxu0 0
      %6427 = vmatprep.subr.bf16.mxu0 0
      %6428 = vmatpush1.bf16.msra.mxu0 0
      %6429 = vmatprep.subr.bf16.mxu0 0
      %6430 = vmatpush1.bf16.msra.mxu0 0
      %6431 = vmatprep.subr.bf16.mxu0 0
      %6432 = vmatpush1.bf16.msra.mxu0 0
      %6433 = vmatprep.subr.bf16.mxu0 0
      %6434 = vmatpush1.bf16.msra.mxu0 0
      %6435 = vmatprep.subr.bf16.mxu0 0
      %6436 = vmatpush1.bf16.msra.mxu0 0
      %6437 = vmatprep.subr.bf16.mxu0 0
      %6438 = vmatpush1.bf16.msra.mxu0 0
      %6439 = vmatprep.subr.bf16.mxu0 0
      %6440 = vmatpush1.bf16.msra.mxu0 0
      %6441 = vmatprep.subr.bf16.mxu0 0
      %6442 = vmatpush1.bf16.msra.mxu0 0
      %6443 = vmatprep.subr.bf16.mxu0 0
      %6444 = vmatpush1.bf16.msra.mxu0 0
      %6445 = vmatprep.subr.bf16.mxu0 0
      %6446 = vmatpush1.bf16.msra.mxu0 0
      %6447 = vmatprep.subr.bf16.mxu0 0
      %6448 = vmatpush1.bf16.msra.mxu0 0
      %6449 = vmatprep.subr.bf16.mxu0 0
      %6450 = vmatpush1.bf16.msra.mxu0 0
      %6451 = vmatprep.mubr.bf16.mxu0 0
      %6452 = vmatmul.mubr.bf16.gmra.mrb[0].mxu0 %v6389
      %v6453 = vpop.f32.mrb[0].mxu0
      %v6454 = vadd.f32 0.0, %v6453
      %v6455 = vpop.f32.mrb[0].mxu0
      %v6456 = vpop.f32.mrb[0].mxu0
      %v6457 = vadd.f32 0.0, %v6456
      %v6458 = vpop.f32.mrb[0].mxu0
      %6459 = vmatprep.mubr.bf16.mxu0 0
      %6460 = vmatmul.mubr.bf16.gmra.mrb[0].mxu0 %v6391
      %v6461 = vpop.f32.mrb[0].mxu0
      %v6462 = vadd.f32 0.0, %v6461
      %v6463 = vpop.f32.mrb[0].mxu0
      %v6464 = vpop.f32.mrb[0].mxu0
      %v6465 = vadd.f32 0.0, %v6464
      %v6466 = vpop.f32.mrb[0].mxu0
      %6467 = vmatprep.mubr.bf16.mxu0 0
      %6468 = vmatmul.mubr.bf16.gmra.mrb[0].mxu0 %v6393
      %v6469 = vpop.f32.mrb[0].mxu0
      %v6470 = vadd.f32 0.0, %v6469
      %v6471 = vpop.f32.mrb[0].mxu0
      %v6472 = vpop.f32.mrb[0].mxu0
      %v6473 = vadd.f32 0.0, %v6472
      %v6474 = vpop.f32.mrb[0].mxu0
      %6475 = vmatprep.mubr.bf16.mxu0 0
      %6476 = vmatmul.mubr.bf16.gmra.mrb[0].mxu0 %v6395
      %v6477 = vpop.f32.mrb[0].mxu0
      %v6478 = vadd.f32 0.0, %v6477
      %v6479 = vpop.f32.mrb[0].mxu0
      %v6480 = vpop.f32.mrb[0].mxu0
      %v6481 = vadd.f32 0.0, %v6480
      %v6482 = vpop.f32.mrb[0].mxu0
      %6483 = vmatprep.mubr.bf16.mxu0 0
      %6484 = vmatmul.mubr.bf16.gmra.mrb[0].mxu0 %v6397
      %v6485 = vpop.f32.mrb[0].mxu0
      %v6486 = vadd.f32 0.0, %v6485
      %v6487 = vpop.f32.mrb[0].mxu0
      %v6488 = vpop.f32.mrb[0].mxu0
      %v6489 = vadd.f32 0.0, %v6488
      %v6490 = vpop.f32.mrb[0].mxu0
      %6491 = vmatprep.mubr.bf16.mxu0 0
      %6492 = vmatmul.mubr.bf16.gmra.mrb[0].mxu0 %v6399
      %v6493 = vpop.f32.mrb[0].mxu0
      %v6494 = vadd.f32 0.0, %v6493
      %v6495 = vpop.f32.mrb[0].mxu0
      %v6496 = vpop.f32.mrb[0].mxu0
      %v6497 = vadd.f32 0.0, %v6496
      %v6498 = vpop.f32.mrb[0].mxu0
      %6499 = vmatprep.mubr.bf16.mxu0 0
      %6500 = vmatmul.mubr.bf16.gmra.mrb[0].mxu0 %v6401
      %v6501 = vpop.f32.mrb[0].mxu0
      %v6502 = vadd.f32 0.0, %v6501
      %v6503 = vpop.f32.mrb[0].mxu0
      %v6504 = vpop.f32.mrb[0].mxu0
      %v6505 = vadd.f32 0.0, %v6504
      %v6506 = vpop.f32.mrb[0].mxu0
      %6507 = vmatprep.mubr.bf16.mxu0 0
      %6508 = vmatmul.mubr.bf16.gmra.mrb[0].mxu0 %v6403
      %v6509 = vpop.f32.mrb[0].mxu0
      %v6510 = vadd.f32 0.0, %v6509
      %v6511 = vpop.f32.mrb[0].mxu0
      %v6512 = vpop.f32.mrb[0].mxu0
      %v6513 = vadd.f32 0.0, %v6512
      %v6514 = vpop.f32.mrb[0].mxu0
      %6515 = vmatprep.mubr.bf16.mxu0 0
      %6516 = vmatmul.mubr.bf16.gmra.mrb[0].mxu0 %v6405
      %v6517 = vpop.f32.mrb[0].mxu0
      %v6518 = vadd.f32 0.0, %v6517
      %v6519 = vpop.f32.mrb[0].mxu0
      %v6520 = vpop.f32.mrb[0].mxu0
      %v6521 = vadd.f32 0.0, %v6520
      %v6522 = vpop.f32.mrb[0].mxu0
      %6523 = vmatprep.mubr.bf16.mxu0 0
      %6524 = vmatmul.mubr.bf16.gmra.mrb[0].mxu0 %v6407
      %v6525 = vpop.f32.mrb[0].mxu0
      %v6526 = vadd.f32 0.0, %v6525
      %v6527 = vpop.f32.mrb[0].mxu0
      %v6528 = vpop.f32.mrb[0].mxu0
      %v6529 = vadd.f32 0.0, %v6528
      %v6530 = vpop.f32.mrb[0].mxu0
      %6531 = vmatprep.mubr.bf16.mxu0 0
      %6532 = vmatmul.mubr.bf16.gmra.mrb[0].mxu0 %v6409
      %v6533 = vpop.f32.mrb[0].mxu0
      %v6534 = vadd.f32 0.0, %v6533
      %v6535 = vpop.f32.mrb[0].mxu0
      %v6536 = vpop.f32.mrb[0].mxu0
      %v6537 = vadd.f32 0.0, %v6536
      %v6538 = vpop.f32.mrb[0].mxu0
      %6539 = vmatprep.mubr.bf16.mxu0 0
      %6540 = vmatmul.mubr.bf16.gmra.mrb[0].mxu0 %v6411
      %v6541 = vpop.f32.mrb[0].mxu0
      %v6542 = vadd.f32 0.0, %v6541
      %v6543 = vpop.f32.mrb[0].mxu0
      %v6544 = vpop.f32.mrb[0].mxu0
      %v6545 = vadd.f32 0.0, %v6544
      %v6546 = vpop.f32.mrb[0].mxu0
      %6547 = vmatprep.mubr.bf16.mxu0 0
      %6548 = vmatmul.mubr.bf16.gmra.mrb[0].mxu0 %v6413
      %v6549 = vpop.f32.mrb[0].mxu0
      %v6550 = vadd.f32 0.0, %v6549
      %v6551 = vpop.f32.mrb[0].mxu0
      %v6552 = vpop.f32.mrb[0].mxu0
      %v6553 = vpop.f32.mrb[0].mxu0
      %6554 = vdwg.mxu0
      %v6580 = vcombine.high %v6454, %v6454
      %v6582 = vunpack.c.l.s4 1983009808
      %v6583 = vunpack.c.0.s8 %v6582
      %v6584 = vlaneseq
      %v6585 = vshrl.u32 %v6584, 7
      %v6586 = vsub.s32 %v6583, %v6585
      %v6587 = vrot.slane %v6454, %v6586
      %v6589 = vunpack.c.l.s4 1983009808
      %v6590 = vunpack.c.0.s8 %v6589
      %v6591 = vlaneseq
      %v6592 = vshrl.u32 %v6591, 7
      %v6593 = vsub.s32 %v6590, %v6592
      %v6594 = vrot.slane %v6580, %v6593
      %v6595 = vcombine.high %v6587, %v6587
      %v6596 = vcombine.high %v6594, %v6594
      %v6597 = vcombine.high %v6457, %v6457
      %v6599 = vunpack.c.l.s4 1983009808
      %v6600 = vunpack.c.0.s8 %v6599
      %v6601 = vlaneseq
      %v6602 = vshrl.u32 %v6601, 7
      %v6603 = vsub.s32 %v6600, %v6602
      %v6604 = vrot.slane %v6457, %v6603
      %v6606 = vunpack.c.l.s4 1983009808
      %v6607 = vunpack.c.0.s8 %v6606
      %v6608 = vlaneseq
      %v6609 = vshrl.u32 %v6608, 7
      %v6610 = vsub.s32 %v6607, %v6609
      %v6611 = vrot.slane %v6597, %v6610
      %v6612 = vcombine.high %v6604, %v6604
      %v6613 = vcombine.high %v6611, %v6611
      %v6614 = vcombine.high %v6462, %v6462
      %v6616 = vunpack.c.l.s4 1983009808
      %v6617 = vunpack.c.0.s8 %v6616
      %v6618 = vlaneseq
      %v6619 = vshrl.u32 %v6618, 7
      %v6620 = vsub.s32 %v6617, %v6619
      %v6621 = vrot.slane %v6462, %v6620
      %v6623 = vunpack.c.l.s4 1983009808
      %v6624 = vunpack.c.0.s8 %v6623
      %v6625 = vlaneseq
      %v6626 = vshrl.u32 %v6625, 7
      %v6627 = vsub.s32 %v6624, %v6626
      %v6628 = vrot.slane %v6614, %v6627
      %v6629 = vcombine.high %v6621, %v6621
      %v6630 = vcombine.high %v6628, %v6628
      %v6631 = vcombine.high %v6465, %v6465
      %v6633 = vunpack.c.l.s4 1983009808
      %v6634 = vunpack.c.0.s8 %v6633
      %v6635 = vlaneseq
      %v6636 = vshrl.u32 %v6635, 7
      %v6637 = vsub.s32 %v6634, %v6636
      %v6638 = vrot.slane %v6465, %v6637
      %v6640 = vunpack.c.l.s4 1983009808
      %v6641 = vunpack.c.0.s8 %v6640
      %v6642 = vlaneseq
      %v6643 = vshrl.u32 %v6642, 7
      %v6644 = vsub.s32 %v6641, %v6643
      %v6645 = vrot.slane %v6631, %v6644
      %v6646 = vcombine.high %v6638, %v6638
      %v6647 = vcombine.high %v6645, %v6645
      %v6648 = vcombine.high %v6470, %v6470
      %v6650 = vunpack.c.l.s4 1983009808
      %v6651 = vunpack.c.0.s8 %v6650
      %v6652 = vlaneseq
      %v6653 = vshrl.u32 %v6652, 7
      %v6654 = vsub.s32 %v6651, %v6653
      %v6655 = vrot.slane %v6470, %v6654
      %v6657 = vunpack.c.l.s4 1983009808
      %v6658 = vunpack.c.0.s8 %v6657
      %v6659 = vlaneseq
      %v6660 = vshrl.u32 %v6659, 7
      %v6661 = vsub.s32 %v6658, %v6660
      %v6662 = vrot.slane %v6648, %v6661
      %v6663 = vcombine.high %v6655, %v6655
      %v6664 = vcombine.high %v6662, %v6662
      %v6665 = vcombine.high %v6473, %v6473
      %v6667 = vunpack.c.l.s4 1983009808
      %v6668 = vunpack.c.0.s8 %v6667
      %v6669 = vlaneseq
      %v6670 = vshrl.u32 %v6669, 7
      %v6671 = vsub.s32 %v6668, %v6670
      %v6672 = vrot.slane %v6473, %v6671
      %v6674 = vunpack.c.l.s4 1983009808
      %v6675 = vunpack.c.0.s8 %v6674
      %v6676 = vlaneseq
      %v6677 = vshrl.u32 %v6676, 7
      %v6678 = vsub.s32 %v6675, %v6677
      %v6679 = vrot.slane %v6665, %v6678
      %v6680 = vcombine.high %v6672, %v6672
      %v6681 = vcombine.high %v6679, %v6679
      %v6682 = vcombine.high %v6478, %v6478
      %v6684 = vunpack.c.l.s4 1983009808
      %v6685 = vunpack.c.0.s8 %v6684
      %v6686 = vlaneseq
      %v6687 = vshrl.u32 %v6686, 7
      %v6688 = vsub.s32 %v6685, %v6687
      %v6689 = vrot.slane %v6478, %v6688
      %v6691 = vunpack.c.l.s4 1983009808
      %v6692 = vunpack.c.0.s8 %v6691
      %v6693 = vlaneseq
      %v6694 = vshrl.u32 %v6693, 7
      %v6695 = vsub.s32 %v6692, %v6694
      %v6696 = vrot.slane %v6682, %v6695
      %v6697 = vcombine.high %v6689, %v6689
      %v6698 = vcombine.high %v6696, %v6696
      %v6699 = vcombine.high %v6481, %v6481
      %v6701 = vunpack.c.l.s4 1983009808
      %v6702 = vunpack.c.0.s8 %v6701
      %v6703 = vlaneseq
      %v6704 = vshrl.u32 %v6703, 7
      %v6705 = vsub.s32 %v6702, %v6704
      %v6706 = vrot.slane %v6481, %v6705
      %v6708 = vunpack.c.l.s4 1983009808
      %v6709 = vunpack.c.0.s8 %v6708
      %v6710 = vlaneseq
      %v6711 = vshrl.u32 %v6710, 7
      %v6712 = vsub.s32 %v6709, %v6711
      %v6713 = vrot.slane %v6699, %v6712
      %v6714 = vcombine.high %v6706, %v6706
      %v6715 = vcombine.high %v6713, %v6713
      %v6716 = vcombine.high %v6486, %v6486
      %v6718 = vunpack.c.l.s4 1983009808
      %v6719 = vunpack.c.0.s8 %v6718
      %v6720 = vlaneseq
      %v6721 = vshrl.u32 %v6720, 7
      %v6722 = vsub.s32 %v6719, %v6721
      %v6723 = vrot.slane %v6486, %v6722
      %v6725 = vunpack.c.l.s4 1983009808
      %v6726 = vunpack.c.0.s8 %v6725
      %v6727 = vlaneseq
      %v6728 = vshrl.u32 %v6727, 7
      %v6729 = vsub.s32 %v6726, %v6728
      %v6730 = vrot.slane %v6716, %v6729
      %v6731 = vcombine.high %v6723, %v6723
      %v6732 = vcombine.high %v6730, %v6730
      %v6733 = vcombine.high %v6489, %v6489
      %v6735 = vunpack.c.l.s4 1983009808
      %v6736 = vunpack.c.0.s8 %v6735
      %v6737 = vlaneseq
      %v6738 = vshrl.u32 %v6737, 7
      %v6739 = vsub.s32 %v6736, %v6738
      %v6740 = vrot.slane %v6489, %v6739
      %v6742 = vunpack.c.l.s4 1983009808
      %v6743 = vunpack.c.0.s8 %v6742
      %v6744 = vlaneseq
      %v6745 = vshrl.u32 %v6744, 7
      %v6746 = vsub.s32 %v6743, %v6745
      %v6747 = vrot.slane %v6733, %v6746
      %v6748 = vcombine.high %v6740, %v6740
      %v6749 = vcombine.high %v6747, %v6747
      %v6750 = vcombine.high %v6494, %v6494
      %v6752 = vunpack.c.l.s4 1983009808
      %v6753 = vunpack.c.0.s8 %v6752
      %v6754 = vlaneseq
      %v6755 = vshrl.u32 %v6754, 7
      %v6756 = vsub.s32 %v6753, %v6755
      %v6757 = vrot.slane %v6494, %v6756
      %v6759 = vunpack.c.l.s4 1983009808
      %v6760 = vunpack.c.0.s8 %v6759
      %v6761 = vlaneseq
      %v6762 = vshrl.u32 %v6761, 7
      %v6763 = vsub.s32 %v6760, %v6762
      %v6764 = vrot.slane %v6750, %v6763
      %v6765 = vcombine.high %v6757, %v6757
      %v6766 = vcombine.high %v6764, %v6764
      %v6767 = vcombine.high %v6497, %v6497
      %v6769 = vunpack.c.l.s4 1983009808
      %v6770 = vunpack.c.0.s8 %v6769
      %v6771 = vlaneseq
      %v6772 = vshrl.u32 %v6771, 7
      %v6773 = vsub.s32 %v6770, %v6772
      %v6774 = vrot.slane %v6497, %v6773
      %v6776 = vunpack.c.l.s4 1983009808
      %v6777 = vunpack.c.0.s8 %v6776
      %v6778 = vlaneseq
      %v6779 = vshrl.u32 %v6778, 7
      %v6780 = vsub.s32 %v6777, %v6779
      %v6781 = vrot.slane %v6767, %v6780
      %v6782 = vcombine.high %v6774, %v6774
      %v6783 = vcombine.high %v6781, %v6781
      %v6784 = vcombine.high %v6502, %v6502
      %v6786 = vunpack.c.l.s4 1983009808
      %v6787 = vunpack.c.0.s8 %v6786
      %v6788 = vlaneseq
      %v6789 = vshrl.u32 %v6788, 7
      %v6790 = vsub.s32 %v6787, %v6789
      %v6791 = vrot.slane %v6502, %v6790
      %v6793 = vunpack.c.l.s4 1983009808
      %v6794 = vunpack.c.0.s8 %v6793
      %v6795 = vlaneseq
      %v6796 = vshrl.u32 %v6795, 7
      %v6797 = vsub.s32 %v6794, %v6796
      %v6798 = vrot.slane %v6784, %v6797
      %v6799 = vcombine.high %v6791, %v6791
      %v6800 = vcombine.high %v6798, %v6798
      %v6801 = vcombine.high %v6505, %v6505
      %v6803 = vunpack.c.l.s4 1983009808
      %v6804 = vunpack.c.0.s8 %v6803
      %v6805 = vlaneseq
      %v6806 = vshrl.u32 %v6805, 7
      %v6807 = vsub.s32 %v6804, %v6806
      %v6808 = vrot.slane %v6505, %v6807
      %v6810 = vunpack.c.l.s4 1983009808
      %v6811 = vunpack.c.0.s8 %v6810
      %v6812 = vlaneseq
      %v6813 = vshrl.u32 %v6812, 7
      %v6814 = vsub.s32 %v6811, %v6813
      %v6815 = vrot.slane %v6801, %v6814
      %v6816 = vcombine.high %v6808, %v6808
      %v6817 = vcombine.high %v6815, %v6815
      %v6818 = vcombine.high %v6510, %v6510
      %v6820 = vunpack.c.l.s4 1983009808
      %v6821 = vunpack.c.0.s8 %v6820
      %v6822 = vlaneseq
      %v6823 = vshrl.u32 %v6822, 7
      %v6824 = vsub.s32 %v6821, %v6823
      %v6825 = vrot.slane %v6510, %v6824
      %v6827 = vunpack.c.l.s4 1983009808
      %v6828 = vunpack.c.0.s8 %v6827
      %v6829 = vlaneseq
      %v6830 = vshrl.u32 %v6829, 7
      %v6831 = vsub.s32 %v6828, %v6830
      %v6832 = vrot.slane %v6818, %v6831
      %v6833 = vcombine.high %v6825, %v6825
      %v6834 = vcombine.high %v6832, %v6832
      %v6835 = vcombine.high %v6513, %v6513
      %v6837 = vunpack.c.l.s4 1983009808
      %v6838 = vunpack.c.0.s8 %v6837
      %v6839 = vlaneseq
      %v6840 = vshrl.u32 %v6839, 7
      %v6841 = vsub.s32 %v6838, %v6840
      %v6842 = vrot.slane %v6513, %v6841
      %v6844 = vunpack.c.l.s4 1983009808
      %v6845 = vunpack.c.0.s8 %v6844
      %v6846 = vlaneseq
      %v6847 = vshrl.u32 %v6846, 7
      %v6848 = vsub.s32 %v6845, %v6847
      %v6849 = vrot.slane %v6835, %v6848
      %v6850 = vcombine.high %v6842, %v6842
      %v6851 = vcombine.high %v6849, %v6849
      %v6852 = vcombine.high %v6518, %v6518
      %v6854 = vunpack.c.l.s4 1983009808
      %v6855 = vunpack.c.0.s8 %v6854
      %v6856 = vlaneseq
      %v6857 = vshrl.u32 %v6856, 7
      %v6858 = vsub.s32 %v6855, %v6857
      %v6859 = vrot.slane %v6518, %v6858
      %v6861 = vunpack.c.l.s4 1983009808
      %v6862 = vunpack.c.0.s8 %v6861
      %v6863 = vlaneseq
      %v6864 = vshrl.u32 %v6863, 7
      %v6865 = vsub.s32 %v6862, %v6864
      %v6866 = vrot.slane %v6852, %v6865
      %v6867 = vcombine.high %v6859, %v6859
      %v6868 = vcombine.high %v6866, %v6866
      %v6869 = vcombine.high %v6521, %v6521
      %v6871 = vunpack.c.l.s4 1983009808
      %v6872 = vunpack.c.0.s8 %v6871
      %v6873 = vlaneseq
      %v6874 = vshrl.u32 %v6873, 7
      %v6875 = vsub.s32 %v6872, %v6874
      %v6876 = vrot.slane %v6521, %v6875
      %v6878 = vunpack.c.l.s4 1983009808
      %v6879 = vunpack.c.0.s8 %v6878
      %v6880 = vlaneseq
      %v6881 = vshrl.u32 %v6880, 7
      %v6882 = vsub.s32 %v6879, %v6881
      %v6883 = vrot.slane %v6869, %v6882
      %v6884 = vcombine.high %v6876, %v6876
      %v6885 = vcombine.high %v6883, %v6883
      %v6886 = vcombine.high %v6526, %v6526
      %v6888 = vunpack.c.l.s4 1983009808
      %v6889 = vunpack.c.0.s8 %v6888
      %v6890 = vlaneseq
      %v6891 = vshrl.u32 %v6890, 7
      %v6892 = vsub.s32 %v6889, %v6891
      %v6893 = vrot.slane %v6526, %v6892
      %v6895 = vunpack.c.l.s4 1983009808
      %v6896 = vunpack.c.0.s8 %v6895
      %v6897 = vlaneseq
      %v6898 = vshrl.u32 %v6897, 7
      %v6899 = vsub.s32 %v6896, %v6898
      %v6900 = vrot.slane %v6886, %v6899
      %v6901 = vcombine.high %v6893, %v6893
      %v6902 = vcombine.high %v6900, %v6900
      %v6903 = vcombine.high %v6529, %v6529
      %v6905 = vunpack.c.l.s4 1983009808
      %v6906 = vunpack.c.0.s8 %v6905
      %v6907 = vlaneseq
      %v6908 = vshrl.u32 %v6907, 7
      %v6909 = vsub.s32 %v6906, %v6908
      %v6910 = vrot.slane %v6529, %v6909
      %v6912 = vunpack.c.l.s4 1983009808
      %v6913 = vunpack.c.0.s8 %v6912
      %v6914 = vlaneseq
      %v6915 = vshrl.u32 %v6914, 7
      %v6916 = vsub.s32 %v6913, %v6915
      %v6917 = vrot.slane %v6903, %v6916
      %v6918 = vcombine.high %v6910, %v6910
      %v6919 = vcombine.high %v6917, %v6917
      %v6920 = vcombine.high %v6534, %v6534
      %v6922 = vunpack.c.l.s4 1983009808
      %v6923 = vunpack.c.0.s8 %v6922
      %v6924 = vlaneseq
      %v6925 = vshrl.u32 %v6924, 7
      %v6926 = vsub.s32 %v6923, %v6925
      %v6927 = vrot.slane %v6534, %v6926
      %v6929 = vunpack.c.l.s4 1983009808
      %v6930 = vunpack.c.0.s8 %v6929
      %v6931 = vlaneseq
      %v6932 = vshrl.u32 %v6931, 7
      %v6933 = vsub.s32 %v6930, %v6932
      %v6934 = vrot.slane %v6920, %v6933
      %v6935 = vcombine.high %v6927, %v6927
      %v6936 = vcombine.high %v6934, %v6934
      %v6937 = vcombine.high %v6537, %v6537
      %v6939 = vunpack.c.l.s4 1983009808
      %v6940 = vunpack.c.0.s8 %v6939
      %v6941 = vlaneseq
      %v6942 = vshrl.u32 %v6941, 7
      %v6943 = vsub.s32 %v6940, %v6942
      %v6944 = vrot.slane %v6537, %v6943
      %v6946 = vunpack.c.l.s4 1983009808
      %v6947 = vunpack.c.0.s8 %v6946
      %v6948 = vlaneseq
      %v6949 = vshrl.u32 %v6948, 7
      %v6950 = vsub.s32 %v6947, %v6949
      %v6951 = vrot.slane %v6937, %v6950
      %v6952 = vcombine.high %v6944, %v6944
      %v6953 = vcombine.high %v6951, %v6951
      %v6954 = vcombine.high %v6542, %v6542
      %v6956 = vunpack.c.l.s4 1983009808
      %v6957 = vunpack.c.0.s8 %v6956
      %v6958 = vlaneseq
      %v6959 = vshrl.u32 %v6958, 7
      %v6960 = vsub.s32 %v6957, %v6959
      %v6961 = vrot.slane %v6542, %v6960
      %v6963 = vunpack.c.l.s4 1983009808
      %v6964 = vunpack.c.0.s8 %v6963
      %v6965 = vlaneseq
      %v6966 = vshrl.u32 %v6965, 7
      %v6967 = vsub.s32 %v6964, %v6966
      %v6968 = vrot.slane %v6954, %v6967
      %v6969 = vcombine.high %v6961, %v6961
      %v6970 = vcombine.high %v6968, %v6968
      %v6971 = vcombine.high %v6545, %v6545
      %v6973 = vunpack.c.l.s4 1983009808
      %v6974 = vunpack.c.0.s8 %v6973
      %v6975 = vlaneseq
      %v6976 = vshrl.u32 %v6975, 7
      %v6977 = vsub.s32 %v6974, %v6976
      %v6978 = vrot.slane %v6545, %v6977
      %v6980 = vunpack.c.l.s4 1983009808
      %v6981 = vunpack.c.0.s8 %v6980
      %v6982 = vlaneseq
      %v6983 = vshrl.u32 %v6982, 7
      %v6984 = vsub.s32 %v6981, %v6983
      %v6985 = vrot.slane %v6971, %v6984
      %v6986 = vcombine.high %v6978, %v6978
      %v6987 = vcombine.high %v6985, %v6985
      %v6989 = vunpack.c.l.s4 1983009808
      %v6990 = vunpack.c.0.s8 %v6989
      %v6991 = vlaneseq
      %v6992 = vshrl.u32 %v6991, 7
      %v6993 = vsub.s32 %v6990, %v6992
      %v6994 = vrot.slane %v6550, %v6993
      %v6995 = vcombine.high %v6994, %v6994
      %v6996 = vcombine.low %v6587, %v6595
      %v6997 = vcombine.low %v6594, %v6596
      %v6999 = vunpack.c.l.s4 1983009808
      %v7000 = vunpack.c.0.s8 %v6999
      %v7001 = vlaneseq
      %v7002 = vshrl.u32 %v7001, 7
      %v7003 = vsub.s32 %v7000, %v7002
      %v7004 = vrot.slane %v6996, %v7003
      %v7006 = vunpack.c.l.s4 1983009808
      %v7007 = vunpack.c.0.s8 %v7006
      %v7008 = vlaneseq
      %v7009 = vshrl.u32 %v7008, 7
      %v7010 = vsub.s32 %v7007, %v7009
      %v7011 = vrot.slane %v6997, %v7010
      %v7012 = vcombine.low %v7004, %v7011
      %v7013 = vcombine.low %v6604, %v6612
      %v7015 = vunpack.c.l.s4 1983009808
      %v7016 = vunpack.c.0.s8 %v7015
      %v7017 = vlaneseq
      %v7018 = vshrl.u32 %v7017, 7
      %v7019 = vsub.s32 %v7016, %v7018
      %v7020 = vrot.slane %v7013, %v7019
      %v7022 = vunpack.c.l.s4 1983009808
      %v7023 = vunpack.c.0.s8 %v7022
      %v7024 = vlaneseq
      %v7025 = vshrl.u32 %v7024, 7
      %v7026 = vsub.s32 %v7023, %v7025
      %v7027 = vrot.slane %v6611, %v7026
      %v7028 = vcombine.low %v7020, %v7027
      %v7029 = vcombine.low %v6613, %v6621
      %v7030 = vcombine.low %v6629, %v6628
      %v7032 = vunpack.c.l.s4 1983009808
      %v7033 = vunpack.c.0.s8 %v7032
      %v7034 = vlaneseq
      %v7035 = vshrl.u32 %v7034, 7
      %v7036 = vsub.s32 %v7033, %v7035
      %v7037 = vrot.slane %v7029, %v7036
      %v7039 = vunpack.c.l.s4 1983009808
      %v7040 = vunpack.c.0.s8 %v7039
      %v7041 = vlaneseq
      %v7042 = vshrl.u32 %v7041, 7
      %v7043 = vsub.s32 %v7040, %v7042
      %v7044 = vrot.slane %v7030, %v7043
      %v7045 = vcombine.low %v7037, %v7044
      %v7046 = vcombine.low %v6630, %v6638
      %v7048 = vunpack.c.l.s4 1983009808
      %v7049 = vunpack.c.0.s8 %v7048
      %v7050 = vlaneseq
      %v7051 = vshrl.u32 %v7050, 7
      %v7052 = vsub.s32 %v7049, %v7051
      %v7053 = vrot.slane %v7046, %v7052
      %v7055 = vunpack.c.l.s4 1983009808
      %v7056 = vunpack.c.0.s8 %v7055
      %v7057 = vlaneseq
      %v7058 = vshrl.u32 %v7057, 7
      %v7059 = vsub.s32 %v7056, %v7058
      %v7060 = vrot.slane %v6646, %v7059
      %v7061 = vcombine.low %v7053, %v7060
      %v7062 = vcombine.low %v6645, %v6647
      %v7063 = vcombine.low %v6655, %v6663
      %v7065 = vunpack.c.l.s4 1983009808
      %v7066 = vunpack.c.0.s8 %v7065
      %v7067 = vlaneseq
      %v7068 = vshrl.u32 %v7067, 7
      %v7069 = vsub.s32 %v7066, %v7068
      %v7070 = vrot.slane %v7062, %v7069
      %v7072 = vunpack.c.l.s4 1983009808
      %v7073 = vunpack.c.0.s8 %v7072
      %v7074 = vlaneseq
      %v7075 = vshrl.u32 %v7074, 7
      %v7076 = vsub.s32 %v7073, %v7075
      %v7077 = vrot.slane %v7063, %v7076
      %v7078 = vcombine.low %v7070, %v7077
      %v7079 = vcombine.low %v6662, %v6664
      %v7081 = vunpack.c.l.s4 1983009808
      %v7082 = vunpack.c.0.s8 %v7081
      %v7083 = vlaneseq
      %v7084 = vshrl.u32 %v7083, 7
      %v7085 = vsub.s32 %v7082, %v7084
      %v7086 = vrot.slane %v7079, %v7085
      %v7088 = vunpack.c.l.s4 1983009808
      %v7089 = vunpack.c.0.s8 %v7088
      %v7090 = vlaneseq
      %v7091 = vshrl.u32 %v7090, 7
      %v7092 = vsub.s32 %v7089, %v7091
      %v7093 = vrot.slane %v6672, %v7092
      %v7094 = vcombine.low %v7086, %v7093
      %v7095 = vcombine.low %v6680, %v6679
      %v7096 = vcombine.low %v6681, %v6689
      %v7098 = vunpack.c.l.s4 1983009808
      %v7099 = vunpack.c.0.s8 %v7098
      %v7100 = vlaneseq
      %v7101 = vshrl.u32 %v7100, 7
      %v7102 = vsub.s32 %v7099, %v7101
      %v7103 = vrot.slane %v7095, %v7102
      %v7105 = vunpack.c.l.s4 1983009808
      %v7106 = vunpack.c.0.s8 %v7105
      %v7107 = vlaneseq
      %v7108 = vshrl.u32 %v7107, 7
      %v7109 = vsub.s32 %v7106, %v7108
      %v7110 = vrot.slane %v7096, %v7109
      %v7111 = vcombine.low %v7103, %v7110
      %v7112 = vcombine.low %v6697, %v6696
      %v7114 = vunpack.c.l.s4 1983009808
      %v7115 = vunpack.c.0.s8 %v7114
      %v7116 = vlaneseq
      %v7117 = vshrl.u32 %v7116, 7
      %v7118 = vsub.s32 %v7115, %v7117
      %v7119 = vrot.slane %v7112, %v7118
      %v7121 = vunpack.c.l.s4 1983009808
      %v7122 = vunpack.c.0.s8 %v7121
      %v7123 = vlaneseq
      %v7124 = vshrl.u32 %v7123, 7
      %v7125 = vsub.s32 %v7122, %v7124
      %v7126 = vrot.slane %v6698, %v7125
      %v7127 = vcombine.low %v7119, %v7126
      %v7128 = vcombine.low %v6706, %v6714
      %v7129 = vcombine.low %v6713, %v6715
      %v7131 = vunpack.c.l.s4 1983009808
      %v7132 = vunpack.c.0.s8 %v7131
      %v7133 = vlaneseq
      %v7134 = vshrl.u32 %v7133, 7
      %v7135 = vsub.s32 %v7132, %v7134
      %v7136 = vrot.slane %v7128, %v7135
      %v7138 = vunpack.c.l.s4 1983009808
      %v7139 = vunpack.c.0.s8 %v7138
      %v7140 = vlaneseq
      %v7141 = vshrl.u32 %v7140, 7
      %v7142 = vsub.s32 %v7139, %v7141
      %v7143 = vrot.slane %v7129, %v7142
      %v7144 = vcombine.low %v7136, %v7143
      %v7145 = vcombine.low %v6723, %v6731
      %v7147 = vunpack.c.l.s4 1983009808
      %v7148 = vunpack.c.0.s8 %v7147
      %v7149 = vlaneseq
      %v7150 = vshrl.u32 %v7149, 7
      %v7151 = vsub.s32 %v7148, %v7150
      %v7152 = vrot.slane %v7145, %v7151
      %v7154 = vunpack.c.l.s4 1983009808
      %v7155 = vunpack.c.0.s8 %v7154
      %v7156 = vlaneseq
      %v7157 = vshrl.u32 %v7156, 7
      %v7158 = vsub.s32 %v7155, %v7157
      %v7159 = vrot.slane %v6730, %v7158
      %v7160 = vcombine.low %v7152, %v7159
      %v7161 = vcombine.low %v6732, %v6740
      %v7162 = vcombine.low %v6748, %v6747
      %v7164 = vunpack.c.l.s4 1983009808
      %v7165 = vunpack.c.0.s8 %v7164
      %v7166 = vlaneseq
      %v7167 = vshrl.u32 %v7166, 7
      %v7168 = vsub.s32 %v7165, %v7167
      %v7169 = vrot.slane %v7161, %v7168
      %v7171 = vunpack.c.l.s4 1983009808
      %v7172 = vunpack.c.0.s8 %v7171
      %v7173 = vlaneseq
      %v7174 = vshrl.u32 %v7173, 7
      %v7175 = vsub.s32 %v7172, %v7174
      %v7176 = vrot.slane %v7162, %v7175
      %v7177 = vcombine.low %v7169, %v7176
      %v7178 = vcombine.low %v6749, %v6757
      %v7180 = vunpack.c.l.s4 1983009808
      %v7181 = vunpack.c.0.s8 %v7180
      %v7182 = vlaneseq
      %v7183 = vshrl.u32 %v7182, 7
      %v7184 = vsub.s32 %v7181, %v7183
      %v7185 = vrot.slane %v7178, %v7184
      %v7187 = vunpack.c.l.s4 1983009808
      %v7188 = vunpack.c.0.s8 %v7187
      %v7189 = vlaneseq
      %v7190 = vshrl.u32 %v7189, 7
      %v7191 = vsub.s32 %v7188, %v7190
      %v7192 = vrot.slane %v6765, %v7191
      %v7193 = vcombine.low %v7185, %v7192
      %v7194 = vcombine.low %v6764, %v6766
      %v7195 = vcombine.low %v6774, %v6782
      %v7197 = vunpack.c.l.s4 1983009808
      %v7198 = vunpack.c.0.s8 %v7197
      %v7199 = vlaneseq
      %v7200 = vshrl.u32 %v7199, 7
      %v7201 = vsub.s32 %v7198, %v7200
      %v7202 = vrot.slane %v7194, %v7201
      %v7204 = vunpack.c.l.s4 1983009808
      %v7205 = vunpack.c.0.s8 %v7204
      %v7206 = vlaneseq
      %v7207 = vshrl.u32 %v7206, 7
      %v7208 = vsub.s32 %v7205, %v7207
      %v7209 = vrot.slane %v7195, %v7208
      %v7210 = vcombine.low %v7202, %v7209
      %v7211 = vcombine.low %v6781, %v6783
      %v7213 = vunpack.c.l.s4 1983009808
      %v7214 = vunpack.c.0.s8 %v7213
      %v7215 = vlaneseq
      %v7216 = vshrl.u32 %v7215, 7
      %v7217 = vsub.s32 %v7214, %v7216
      %v7218 = vrot.slane %v7211, %v7217
      %v7220 = vunpack.c.l.s4 1983009808
      %v7221 = vunpack.c.0.s8 %v7220
      %v7222 = vlaneseq
      %v7223 = vshrl.u32 %v7222, 7
      %v7224 = vsub.s32 %v7221, %v7223
      %v7225 = vrot.slane %v6791, %v7224
      %v7226 = vcombine.low %v7218, %v7225
      %v7227 = vcombine.low %v6799, %v6798
      %v7228 = vcombine.low %v6800, %v6808
      %v7230 = vunpack.c.l.s4 1983009808
      %v7231 = vunpack.c.0.s8 %v7230
      %v7232 = vlaneseq
      %v7233 = vshrl.u32 %v7232, 7
      %v7234 = vsub.s32 %v7231, %v7233
      %v7235 = vrot.slane %v7227, %v7234
      %v7237 = vunpack.c.l.s4 1983009808
      %v7238 = vunpack.c.0.s8 %v7237
      %v7239 = vlaneseq
      %v7240 = vshrl.u32 %v7239, 7
      %v7241 = vsub.s32 %v7238, %v7240
      %v7242 = vrot.slane %v7228, %v7241
      %v7243 = vcombine.low %v7235, %v7242
      %v7244 = vcombine.low %v6816, %v6815
      %v7246 = vunpack.c.l.s4 1983009808
      %v7247 = vunpack.c.0.s8 %v7246
      %v7248 = vlaneseq
      %v7249 = vshrl.u32 %v7248, 7
      %v7250 = vsub.s32 %v7247, %v7249
      %v7251 = vrot.slane %v7244, %v7250
      %v7253 = vunpack.c.l.s4 1983009808
      %v7254 = vunpack.c.0.s8 %v7253
      %v7255 = vlaneseq
      %v7256 = vshrl.u32 %v7255, 7
      %v7257 = vsub.s32 %v7254, %v7256
      %v7258 = vrot.slane %v6817, %v7257
      %v7259 = vcombine.low %v7251, %v7258
      %v7260 = vcombine.low %v6825, %v6833
      %v7261 = vcombine.low %v6832, %v6834
      %v7263 = vunpack.c.l.s4 1983009808
      %v7264 = vunpack.c.0.s8 %v7263
      %v7265 = vlaneseq
      %v7266 = vshrl.u32 %v7265, 7
      %v7267 = vsub.s32 %v7264, %v7266
      %v7268 = vrot.slane %v7260, %v7267
      %v7270 = vunpack.c.l.s4 1983009808
      %v7271 = vunpack.c.0.s8 %v7270
      %v7272 = vlaneseq
      %v7273 = vshrl.u32 %v7272, 7
      %v7274 = vsub.s32 %v7271, %v7273
      %v7275 = vrot.slane %v7261, %v7274
      %v7276 = vcombine.low %v7268, %v7275
      %v7277 = vcombine.low %v6842, %v6850
      %v7279 = vunpack.c.l.s4 1983009808
      %v7280 = vunpack.c.0.s8 %v7279
      %v7281 = vlaneseq
      %v7282 = vshrl.u32 %v7281, 7
      %v7283 = vsub.s32 %v7280, %v7282
      %v7284 = vrot.slane %v7277, %v7283
      %v7286 = vunpack.c.l.s4 1983009808
      %v7287 = vunpack.c.0.s8 %v7286
      %v7288 = vlaneseq
      %v7289 = vshrl.u32 %v7288, 7
      %v7290 = vsub.s32 %v7287, %v7289
      %v7291 = vrot.slane %v6849, %v7290
      %v7292 = vcombine.low %v7284, %v7291
      %v7293 = vcombine.low %v6851, %v6859
      %v7294 = vcombine.low %v6867, %v6866
      %v7296 = vunpack.c.l.s4 1983009808
      %v7297 = vunpack.c.0.s8 %v7296
      %v7298 = vlaneseq
      %v7299 = vshrl.u32 %v7298, 7
      %v7300 = vsub.s32 %v7297, %v7299
      %v7301 = vrot.slane %v7293, %v7300
      %v7303 = vunpack.c.l.s4 1983009808
      %v7304 = vunpack.c.0.s8 %v7303
      %v7305 = vlaneseq
      %v7306 = vshrl.u32 %v7305, 7
      %v7307 = vsub.s32 %v7304, %v7306
      %v7308 = vrot.slane %v7294, %v7307
      %v7309 = vcombine.low %v7301, %v7308
      %v7310 = vcombine.low %v6868, %v6876
      %v7312 = vunpack.c.l.s4 1983009808
      %v7313 = vunpack.c.0.s8 %v7312
      %v7314 = vlaneseq
      %v7315 = vshrl.u32 %v7314, 7
      %v7316 = vsub.s32 %v7313, %v7315
      %v7317 = vrot.slane %v7310, %v7316
      %v7319 = vunpack.c.l.s4 1983009808
      %v7320 = vunpack.c.0.s8 %v7319
      %v7321 = vlaneseq
      %v7322 = vshrl.u32 %v7321, 7
      %v7323 = vsub.s32 %v7320, %v7322
      %v7324 = vrot.slane %v6884, %v7323
      %v7325 = vcombine.low %v7317, %v7324
      %v7326 = vcombine.low %v6883, %v6885
      %v7327 = vcombine.low %v6893, %v6901
      %v7329 = vunpack.c.l.s4 1983009808
      %v7330 = vunpack.c.0.s8 %v7329
      %v7331 = vlaneseq
      %v7332 = vshrl.u32 %v7331, 7
      %v7333 = vsub.s32 %v7330, %v7332
      %v7334 = vrot.slane %v7326, %v7333
      %v7336 = vunpack.c.l.s4 1983009808
      %v7337 = vunpack.c.0.s8 %v7336
      %v7338 = vlaneseq
      %v7339 = vshrl.u32 %v7338, 7
      %v7340 = vsub.s32 %v7337, %v7339
      %v7341 = vrot.slane %v7327, %v7340
      %v7342 = vcombine.low %v7334, %v7341
      %v7343 = vcombine.low %v6900, %v6902
      %v7345 = vunpack.c.l.s4 1983009808
      %v7346 = vunpack.c.0.s8 %v7345
      %v7347 = vlaneseq
      %v7348 = vshrl.u32 %v7347, 7
      %v7349 = vsub.s32 %v7346, %v7348
      %v7350 = vrot.slane %v7343, %v7349
      %v7352 = vunpack.c.l.s4 1983009808
      %v7353 = vunpack.c.0.s8 %v7352
      %v7354 = vlaneseq
      %v7355 = vshrl.u32 %v7354, 7
      %v7356 = vsub.s32 %v7353, %v7355
      %v7357 = vrot.slane %v6910, %v7356
      %v7358 = vcombine.low %v7350, %v7357
      %v7359 = vcombine.low %v6918, %v6917
      %v7360 = vcombine.low %v6919, %v6927
      %v7362 = vunpack.c.l.s4 1983009808
      %v7363 = vunpack.c.0.s8 %v7362
      %v7364 = vlaneseq
      %v7365 = vshrl.u32 %v7364, 7
      %v7366 = vsub.s32 %v7363, %v7365
      %v7367 = vrot.slane %v7359, %v7366
      %v7369 = vunpack.c.l.s4 1983009808
      %v7370 = vunpack.c.0.s8 %v7369
      %v7371 = vlaneseq
      %v7372 = vshrl.u32 %v7371, 7
      %v7373 = vsub.s32 %v7370, %v7372
      %v7374 = vrot.slane %v7360, %v7373
      %v7375 = vcombine.low %v7367, %v7374
      %v7376 = vcombine.low %v6935, %v6934
      %v7378 = vunpack.c.l.s4 1983009808
      %v7379 = vunpack.c.0.s8 %v7378
      %v7380 = vlaneseq
      %v7381 = vshrl.u32 %v7380, 7
      %v7382 = vsub.s32 %v7379, %v7381
      %v7383 = vrot.slane %v7376, %v7382
      %v7385 = vunpack.c.l.s4 1983009808
      %v7386 = vunpack.c.0.s8 %v7385
      %v7387 = vlaneseq
      %v7388 = vshrl.u32 %v7387, 7
      %v7389 = vsub.s32 %v7386, %v7388
      %v7390 = vrot.slane %v6936, %v7389
      %v7391 = vcombine.low %v7383, %v7390
      %v7392 = vcombine.low %v6944, %v6952
      %v7393 = vcombine.low %v6951, %v6953
      %v7395 = vunpack.c.l.s4 1983009808
      %v7396 = vunpack.c.0.s8 %v7395
      %v7397 = vlaneseq
      %v7398 = vshrl.u32 %v7397, 7
      %v7399 = vsub.s32 %v7396, %v7398
      %v7400 = vrot.slane %v7392, %v7399
      %v7402 = vunpack.c.l.s4 1983009808
      %v7403 = vunpack.c.0.s8 %v7402
      %v7404 = vlaneseq
      %v7405 = vshrl.u32 %v7404, 7
      %v7406 = vsub.s32 %v7403, %v7405
      %v7407 = vrot.slane %v7393, %v7406
      %v7408 = vcombine.low %v7400, %v7407
      %v7409 = vcombine.low %v6961, %v6969
      %v7411 = vunpack.c.l.s4 1983009808
      %v7412 = vunpack.c.0.s8 %v7411
      %v7413 = vlaneseq
      %v7414 = vshrl.u32 %v7413, 7
      %v7415 = vsub.s32 %v7412, %v7414
      %v7416 = vrot.slane %v7409, %v7415
      %v7418 = vunpack.c.l.s4 1983009808
      %v7419 = vunpack.c.0.s8 %v7418
      %v7420 = vlaneseq
      %v7421 = vshrl.u32 %v7420, 7
      %v7422 = vsub.s32 %v7419, %v7421
      %v7423 = vrot.slane %v6968, %v7422
      %v7424 = vcombine.low %v7416, %v7423
      %v7425 = vcombine.low %v6970, %v6978
      %v7426 = vcombine.low %v6986, %v6985
      %v7428 = vunpack.c.l.s4 1983009808
      %v7429 = vunpack.c.0.s8 %v7428
      %v7430 = vlaneseq
      %v7431 = vshrl.u32 %v7430, 7
      %v7432 = vsub.s32 %v7429, %v7431
      %v7433 = vrot.slane %v7425, %v7432
      %v7435 = vunpack.c.l.s4 1983009808
      %v7436 = vunpack.c.0.s8 %v7435
      %v7437 = vlaneseq
      %v7438 = vshrl.u32 %v7437, 7
      %v7439 = vsub.s32 %v7436, %v7438
      %v7440 = vrot.slane %v7426, %v7439
      %v7441 = vcombine.low %v7433, %v7440
      %v7442 = vcombine.low %v6987, %v6994
      %v7444 = vunpack.c.l.s4 1983009808
      %v7445 = vunpack.c.0.s8 %v7444
      %v7446 = vlaneseq
      %v7447 = vshrl.u32 %v7446, 7
      %v7448 = vsub.s32 %v7445, %v7447
      %v7449 = vrot.slane %v7442, %v7448
      %v7451 = vunpack.c.l.s4 1983009808
      %v7452 = vunpack.c.0.s8 %v7451
      %v7453 = vlaneseq
      %v7454 = vshrl.u32 %v7453, 7
      %v7455 = vsub.s32 %v7452, %v7454
      %v7456 = vrot.slane %v6995, %v7455
      %v7457 = vcombine.low %v7449, %v7456
      %7486 = vst.msk [vmem:[%s324] sm:$0xff] %vm6179, %v7012
      %vm7487 = vcmask 62464
      %7488 = vst.msk [vmem:[%s324 + $0x8] sm:$0x3f] %vm7487, %v7028
      %7489 = vst.msk [vmem:[%s324 + $0x10] sm:$0xff] %vm6179, %v7045
      %7490 = vst.msk [vmem:[%s324 + $0x18] sm:$0x3f] %vm7487, %v7061
      %7491 = vst.msk [vmem:[%s324 + $0x20] sm:$0xff] %vm6179, %v7078
      %7492 = vst.msk [vmem:[%s324 + $0x28] sm:$0x3f] %vm7487, %v7094
      %7493 = vst.msk [vmem:[%s324 + $0x30] sm:$0xff] %vm6179, %v7111
      %7494 = vst.msk [vmem:[%s324 + $0x38] sm:$0x3f] %vm7487, %v7127
      %7495 = vst.msk [vmem:[%s324 + $0x40] sm:$0xff] %vm6179, %v7144
      %7496 = vst.msk [vmem:[%s324 + $0x48] sm:$0x3f] %vm7487, %v7160
      %7497 = vst.msk [vmem:[%s324 + $0x50] sm:$0xff] %vm6179, %v7177
      %7498 = vst.msk [vmem:[%s324 + $0x58] sm:$0x3f] %vm7487, %v7193
      %7499 = vst.msk [vmem:[%s324 + $0x60] sm:$0xff] %vm6179, %v7210
      %7500 = vst.msk [vmem:[%s324 + $0x68] sm:$0x3f] %vm7487, %v7226
      %7501 = vst.msk [vmem:[%s324 + $0x70] sm:$0xff] %vm6179, %v7243
      %7502 = vst.msk [vmem:[%s324 + $0x78] sm:$0x3f] %vm7487, %v7259
      %7503 = vst.msk [vmem:[%s324 + $0x80] sm:$0xff] %vm6179, %v7276
      %7504 = vst.msk [vmem:[%s324 + $0x88] sm:$0x3f] %vm7487, %v7292
      %7505 = vst.msk [vmem:[%s324 + $0x90] sm:$0xff] %vm6179, %v7309
      %7506 = vst.msk [vmem:[%s324 + $0x98] sm:$0x3f] %vm7487, %v7325
      %7507 = vst.msk [vmem:[%s324 + $0xa0] sm:$0xff] %vm6179, %v7342
      %7508 = vst.msk [vmem:[%s324 + $0xa8] sm:$0x3f] %vm7487, %v7358
      %7509 = vst.msk [vmem:[%s324 + $0xb0] sm:$0xff] %vm6179, %v7375
      %7510 = vst.msk [vmem:[%s324 + $0xb8] sm:$0x3f] %vm7487, %v7391
      %7511 = vst.msk [vmem:[%s324 + $0xc0] sm:$0xff] %vm6179, %v7408
      %7512 = vst.msk [vmem:[%s324 + $0xc8] sm:$0x3f] %vm7487, %v7424
      %7513 = vst.msk [vmem:[%s324 + $0xd0] sm:$0xff] %vm6179, %v7441
      %7514 = vst.msk [vmem:[%s324 + $0xd8] sm:$0x3f] %vm7487, %v7457
      %v7515 = vsel %vm6179, %v6454, 0.0
      %v7516 = vsel %vm6179, %v6457, 0.0
      %v7517 = vadd.f32 %v7515, %v7516
      %v7518 = vsel %vm6179, %v6462, 0.0
      %v7519 = vadd.f32 %v7517, %v7518
      %v7520 = vsel %vm6179, %v6465, 0.0
      %v7521 = vadd.f32 %v7519, %v7520
      %v7522 = vsel %vm6179, %v6470, 0.0
      %v7523 = vadd.f32 %v7521, %v7522
      %v7524 = vsel %vm6179, %v6473, 0.0
      %v7525 = vadd.f32 %v7523, %v7524
      %v7526 = vsel %vm6179, %v6478, 0.0
      %v7527 = vadd.f32 %v7525, %v7526
      %v7528 = vsel %vm6179, %v6481, 0.0
      %v7529 = vadd.f32 %v7527, %v7528
      %v7530 = vsel %vm6179, %v6486, 0.0
      %v7531 = vadd.f32 %v7529, %v7530
      %v7532 = vsel %vm6179, %v6489, 0.0
      %v7533 = vadd.f32 %v7531, %v7532
      %v7534 = vsel %vm6179, %v6494, 0.0
      %v7535 = vadd.f32 %v7533, %v7534
      %v7536 = vsel %vm6179, %v6497, 0.0
      %v7537 = vadd.f32 %v7535, %v7536
      %v7538 = vsel %vm6179, %v6502, 0.0
      %v7539 = vadd.f32 %v7537, %v7538
      %v7540 = vsel %vm6179, %v6505, 0.0
      %v7541 = vadd.f32 %v7539, %v7540
      %v7542 = vsel %vm6179, %v6510, 0.0
      %v7543 = vadd.f32 %v7541, %v7542
      %v7544 = vsel %vm6179, %v6513, 0.0
      %v7545 = vadd.f32 %v7543, %v7544
      %v7546 = vsel %vm6179, %v6518, 0.0
      %v7547 = vadd.f32 %v7545, %v7546
      %v7548 = vsel %vm6179, %v6521, 0.0
      %v7549 = vadd.f32 %v7547, %v7548
      %v7550 = vsel %vm6179, %v6526, 0.0
      %v7551 = vadd.f32 %v7549, %v7550
      %v7552 = vsel %vm6179, %v6529, 0.0
      %v7553 = vadd.f32 %v7551, %v7552
      %v7554 = vsel %vm6179, %v6534, 0.0
      %v7555 = vadd.f32 %v7553, %v7554
      %v7556 = vsel %vm6179, %v6537, 0.0
      %v7557 = vadd.f32 %v7555, %v7556
      %v7558 = vsel %vm6179, %v6542, 0.0
      %v7559 = vadd.f32 %v7557, %v7558
      %v7560 = vsel %vm6179, %v6545, 0.0
      %v7561 = vadd.f32 %v7559, %v7560
      %vm7562 = vcmask 60416
      %v7563 = vsel %vm7562, %v6550, 0.0
      %v7564 = vadd.f32 %v7561, %v7563
      %v7565 = vrot.slane %v7564, 4
      %v7566 = vadd.f32 %v7564, %v7565
      %v7567 = vrot.slane %v7566, 2
      %v7568 = vadd.f32 %v7566, %v7567
      %v7569 = vrot.slane %v7568, 1
      %v7570 = vadd.f32 %v7568, %v7569
      %v7571 = vmul.f32 %v6454, %v6454
      %v7572 = vmul.f32 %v6457, %v6457
      %v7573 = vmul.f32 %v6462, %v6462
      %v7574 = vmul.f32 %v6465, %v6465
      %v7575 = vmul.f32 %v6470, %v6470
      %v7576 = vmul.f32 %v6473, %v6473
      %v7577 = vmul.f32 %v6478, %v6478
      %v7578 = vmul.f32 %v6481, %v6481
      %v7579 = vmul.f32 %v6486, %v6486
      %v7580 = vmul.f32 %v6489, %v6489
      %v7581 = vmul.f32 %v6494, %v6494
      %v7582 = vmul.f32 %v6497, %v6497
      %v7583 = vmul.f32 %v6502, %v6502
      %v7584 = vmul.f32 %v6505, %v6505
      %v7585 = vmul.f32 %v6510, %v6510
      %v7586 = vmul.f32 %v6513, %v6513
      %v7587 = vmul.f32 %v6518, %v6518
      %v7588 = vmul.f32 %v6521, %v6521
      %v7589 = vmul.f32 %v6526, %v6526
      %v7590 = vmul.f32 %v6529, %v6529
      %v7591 = vmul.f32 %v6534, %v6534
      %v7592 = vmul.f32 %v6537, %v6537
      %v7593 = vmul.f32 %v6542, %v6542
      %v7594 = vmul.f32 %v6545, %v6545
      %v7595 = vmul.f32 %v6550, %v6550
      %v7596 = vsel %vm6179, %v7571, 0.0
      %v7597 = vsel %vm6179, %v7572, 0.0
      %v7598 = vadd.f32 %v7596, %v7597
      %v7599 = vsel %vm6179, %v7573, 0.0
      %v7600 = vadd.f32 %v7598, %v7599
      %v7601 = vsel %vm6179, %v7574, 0.0
      %v7602 = vadd.f32 %v7600, %v7601
      %v7603 = vsel %vm6179, %v7575, 0.0
      %v7604 = vadd.f32 %v7602, %v7603
      %v7605 = vsel %vm6179, %v7576, 0.0
      %v7606 = vadd.f32 %v7604, %v7605
      %v7607 = vsel %vm6179, %v7577, 0.0
      %v7608 = vadd.f32 %v7606, %v7607
      %v7609 = vsel %vm6179, %v7578, 0.0
      %v7610 = vadd.f32 %v7608, %v7609
      %v7611 = vsel %vm6179, %v7579, 0.0
      %v7612 = vadd.f32 %v7610, %v7611
      %v7613 = vsel %vm6179, %v7580, 0.0
      %v7614 = vadd.f32 %v7612, %v7613
      %v7615 = vsel %vm6179, %v7581, 0.0
      %v7616 = vadd.f32 %v7614, %v7615
      %v7617 = vsel %vm6179, %v7582, 0.0
      %v7618 = vadd.f32 %v7616, %v7617
      %v7619 = vsel %vm6179, %v7583, 0.0
      %v7620 = vadd.f32 %v7618, %v7619
      %v7621 = vsel %vm6179, %v7584, 0.0
      %v7622 = vadd.f32 %v7620, %v7621
      %v7623 = vsel %vm6179, %v7585, 0.0
      %v7624 = vadd.f32 %v7622, %v7623
      %v7625 = vsel %vm6179, %v7586, 0.0
      %v7626 = vadd.f32 %v7624, %v7625
      %v7627 = vsel %vm6179, %v7587, 0.0
      %v7628 = vadd.f32 %v7626, %v7627
      %v7629 = vsel %vm6179, %v7588, 0.0
      %v7630 = vadd.f32 %v7628, %v7629
      %v7631 = vsel %vm6179, %v7589, 0.0
      %v7632 = vadd.f32 %v7630, %v7631
      %v7633 = vsel %vm6179, %v7590, 0.0
      %v7634 = vadd.f32 %v7632, %v7633
      %v7635 = vsel %vm6179, %v7591, 0.0
      %v7636 = vadd.f32 %v7634, %v7635
      %v7637 = vsel %vm6179, %v7592, 0.0
      %v7638 = vadd.f32 %v7636, %v7637
      %v7639 = vsel %vm6179, %v7593, 0.0
      %v7640 = vadd.f32 %v7638, %v7639
      %v7641 = vsel %vm6179, %v7594, 0.0
      %v7642 = vadd.f32 %v7640, %v7641
      %v7643 = vsel %vm7562, %v7595, 0.0
      %v7644 = vadd.f32 %v7642, %v7643
      %v7645 = vrot.slane %v7644, 4
      %v7646 = vadd.f32 %v7644, %v7645
      %v7647 = vrot.slane %v7646, 2
      %v7648 = vadd.f32 %v7646, %v7647
      %v7649 = vrot.slane %v7648, 1
      %v7650 = vadd.f32 %v7648, %v7649
      %vm7651 = vcmask 1040384
      %v7652 = vsel %vm7651, %v7570, %v7650
      %vm7653 = vcmask 58368
      %7654 = vst.msk [vmem:[%s335] sm:$0x3] %vm7653, %v7652
      %s7655 = smul.u32 14, %s25
      %p7656 = scmp.lt.s32.totalorder %s24, 1
      %s7657 = scalar_select %p7656, %s24, 1
      %p7658 = scmp.lt.s32.totalorder %s7655, 13
      %s7659 = scalar_select %p7658, %s7655, 13
      %p7660 = scmp.lt.s32.totalorder %s23, 0
      %s7661 = scalar_select %p7660, %s23, 0
      %s7662 = smul.addr %s7659, 2
      %s7663 = sadd.s32 %s7661, %s7662
      %s7664 = smul.addr %s7657, 28
      %s7665 = sadd.s32 %s7663, %s7664
      %s7666 = smul.addr %s7665, 8
      %s7667 = scalar_lea.vmem %s5, %s7666
      %p7668 = scmp.lt.s32.totalorder %s24, 1
      %s7669 = scalar_select %p7668, %s24, 1
      %p7670 = scmp.lt.s32.totalorder %s25, 0
      %s7671 = scalar_select %p7670, %s25, 0
      %p7672 = scmp.lt.s32.totalorder %s23, 0
      %s7673 = scalar_select %p7672, %s23, 0
      %s7674 = sadd.s32 %s7673, %s7671
      %s7675 = sadd.s32 %s7674, %s7669
      %s7676 = smul.addr %s7675, 2
      %s7677 = scalar_lea.vmem %s6, %s7676
      // Predicated region
      $region41: #{conv_bn_relu_pallas.1} parent=39 // pred_check
        %p7678 = pneg %p174
      $region42: #{conv_bn_relu_pallas.1} parent=39 // pred_check_branch
        %7680 = sbr.rel (%p7678) target = $region44
      $region43: #{conv_bn_relu_pallas.1} parent=39 // pred_region
        %s7681 = smul.u32 14, %s25
      $region44: #{conv_bn_relu_pallas.1} parent=39 // pred_fallthru
        _
      // Predicated region
      $region45: #{conv_bn_relu_pallas.1} parent=39 // pred_check
        %p7682 = pneg %p204
      $region46: #{conv_bn_relu_pallas.1} parent=39 // pred_check_branch
        %7684 = sbr.rel (%p7682) target = $region48
      $region47: #{conv_bn_relu_pallas.1} parent=39 // pred_region
        _
      $region48: #{conv_bn_relu_pallas.1} parent=39 // pred_fallthru
        _
    $region40: #{conv_bn_relu_pallas.1} parent=5 // pred_fallthru
      _
    %p7685 = scmp.le.s32.totalorder 2, %s13
    // Predicated region
    $region49: #{conv_bn_relu_pallas.1} parent=5 // pred_check
      %p7686 = pneg %p7685
    $region50: #{conv_bn_relu_pallas.1} parent=5 // pred_check_branch
      %7688 = sbr.rel (%p7686) target = $region52
    $region51: #{conv_bn_relu_pallas.1} parent=5 // pred_region
      %s7689 = ssub.s32 %s13, 2
      // Predicated region
      $region53: #{conv_bn_relu_pallas.1} parent=51 // pred_check
        %p7690 = pneg %p180
      $region54: #{conv_bn_relu_pallas.1} parent=51 // pred_check_branch
        %7692 = sbr.rel (%p7690) target = $region56
      $region55: #{conv_bn_relu_pallas.1} parent=51 // pred_region
        %s7693 = smul.u32 14, %s28
        %p7694 = scmp.lt.s32.totalorder %s27, 1
        %s7695 = scalar_select %p7694, %s27, 1
        %p7696 = scmp.lt.s32.totalorder %s7693, 13
        %s7697 = scalar_select %p7696, %s7693, 13
        %p7698 = scmp.lt.s32.totalorder %s26, 0
        %s7699 = scalar_select %p7698, %s26, 0
        %s7700 = smul.addr %s7697, 2
        %s7701 = sadd.s32 %s7699, %s7700
        %s7702 = smul.addr %s7695, 28
        %s7703 = sadd.s32 %s7701, %s7702
        %s7704 = smul.addr %s7703, 8
        %s7705 = scalar_lea.vmem %s5, %s7704
      $region56: #{conv_bn_relu_pallas.1} parent=51 // pred_fallthru
        _
      // Predicated region
      $region57: #{conv_bn_relu_pallas.1} parent=51 // pred_check
        %p7706 = pneg %p210
      $region58: #{conv_bn_relu_pallas.1} parent=51 // pred_check_branch
        %7708 = sbr.rel (%p7706) target = $region60
      $region59: #{conv_bn_relu_pallas.1} parent=51 // pred_region
        %p7709 = scmp.lt.s32.totalorder %s27, 1
        %s7710 = scalar_select %p7709, %s27, 1
        %p7711 = scmp.lt.s32.totalorder %s28, 0
        %s7712 = scalar_select %p7711, %s28, 0
        %p7713 = scmp.lt.s32.totalorder %s26, 0
        %s7714 = scalar_select %p7713, %s26, 0
        %s7715 = sadd.s32 %s7714, %s7712
        %s7716 = sadd.s32 %s7715, %s7710
        %s7717 = smul.addr %s7716, 2
        %s7718 = scalar_lea.vmem %s6, %s7717
      $region60: #{conv_bn_relu_pallas.1} parent=51 // pred_fallthru
        _
    $region52: #{conv_bn_relu_pallas.1} parent=5 // pred_fallthru
      _
  $region6: #{conv_bn_relu_pallas.1} parent=0 // loop_footer
    %s17 = sadd.s32 1, %s13
  $region7: #{conv_bn_relu_pallas.1} parent=0 // loop_footer_branch
    %12 = sbr.rel target = $region3
  $region8: #{conv_bn_relu_pallas.1} parent=0 // loop_exit
    _

</llo_original>
